<compile_context>
chip_gen: v7x
topology: tpu7x:2x2x1
jax: 0.10.0
libtpu: 0.0.40
codegen_flags: <defaults>
</compile_context>

<pallas_src>
import functools
import math

import jax
import jax.numpy as jnp
from jax import lax
from jax.experimental import pallas as pl
from jax.experimental.pallas import tpu as pltpu


# ---------------------------------------------------------------------------
# Fused kernel: one (batch, query-tile) grid step
# ---------------------------------------------------------------------------
def _l2_mha_fused_kernel(xk_ref, wq_ref, c_ref, b_ref, o_ref,
                         k_scr, sq_scr, *,
                         num_heads, head_dim, seq_len, q_tile,
                         matmul_dtype, approx_recip):
    # xk_ref: (1, T, D)   full sequence for this batch          (matmul_dtype)
    # wq_ref: (D, D)      q_weight flattened, cols grouped by h (matmul_dtype)
    # c_ref : (D, D)      folded (Wq_h^T Wv_h / sqrt(d)) Wout_h^T (matmul_dtype)
    # b_ref : (1, D)      out_proj bias                         (f32)
    # o_ref : (1, tq, D)  lane-dense output tile (final module output)
    # k_scr : (Tpad, D)   per-batch cached key projection       (matmul_dtype)
    # sq_scr: (H, T)      per-batch cached scale * |k_h|^2 rows (f32)
    H, d, T, tq = num_heads, head_dim, seq_len, q_tile
    D = H * d
    Tpad = k_scr.shape[0]
    mm = matmul_dtype
    scale = 1.0 / math.sqrt(d)
    qi = pl.program_id(1)

    # ---- once per batch: project keys, cache k (mm) and scale*|k_h|^2 ------
    @pl.when(qi == 0)
    def _():
        kproj = jnp.dot(xk_ref[0], wq_ref[...],
                        preferred_element_type=jnp.float32)        # (T, D) f32
        if Tpad == T:                                              # static branch
            k_scr[...] = kproj.astype(mm)
        else:
            k_scr[0:T, :] = kproj.astype(mm)
            k_scr[T:Tpad, :] = jnp.zeros((Tpad - T, D), mm)        # benign pad rows
        for h in range(H):                                         # cold path (once/batch)
            kh = kproj[:, h * d:(h + 1) * d]                       # (T, d)
            sq = jnp.sum(kh * kh, axis=-1, keepdims=True) * scale  # (T, 1)
            sq_scr[h:h + 1, :] = sq.T                              # (1, T): one XLU transpose per batch

    # ---- every query tile ---------------------------------------------------
    if Tpad == T:
        k_all = k_scr[...]                                         # (T, D)  mm
    else:
        k_all = k_scr[0:T, :]
    if Tpad // tq == 1:
        q_all = k_all                                              # single tile: queries == keys
    else:
        q_start = pl.multiple_of(qi * tq, tq)
        q_all = k_scr[pl.ds(q_start, tq), :]                       # (tq, D) mm

    two_scale = 2.0 * scale
    y = jnp.zeros((tq, D), jnp.float32)
    for h in range(H):                                             # static unroll (small H)
        lo = h * d
        hi = lo + d
        q_h = q_all[:, lo:hi] * two_scale                          # (tq, d), 2/sqrt(d) folded in
        k_h = k_all[:, lo:hi]                                      # (T, d)

        # logits = -|q - k|^2 / sqrt(d) up to a per-query constant (softmax
        # over keys is invariant to it):  (2/sqrt(d)) q.k  -  |k|^2/sqrt(d)
        qk = lax.dot_general(q_h, k_h, (((1,), (1,)), ((), ())),
                             preferred_element_type=jnp.float32)   # (tq, T) f32
        logits = qk - sq_scr[h:h + 1, :]                           # (tq, T) f32

        m = jnp.max(logits, axis=-1, keepdims=True)
        p = jnp.exp(logits - m)                                    # un-normalised probs
        s = jnp.sum(p, axis=-1, keepdims=True)                     # (tq, 1)
        z_h = jnp.dot(p.astype(mm), k_h,
                      preferred_element_type=jnp.float32)          # (tq, d) f32
        inv = pl.reciprocal(s, approx=True) if approx_recip else 1.0 / s
        zn = (z_h * inv).astype(mm)                                # deferred normalisation (tq,d)

        # folded epilogue, accumulated per head: (attn_h @ k_h) @ C_h
        y = y + jnp.dot(zn, c_ref[lo:hi, :],
                        preferred_element_type=jnp.float32)        # (tq, D) f32

    y = y + b_ref[...]                                             # + out_proj bias
    o_ref[...] = y[None].astype(o_ref.dtype)


# ---------------------------------------------------------------------------
# Generation-aware defaults
# ---------------------------------------------------------------------------
def _device_defaults():
    """(q_tile, vmem_limit_bytes) tuned per TPU generation."""
    kind = ""
    try:
        kind = jax.devices()[0].device_kind.lower()
    except Exception:
        pass
    mib = 1024 * 1024
    if "v6" in kind:
        return 256, 96 * mib       # 256-wide MXU, 128 MiB physical VMEM
    if "v5" in kind:
        return 128, 96 * mib       # 128-wide MXU, 128 MiB physical VMEM
    if "v7" in kind or "7x" in kind:
        return 128, 48 * mib       # 64 MiB physical VMEM
    return 128, 32 * mib           # conservative default for unknown chips


# ---------------------------------------------------------------------------
# Wrapper
# ---------------------------------------------------------------------------
def l2_multihead_attention(x, q_weight, v_weight, out_w, out_b, num_heads, *,
                           q_tile=None, matmul_dtype=jnp.float32,
                           approx_reciprocal=True, single_buffer_consts=True,
                           vmem_limit_bytes=None):
    """
    Args:
        x:        (T, N, D) float32   (PyTorch layout: seq, batch, embed)
        q_weight: (D, H, d) float32
        v_weight: (D, H, d) float32
        out_w:    (D, D)    float32   (torch Linear weight, out x in)
        out_b:    (D,)      float32
        matmul_dtype: MXU operand dtype (jnp.bfloat16 recommended on v6e/v7x;
            f32 accumulation everywhere, softmax / distance math stays f32 --
            note that in bf16 mode q/k themselves carry bf16 operand error).
    Returns:
        (T, N, D) in x.dtype
    """
    T, N, D = x.shape
    H = num_heads
    d = D // H
    assert H * d == D, "embed_dim must be divisible by num_heads"
    scale = 1.0 / math.sqrt(d)
    mm = matmul_dtype

    dflt_tile, dflt_vmem = _device_defaults()
    if q_tile is None:
        q_tile = dflt_tile
    if vmem_limit_bytes is None:
        vmem_limit_bytes = dflt_vmem

    # ---- batch-invariant algebraic folds (tiny; done once by XLA) ----------
    wq_flat = q_weight.reshape(D, D).astype(mm)                  # x @ wq_flat = q (= k)
    B = jnp.einsum('mhe,mhf->hef', q_weight, v_weight) * scale   # Wq_h^T Wv_h / sqrt(d)
    w_out_heads = out_w.T.reshape(H, d, D)                       # rows of Wout^T per head
    C = jnp.einsum('hef,hfo->heo', B, w_out_heads).reshape(D, D).astype(mm)

    x_b = jnp.transpose(x, (1, 0, 2)).astype(mm)                 # (N, T, D) lane-dense
    bias2 = out_b.reshape(1, D).astype(jnp.float32)

    # Query-axis tiling bounds the (tq, T) logits in VMEM.
    if T <= q_tile:
        tq = T
    else:
        assert q_tile % 8 == 0, "q_tile must be a multiple of 8"
        tq = q_tile
    nq = pl.cdiv(T, tq)
    t_pad = nq * tq                                              # key-cache scratch rows

    kernel = functools.partial(
        _l2_mha_fused_kernel, num_heads=H, head_dim=d, seq_len=T, q_tile=tq,
        matmul_dtype=mm, approx_recip=approx_reciprocal)

    def _call(single_buffer):
        pm = {"pipeline_mode": pl.Buffered(1)} if single_buffer else {}
        grid_spec = pltpu.PrefetchScalarGridSpec(
            num_scalar_prefetch=0,
            grid=(N, nq),
            in_specs=[
                pl.BlockSpec((1, T, D), lambda b, qi: (b, 0, 0), **pm),  # keys (per batch)
                pl.BlockSpec((D, D), lambda b, qi: (0, 0), **pm),        # Wq flat (constant)
                pl.BlockSpec((D, D), lambda b, qi: (0, 0), **pm),        # folded C (constant)
                pl.BlockSpec((1, D), lambda b, qi: (0, 0), **pm),        # bias (constant)
            ],
            out_specs=pl.BlockSpec((1, tq, D), lambda b, qi: (b, qi, 0)),
            scratch_shapes=[
                pltpu.VMEM((t_pad, D), mm),        # cached key projection
                pltpu.VMEM((H, T), jnp.float32),   # cached scale * |k_h|^2 rows
            ],
        )
        return pl.pallas_call(
            kernel,
            out_shape=jax.ShapeDtypeStruct((N, T, D), x.dtype),
            grid_spec=grid_spec,
            compiler_params=pltpu.CompilerParams(
                dimension_semantics=("parallel", "arbitrary"),
                vmem_limit_bytes=vmem_limit_bytes,
            ),
        )(x_b, wq_flat, C, bias2)

    if single_buffer_consts:
        try:
            y_b = _call(True)
        except Exception:
            # pl.Buffered(1) unsupported by this JAX version: fall back to
            # default double-buffering (identical results, more VMEM).
            y_b = _call(False)
    else:
        y_b = _call(False)

    return jnp.transpose(y_b, (1, 0, 2))                         # back to (T, N, D)


# ---------------------------------------------------------------------------
# Pure-JAX reference (mirrors the torch einsums) for a correctness check.
# ---------------------------------------------------------------------------
def _reference(x, q_weight, v_weight, out_w, out_b, num_heads):
    T, N, D = x.shape
    d = D // num_heads
    scale = 1.0 / math.sqrt(d)
    q = jnp.einsum('tbm,mhd->tbhd', x, q_weight)
    sq_t = jnp.einsum('tbhd,tbhd->tbh', q, q)
    sqdist = sq_t[:, None] + sq_t[None, :] - 2.0 * jnp.einsum('tbhd,sbhd->tsbh', q, q)
    attn = jax.nn.softmax(-sqdist * scale, axis=1)
    A = jnp.einsum('mhd,nhd->hmn', q_weight, q_weight) * scale
    XA = jnp.einsum('tbm,hmn->tbhn', x, A)
    PXA = jnp.einsum('tsbh,sbhm->tbhm', attn, XA)
    PXAV = jnp.einsum('tbhm,mhd->tbhd', PXA, v_weight).reshape(T, N, D)
    return PXAV @ out_w.T + out_b


if __name__ == "__main__":
    # Small deterministic problem: T=8 tokens, N=2 batch, D=32 embed, H=4 heads
    T, N, D, H = 8, 2, 32, 4
    d = D // H

    key = jax.random.PRNGKey(0)
    kq, kv, kw, kb, kx = jax.random.split(key, 5)

    # xavier_uniform over the (D, D) view
    bound = math.sqrt(6.0 / (D + D))
    q_weight = jax.random.uniform(kq, (D, H, d), jnp.float32, -bound, bound)
    v_weight = jax.random.uniform(kv, (D, H, d), jnp.float32, -bound, bound)

    # nn.Linear default init (kaiming-uniform-ish bounds)
    lb = 1.0 / math.sqrt(D)
    out_w = jax.random.uniform(kw, (D, D), jnp.float32, -lb, lb)
    out_b = jax.random.uniform(kb, (D,), jnp.float32, -lb, lb)

    x = jax.random.normal(kx, (T, N, D), jnp.float32)

    ref = _reference(x, q_weight, v_weight, out_w, out_b, H)

    # f32 matmul path (strict-ish check; approx reciprocal in the softmax)
    out = jax.block_until_ready(
        l2_multihead_attention(x, q_weight, v_weight, out_w, out_b, H))
    assert out.shape == (T, N, D)
    assert jnp.max(jnp.abs(out - ref)) < 3e-3, "f32 kernel mismatch vs reference"

    # bf16 matmul-operand path (v6e/v7x MXU peak, bf16 qk logits), loose tol
    out_bf16 = jax.block_until_ready(
        l2_multihead_attention(x, q_weight, v_weight, out_w, out_b, H,
                               matmul_dtype=jnp.bfloat16))
    assert jnp.max(jnp.abs(out_bf16 - ref)) < 2e-1, "bf16 kernel mismatch vs reference"

    print("KERNEL_OK")
</pallas_src>

<mosaic_0001>
module attributes {stable_mosaic.version = 11 : i64} {
  func.func @_l2_mha_fused_kernel(%arg0: i32, %arg1: i32, %arg2: memref<1x8x32xf32, #tpu.memory_space<vmem>>, %arg3: memref<32x32xf32, #tpu.memory_space<vmem>>, %arg4: memref<32x32xf32, #tpu.memory_space<vmem>>, %arg5: memref<1x32xf32, #tpu.memory_space<vmem>>, %arg6: memref<1x8x32xf32, #tpu.memory_space<vmem>>, %arg7: memref<8x32xf32, #tpu.memory_space<vmem>>, %arg8: memref<4x8xf32, #tpu.memory_space<vmem>>) attributes {dimension_semantics = [#tpu.dimension_semantics<parallel>, #tpu.dimension_semantics<arbitrary>], iteration_bounds = array<i64: 2, 1>, scalar_prefetch = 0 : i64, scratch_operands = 2 : i64, tpu.core_type = #tpu.core_type<tc>, window_params = [{pipeline_mode = #tpu.pipeline_mode<synchronous>, transform_indices = @transform_0, window_bounds = array<i64: 1, 8, 32>}, {pipeline_mode = #tpu.pipeline_mode<synchronous>, transform_indices = @transform_1, window_bounds = array<i64: 32, 32>}, {pipeline_mode = #tpu.pipeline_mode<synchronous>, transform_indices = @transform_2, window_bounds = array<i64: 32, 32>}, {pipeline_mode = #tpu.pipeline_mode<synchronous>, transform_indices = @transform_3, window_bounds = array<i64: 1, 32>}, {transform_indices = @transform_4, window_bounds = array<i64: 1, 8, 32>}]} {
    %c0_i32 = arith.constant 0 : i32
    %0 = arith.cmpi eq, %arg1, %c0_i32 : i32
    %1 = arith.extui %0 : i1 to i32
    %c0_i32_0 = arith.constant 0 : i32
    %2 = arith.cmpi ne, %1, %c0_i32_0 : i32
    scf.if %2 {
      %c0_41 = arith.constant 0 : index
      %c0_42 = arith.constant 0 : index
      %c0_43 = arith.constant 0 : index
      %98 = vector.load %arg2[%c0_41, %c0_42, %c0_43] : memref<1x8x32xf32, #tpu.memory_space<vmem>>, vector<1x8x32xf32>
      %99 = vector.shape_cast %98 : vector<1x8x32xf32> to vector<8x32xf32>
      %c0_44 = arith.constant 0 : index
      %c0_45 = arith.constant 0 : index
      %100 = vector.load %arg3[%c0_44, %c0_45] : memref<32x32xf32, #tpu.memory_space<vmem>>, vector<32x32xf32>
      %cst_46 = arith.constant dense<0.000000e+00> : vector<8x32xf32>
      %101 = tpu.matmul %99, %100, %cst_46 {dimension_numbers = #tpu.dot_dimension_numbers<[1], [0], [0], [1], [0, 0, 1, 1], [], []>} : vector<8x32xf32>, vector<32x32xf32>, vector<8x32xf32> -> vector<8x32xf32>
      %c0_47 = arith.constant 0 : index
      %c0_48 = arith.constant 0 : index
      %102 = vector.load %arg7[%c0_47, %c0_48] : memref<8x32xf32, #tpu.memory_space<vmem>>, vector<8x32xf32>
      tpu.vector_store %arg7[%c0_47, %c0_48], %101 {strides = array<i32>} : memref<8x32xf32, #tpu.memory_space<vmem>>, vector<8x32xf32>,
      %103 = vector.extract_strided_slice %101 {offsets = [0, 0], sizes = [8, 8], strides = [1, 1]} : vector<8x32xf32> to vector<8x8xf32>
      %104 = arith.mulf %103, %103 : vector<8x8xf32>
      %cst_49 = arith.constant dense<0.000000e+00> : vector<8xf32>
      %105 = vector.multi_reduction <add>, %104, %cst_49 [1] : vector<8x8xf32> to vector<8xf32>
      %106 = vector.shape_cast %105 : vector<8xf32> to vector<8x1xf32>
      %cst_50 = arith.constant 0.353553385 : f32
      %107 = vector.broadcast %cst_50 : f32 to vector<8x1xf32>
      %108 = arith.mulf %106, %107 : vector<8x1xf32>
      %109 = tpu.transpose %108, [1, 0] : vector<8x1xf32> -> vector<1x8xf32>
      %c0_51 = arith.constant 0 : index
      %c0_52 = arith.constant 0 : index
      %110 = vector.load %arg8[%c0_51, %c0_52] : memref<4x8xf32, #tpu.memory_space<vmem>>, vector<1x8xf32>
      tpu.vector_store %arg8[%c0_51, %c0_52], %109 {strides = array<i32>} : memref<4x8xf32, #tpu.memory_space<vmem>>, vector<1x8xf32>,
      %111 = vector.extract_strided_slice %101 {offsets = [0, 8], sizes = [8, 8], strides = [1, 1]} : vector<8x32xf32> to vector<8x8xf32>
      %112 = arith.mulf %111, %111 : vector<8x8xf32>
      %cst_53 = arith.constant dense<0.000000e+00> : vector<8xf32>
      %113 = vector.multi_reduction <add>, %112, %cst_53 [1] : vector<8x8xf32> to vector<8xf32>
      %114 = vector.shape_cast %113 : vector<8xf32> to vector<8x1xf32>
      %cst_54 = arith.constant 0.353553385 : f32
      %115 = vector.broadcast %cst_54 : f32 to vector<8x1xf32>
      %116 = arith.mulf %114, %115 : vector<8x1xf32>
      %117 = tpu.transpose %116, [1, 0] : vector<8x1xf32> -> vector<1x8xf32>
      %c1_55 = arith.constant 1 : index
      %c0_56 = arith.constant 0 : index
      %118 = vector.load %arg8[%c1_55, %c0_56] : memref<4x8xf32, #tpu.memory_space<vmem>>, vector<1x8xf32>
      tpu.vector_store %arg8[%c1_55, %c0_56], %117 {strides = array<i32>} : memref<4x8xf32, #tpu.memory_space<vmem>>, vector<1x8xf32>,
      %119 = vector.extract_strided_slice %101 {offsets = [0, 16], sizes = [8, 8], strides = [1, 1]} : vector<8x32xf32> to vector<8x8xf32>
      %120 = arith.mulf %119, %119 : vector<8x8xf32>
      %cst_57 = arith.constant dense<0.000000e+00> : vector<8xf32>
      %121 = vector.multi_reduction <add>, %120, %cst_57 [1] : vector<8x8xf32> to vector<8xf32>
      %122 = vector.shape_cast %121 : vector<8xf32> to vector<8x1xf32>
      %cst_58 = arith.constant 0.353553385 : f32
      %123 = vector.broadcast %cst_58 : f32 to vector<8x1xf32>
      %124 = arith.mulf %122, %123 : vector<8x1xf32>
      %125 = tpu.transpose %124, [1, 0] : vector<8x1xf32> -> vector<1x8xf32>
      %c2_59 = arith.constant 2 : index
      %c0_60 = arith.constant 0 : index
      %126 = vector.load %arg8[%c2_59, %c0_60] : memref<4x8xf32, #tpu.memory_space<vmem>>, vector<1x8xf32>
      tpu.vector_store %arg8[%c2_59, %c0_60], %125 {strides = array<i32>} : memref<4x8xf32, #tpu.memory_space<vmem>>, vector<1x8xf32>,
      %127 = vector.extract_strided_slice %101 {offsets = [0, 24], sizes = [8, 8], strides = [1, 1]} : vector<8x32xf32> to vector<8x8xf32>
      %128 = arith.mulf %127, %127 : vector<8x8xf32>
      %cst_61 = arith.constant dense<0.000000e+00> : vector<8xf32>
      %129 = vector.multi_reduction <add>, %128, %cst_61 [1] : vector<8x8xf32> to vector<8xf32>
      %130 = vector.shape_cast %129 : vector<8xf32> to vector<8x1xf32>
      %cst_62 = arith.constant 0.353553385 : f32
      %131 = vector.broadcast %cst_62 : f32 to vector<8x1xf32>
      %132 = arith.mulf %130, %131 : vector<8x1xf32>
      %133 = tpu.transpose %132, [1, 0] : vector<8x1xf32> -> vector<1x8xf32>
      %c3_63 = arith.constant 3 : index
      %c0_64 = arith.constant 0 : index
      %134 = vector.load %arg8[%c3_63, %c0_64] : memref<4x8xf32, #tpu.memory_space<vmem>>, vector<1x8xf32>
      tpu.vector_store %arg8[%c3_63, %c0_64], %133 {strides = array<i32>} : memref<4x8xf32, #tpu.memory_space<vmem>>, vector<1x8xf32>,
    } else {
    }
    %c0 = arith.constant 0 : index
    %c0_1 = arith.constant 0 : index
    %3 = vector.load %arg7[%c0, %c0_1] : memref<8x32xf32, #tpu.memory_space<vmem>>, vector<8x32xf32>
    %cst = arith.constant 0.000000e+00 : f32
    %4 = vector.broadcast %cst : f32 to vector<8x32xf32>
    %5 = vector.extract_strided_slice %3 {offsets = [0, 0], sizes = [8, 8], strides = [1, 1]} : vector<8x32xf32> to vector<8x8xf32>
    %cst_2 = arith.constant 0.707106769 : f32
    %6 = vector.broadcast %cst_2 : f32 to vector<8x8xf32>
    %7 = arith.mulf %5, %6 : vector<8x8xf32>
    %8 = vector.extract_strided_slice %3 {offsets = [0, 0], sizes = [8, 8], strides = [1, 1]} : vector<8x32xf32> to vector<8x8xf32>
    %cst_3 = arith.constant dense<0.000000e+00> : vector<8x8xf32>
    %9 = tpu.matmul %7, %8, %cst_3 {dimension_numbers = #tpu.dot_dimension_numbers<[1], [1], [0], [0], [0, 0, 1, 0], [], []>} : vector<8x8xf32>, vector<8x8xf32>, vector<8x8xf32> -> vector<8x8xf32>
    %c0_4 = arith.constant 0 : index
    %c0_5 = arith.constant 0 : index
    %10 = vector.load %arg8[%c0_4, %c0_5] : memref<4x8xf32, #tpu.memory_space<vmem>>, vector<1x8xf32>
    %11 = vector.broadcast %10 : vector<1x8xf32> to vector<8x8xf32>
    %12 = arith.subf %9, %11 : vector<8x8xf32>
    %cst_6 = arith.constant dense<0xFF800000> : vector<8xf32>
    %13 = vector.multi_reduction <maximumf>, %12, %cst_6 [1] : vector<8x8xf32> to vector<8xf32>
    %14 = vector.shape_cast %13 : vector<8xf32> to vector<8x1xf32>
    %15 = vector.broadcast %14 : vector<8x1xf32> to vector<8x8xf32>
    %16 = arith.subf %12, %15 : vector<8x8xf32>
    %17 = math.exp %16 : vector<8x8xf32>
    %cst_7 = arith.constant dense<0.000000e+00> : vector<8xf32>
    %18 = vector.multi_reduction <add>, %17, %cst_7 [1] : vector<8x8xf32> to vector<8xf32>
    %19 = vector.shape_cast %18 : vector<8xf32> to vector<8x1xf32>
    %cst_8 = arith.constant dense<0.000000e+00> : vector<8x8xf32>
    %20 = tpu.matmul %17, %8, %cst_8 {dimension_numbers = #tpu.dot_dimension_numbers<[1], [0], [0], [1], [0, 0, 1, 1], [], []>} : vector<8x8xf32>, vector<8x8xf32>, vector<8x8xf32> -> vector<8x8xf32>
    %21 = tpu.reciprocal %19 {approx = true} : vector<8x1xf32> -> vector<8x1xf32>
    %22 = vector.broadcast %21 : vector<8x1xf32> to vector<8x8xf32>
    %23 = arith.mulf %20, %22 : vector<8x8xf32>
    %c0_9 = arith.constant 0 : index
    %c0_10 = arith.constant 0 : index
    %24 = vector.load %arg4[%c0_9, %c0_10] : memref<32x32xf32, #tpu.memory_space<vmem>>, vector<8x32xf32>
    %cst_11 = arith.constant dense<0.000000e+00> : vector<8x32xf32>
    %25 = tpu.matmul %23, %24, %cst_11 {dimension_numbers = #tpu.dot_dimension_numbers<[1], [0], [0], [1], [0, 0, 1, 1], [], []>} : vector<8x8xf32>, vector<8x32xf32>, vector<8x32xf32> -> vector<8x32xf32>
    %26 = arith.addf %4, %25 : vector<8x32xf32>
    %27 = vector.extract_strided_slice %3 {offsets = [0, 8], sizes = [8, 8], strides = [1, 1]} : vector<8x32xf32> to vector<8x8xf32>
    %cst_12 = arith.constant 0.707106769 : f32
    %28 = vector.broadcast %cst_12 : f32 to vector<8x8xf32>
    %29 = arith.mulf %27, %28 : vector<8x8xf32>
    %30 = vector.extract_strided_slice %3 {offsets = [0, 8], sizes = [8, 8], strides = [1, 1]} : vector<8x32xf32> to vector<8x8xf32>
    %cst_13 = arith.constant dense<0.000000e+00> : vector<8x8xf32>
    %31 = tpu.matmul %29, %30, %cst_13 {dimension_numbers = #tpu.dot_dimension_numbers<[1], [1], [0], [0], [0, 0, 1, 0], [], []>} : vector<8x8xf32>, vector<8x8xf32>, vector<8x8xf32> -> vector<8x8xf32>
    %c1 = arith.constant 1 : index
    %c0_14 = arith.constant 0 : index
    %32 = vector.load %arg8[%c1, %c0_14] : memref<4x8xf32, #tpu.memory_space<vmem>>, vector<1x8xf32>
    %33 = vector.broadcast %32 : vector<1x8xf32> to vector<8x8xf32>
    %34 = arith.subf %31, %33 : vector<8x8xf32>
    %cst_15 = arith.constant dense<0xFF800000> : vector<8xf32>
    %35 = vector.multi_reduction <maximumf>, %34, %cst_15 [1] : vector<8x8xf32> to vector<8xf32>
    %36 = vector.shape_cast %35 : vector<8xf32> to vector<8x1xf32>
    %37 = vector.broadcast %36 : vector<8x1xf32> to vector<8x8xf32>
    %38 = arith.subf %34, %37 : vector<8x8xf32>
    %39 = math.exp %38 : vector<8x8xf32>
    %cst_16 = arith.constant dense<0.000000e+00> : vector<8xf32>
    %40 = vector.multi_reduction <add>, %39, %cst_16 [1] : vector<8x8xf32> to vector<8xf32>
    %41 = vector.shape_cast %40 : vector<8xf32> to vector<8x1xf32>
    %cst_17 = arith.constant dense<0.000000e+00> : vector<8x8xf32>
    %42 = tpu.matmul %39, %30, %cst_17 {dimension_numbers = #tpu.dot_dimension_numbers<[1], [0], [0], [1], [0, 0, 1, 1], [], []>} : vector<8x8xf32>, vector<8x8xf32>, vector<8x8xf32> -> vector<8x8xf32>
    %43 = tpu.reciprocal %41 {approx = true} : vector<8x1xf32> -> vector<8x1xf32>
    %44 = vector.broadcast %43 : vector<8x1xf32> to vector<8x8xf32>
    %45 = arith.mulf %42, %44 : vector<8x8xf32>
    %c8 = arith.constant 8 : index
    %c0_18 = arith.constant 0 : index
    %46 = vector.load %arg4[%c8, %c0_18] : memref<32x32xf32, #tpu.memory_space<vmem>>, vector<8x32xf32>
    %cst_19 = arith.constant dense<0.000000e+00> : vector<8x32xf32>
    %47 = tpu.matmul %45, %46, %cst_19 {dimension_numbers = #tpu.dot_dimension_numbers<[1], [0], [0], [1], [0, 0, 1, 1], [], []>} : vector<8x8xf32>, vector<8x32xf32>, vector<8x32xf32> -> vector<8x32xf32>
    %48 = arith.addf %26, %47 : vector<8x32xf32>
    %49 = vector.extract_strided_slice %3 {offsets = [0, 16], sizes = [8, 8], strides = [1, 1]} : vector<8x32xf32> to vector<8x8xf32>
    %cst_20 = arith.constant 0.707106769 : f32
    %50 = vector.broadcast %cst_20 : f32 to vector<8x8xf32>
    %51 = arith.mulf %49, %50 : vector<8x8xf32>
    %52 = vector.extract_strided_slice %3 {offsets = [0, 16], sizes = [8, 8], strides = [1, 1]} : vector<8x32xf32> to vector<8x8xf32>
    %cst_21 = arith.constant dense<0.000000e+00> : vector<8x8xf32>
    %53 = tpu.matmul %51, %52, %cst_21 {dimension_numbers = #tpu.dot_dimension_numbers<[1], [1], [0], [0], [0, 0, 1, 0], [], []>} : vector<8x8xf32>, vector<8x8xf32>, vector<8x8xf32> -> vector<8x8xf32>
    %c2 = arith.constant 2 : index
    %c0_22 = arith.constant 0 : index
    %54 = vector.load %arg8[%c2, %c0_22] : memref<4x8xf32, #tpu.memory_space<vmem>>, vector<1x8xf32>
    %55 = vector.broadcast %54 : vector<1x8xf32> to vector<8x8xf32>
    %56 = arith.subf %53, %55 : vector<8x8xf32>
    %cst_23 = arith.constant dense<0xFF800000> : vector<8xf32>
    %57 = vector.multi_reduction <maximumf>, %56, %cst_23 [1] : vector<8x8xf32> to vector<8xf32>
    %58 = vector.shape_cast %57 : vector<8xf32> to vector<8x1xf32>
    %59 = vector.broadcast %58 : vector<8x1xf32> to vector<8x8xf32>
    %60 = arith.subf %56, %59 : vector<8x8xf32>
    %61 = math.exp %60 : vector<8x8xf32>
    %cst_24 = arith.constant dense<0.000000e+00> : vector<8xf32>
    %62 = vector.multi_reduction <add>, %61, %cst_24 [1] : vector<8x8xf32> to vector<8xf32>
    %63 = vector.shape_cast %62 : vector<8xf32> to vector<8x1xf32>
    %cst_25 = arith.constant dense<0.000000e+00> : vector<8x8xf32>
    %64 = tpu.matmul %61, %52, %cst_25 {dimension_numbers = #tpu.dot_dimension_numbers<[1], [0], [0], [1], [0, 0, 1, 1], [], []>} : vector<8x8xf32>, vector<8x8xf32>, vector<8x8xf32> -> vector<8x8xf32>
    %65 = tpu.reciprocal %63 {approx = true} : vector<8x1xf32> -> vector<8x1xf32>
    %66 = vector.broadcast %65 : vector<8x1xf32> to vector<8x8xf32>
    %67 = arith.mulf %64, %66 : vector<8x8xf32>
    %c16 = arith.constant 16 : index
    %c0_26 = arith.constant 0 : index
    %68 = vector.load %arg4[%c16, %c0_26] : memref<32x32xf32, #tpu.memory_space<vmem>>, vector<8x32xf32>
    %cst_27 = arith.constant dense<0.000000e+00> : vector<8x32xf32>
    %69 = tpu.matmul %67, %68, %cst_27 {dimension_numbers = #tpu.dot_dimension_numbers<[1], [0], [0], [1], [0, 0, 1, 1], [], []>} : vector<8x8xf32>, vector<8x32xf32>, vector<8x32xf32> -> vector<8x32xf32>
    %70 = arith.addf %48, %69 : vector<8x32xf32>
    %71 = vector.extract_strided_slice %3 {offsets = [0, 24], sizes = [8, 8], strides = [1, 1]} : vector<8x32xf32> to vector<8x8xf32>
    %cst_28 = arith.constant 0.707106769 : f32
    %72 = vector.broadcast %cst_28 : f32 to vector<8x8xf32>
    %73 = arith.mulf %71, %72 : vector<8x8xf32>
    %74 = vector.extract_strided_slice %3 {offsets = [0, 24], sizes = [8, 8], strides = [1, 1]} : vector<8x32xf32> to vector<8x8xf32>
    %cst_29 = arith.constant dense<0.000000e+00> : vector<8x8xf32>
    %75 = tpu.matmul %73, %74, %cst_29 {dimension_numbers = #tpu.dot_dimension_numbers<[1], [1], [0], [0], [0, 0, 1, 0], [], []>} : vector<8x8xf32>, vector<8x8xf32>, vector<8x8xf32> -> vector<8x8xf32>
    %c3 = arith.constant 3 : index
    %c0_30 = arith.constant 0 : index
    %76 = vector.load %arg8[%c3, %c0_30] : memref<4x8xf32, #tpu.memory_space<vmem>>, vector<1x8xf32>
    %77 = vector.broadcast %76 : vector<1x8xf32> to vector<8x8xf32>
    %78 = arith.subf %75, %77 : vector<8x8xf32>
    %cst_31 = arith.constant dense<0xFF800000> : vector<8xf32>
    %79 = vector.multi_reduction <maximumf>, %78, %cst_31 [1] : vector<8x8xf32> to vector<8xf32>
    %80 = vector.shape_cast %79 : vector<8xf32> to vector<8x1xf32>
    %81 = vector.broadcast %80 : vector<8x1xf32> to vector<8x8xf32>
    %82 = arith.subf %78, %81 : vector<8x8xf32>
    %83 = math.exp %82 : vector<8x8xf32>
    %cst_32 = arith.constant dense<0.000000e+00> : vector<8xf32>
    %84 = vector.multi_reduction <add>, %83, %cst_32 [1] : vector<8x8xf32> to vector<8xf32>
    %85 = vector.shape_cast %84 : vector<8xf32> to vector<8x1xf32>
    %cst_33 = arith.constant dense<0.000000e+00> : vector<8x8xf32>
    %86 = tpu.matmul %83, %74, %cst_33 {dimension_numbers = #tpu.dot_dimension_numbers<[1], [0], [0], [1], [0, 0, 1, 1], [], []>} : vector<8x8xf32>, vector<8x8xf32>, vector<8x8xf32> -> vector<8x8xf32>
    %87 = tpu.reciprocal %85 {approx = true} : vector<8x1xf32> -> vector<8x1xf32>
    %88 = vector.broadcast %87 : vector<8x1xf32> to vector<8x8xf32>
    %89 = arith.mulf %86, %88 : vector<8x8xf32>
    %c24 = arith.constant 24 : index
    %c0_34 = arith.constant 0 : index
    %90 = vector.load %arg4[%c24, %c0_34] : memref<32x32xf32, #tpu.memory_space<vmem>>, vector<8x32xf32>
    %cst_35 = arith.constant dense<0.000000e+00> : vector<8x32xf32>
    %91 = tpu.matmul %89, %90, %cst_35 {dimension_numbers = #tpu.dot_dimension_numbers<[1], [0], [0], [1], [0, 0, 1, 1], [], []>} : vector<8x8xf32>, vector<8x32xf32>, vector<8x32xf32> -> vector<8x32xf32>
    %92 = arith.addf %70, %91 : vector<8x32xf32>
    %c0_36 = arith.constant 0 : index
    %c0_37 = arith.constant 0 : index
    %93 = vector.load %arg5[%c0_36, %c0_37] : memref<1x32xf32, #tpu.memory_space<vmem>>, vector<1x32xf32>
    %94 = vector.broadcast %93 : vector<1x32xf32> to vector<8x32xf32>
    %95 = arith.addf %92, %94 : vector<8x32xf32>
    %96 = vector.shape_cast %95 : vector<8x32xf32> to vector<1x8x32xf32>
    %c0_38 = arith.constant 0 : index
    %c0_39 = arith.constant 0 : index
    %c0_40 = arith.constant 0 : index
    %97 = vector.load %arg6[%c0_38, %c0_39, %c0_40] : memref<1x8x32xf32, #tpu.memory_space<vmem>>, vector<1x8x32xf32>
    tpu.vector_store %arg6[%c0_38, %c0_39, %c0_40], %96 {strides = array<i32>} : memref<1x8x32xf32, #tpu.memory_space<vmem>>, vector<1x8x32xf32>,
    return
  }
  func.func @transform_0(%arg0: i32, %arg1: i32) -> (i32, i32, i32) {
    %c0_i32 = arith.constant 0 : i32
    %c0_i32_0 = arith.constant 0 : i32
    %c0_i32_1 = arith.constant 0 : i32
    return %arg0, %c0_i32, %c0_i32_0 : i32, i32, i32
  }
  func.func @transform_1(%arg0: i32, %arg1: i32) -> (i32, i32) {
    %c0_i32 = arith.constant 0 : i32
    %c0_i32_0 = arith.constant 0 : i32
    %c0_i32_1 = arith.constant 0 : i32
    return %c0_i32, %c0_i32_0 : i32, i32
  }
  func.func @transform_2(%arg0: i32, %arg1: i32) -> (i32, i32) {
    %c0_i32 = arith.constant 0 : i32
    %c0_i32_0 = arith.constant 0 : i32
    %c0_i32_1 = arith.constant 0 : i32
    return %c0_i32, %c0_i32_0 : i32, i32
  }
  func.func @transform_3(%arg0: i32, %arg1: i32) -> (i32, i32) {
    %c0_i32 = arith.constant 0 : i32
    %c0_i32_0 = arith.constant 0 : i32
    %c0_i32_1 = arith.constant 0 : i32
    return %c0_i32, %c0_i32_0 : i32, i32
  }
  func.func @transform_4(%arg0: i32, %arg1: i32) -> (i32, i32, i32) {
    %c0_i32 = arith.constant 0 : i32
    %c0_i32_0 = arith.constant 0 : i32
    return %arg0, %arg1, %c0_i32 : i32, i32, i32
  }
}

module attributes {stable_mosaic.version = 11 : i64} {
  func.func @_l2_mha_fused_kernel(%arg0: i32, %arg1: i32, %arg2: memref<1x8x32xf32, #tpu.memory_space<vmem>>, %arg3: memref<32x32xf32, #tpu.memory_space<vmem>>, %arg4: memref<32x32xf32, #tpu.memory_space<vmem>>, %arg5: memref<1x32xf32, #tpu.memory_space<vmem>>, %arg6: memref<1x8x32xf32, #tpu.memory_space<vmem>>, %arg7: memref<8x32xf32, #tpu.memory_space<vmem>>, %arg8: memref<4x8xf32, #tpu.memory_space<vmem>>) attributes {dimension_semantics = [#tpu.dimension_semantics<parallel>, #tpu.dimension_semantics<arbitrary>], iteration_bounds = array<i64: 2, 1>, scalar_prefetch = 0 : i64, scratch_operands = 2 : i64, tpu.core_type = #tpu.core_type<tc>, window_params = [{transform_indices = @transform_0, window_bounds = array<i64: 1, 8, 32>}, {pipeline_mode = #tpu.pipeline_mode<synchronous>, transform_indices = @transform_1, window_bounds = array<i64: 32, 32>}, {pipeline_mode = #tpu.pipeline_mode<synchronous>, transform_indices = @transform_2, window_bounds = array<i64: 32, 32>}, {pipeline_mode = #tpu.pipeline_mode<synchronous>, transform_indices = @transform_3, window_bounds = array<i64: 1, 32>}, {transform_indices = @transform_4, window_bounds = array<i64: 1, 8, 32>}]} {
    %c0_i32 = arith.constant 0 : i32
    %0 = arith.cmpi eq, %arg1, %c0_i32 : i32
    %1 = arith.extui %0 : i1 to i32
    %c0_i32_0 = arith.constant 0 : i32
    %2 = arith.cmpi ne, %1, %c0_i32_0 : i32
    scf.if %2 {
      %c0_41 = arith.constant 0 : index
      %c0_42 = arith.constant 0 : index
      %c0_43 = arith.constant 0 : index
      %98 = vector.load %arg2[%c0_41, %c0_42, %c0_43] : memref<1x8x32xf32, #tpu.memory_space<vmem>>, vector<1x8x32xf32>
      %99 = vector.shape_cast %98 : vector<1x8x32xf32> to vector<8x32xf32>
      %c0_44 = arith.constant 0 : index
      %c0_45 = arith.constant 0 : index
      %100 = vector.load %arg3[%c0_44, %c0_45] : memref<32x32xf32, #tpu.memory_space<vmem>>, vector<32x32xf32>
      %cst_46 = arith.constant dense<0.000000e+00> : vector<8x32xf32>
      %101 = tpu.matmul %99, %100, %cst_46 {dimension_numbers = #tpu.dot_dimension_numbers<[1], [0], [0], [1], [0, 0, 1, 1], [], []>} : vector<8x32xf32>, vector<32x32xf32>, vector<8x32xf32> -> vector<8x32xf32>
      %c0_47 = arith.constant 0 : index
      %c0_48 = arith.constant 0 : index
      %102 = vector.load %arg7[%c0_47, %c0_48] : memref<8x32xf32, #tpu.memory_space<vmem>>, vector<8x32xf32>
      tpu.vector_store %arg7[%c0_47, %c0_48], %101 {strides = array<i32>} : memref<8x32xf32, #tpu.memory_space<vmem>>, vector<8x32xf32>,
      %103 = vector.extract_strided_slice %101 {offsets = [0, 0], sizes = [8, 8], strides = [1, 1]} : vector<8x32xf32> to vector<8x8xf32>
      %104 = arith.mulf %103, %103 : vector<8x8xf32>
      %cst_49 = arith.constant dense<0.000000e+00> : vector<8xf32>
      %105 = vector.multi_reduction <add>, %104, %cst_49 [1] : vector<8x8xf32> to vector<8xf32>
      %106 = vector.shape_cast %105 : vector<8xf32> to vector<8x1xf32>
      %cst_50 = arith.constant 0.353553385 : f32
      %107 = vector.broadcast %cst_50 : f32 to vector<8x1xf32>
      %108 = arith.mulf %106, %107 : vector<8x1xf32>
      %109 = tpu.transpose %108, [1, 0] : vector<8x1xf32> -> vector<1x8xf32>
      %c0_51 = arith.constant 0 : index
      %c0_52 = arith.constant 0 : index
      %110 = vector.load %arg8[%c0_51, %c0_52] : memref<4x8xf32, #tpu.memory_space<vmem>>, vector<1x8xf32>
      tpu.vector_store %arg8[%c0_51, %c0_52], %109 {strides = array<i32>} : memref<4x8xf32, #tpu.memory_space<vmem>>, vector<1x8xf32>,
      %111 = vector.extract_strided_slice %101 {offsets = [0, 8], sizes = [8, 8], strides = [1, 1]} : vector<8x32xf32> to vector<8x8xf32>
      %112 = arith.mulf %111, %111 : vector<8x8xf32>
      %cst_53 = arith.constant dense<0.000000e+00> : vector<8xf32>
      %113 = vector.multi_reduction <add>, %112, %cst_53 [1] : vector<8x8xf32> to vector<8xf32>
      %114 = vector.shape_cast %113 : vector<8xf32> to vector<8x1xf32>
      %cst_54 = arith.constant 0.353553385 : f32
      %115 = vector.broadcast %cst_54 : f32 to vector<8x1xf32>
      %116 = arith.mulf %114, %115 : vector<8x1xf32>
      %117 = tpu.transpose %116, [1, 0] : vector<8x1xf32> -> vector<1x8xf32>
      %c1_55 = arith.constant 1 : index
      %c0_56 = arith.constant 0 : index
      %118 = vector.load %arg8[%c1_55, %c0_56] : memref<4x8xf32, #tpu.memory_space<vmem>>, vector<1x8xf32>
      tpu.vector_store %arg8[%c1_55, %c0_56], %117 {strides = array<i32>} : memref<4x8xf32, #tpu.memory_space<vmem>>, vector<1x8xf32>,
      %119 = vector.extract_strided_slice %101 {offsets = [0, 16], sizes = [8, 8], strides = [1, 1]} : vector<8x32xf32> to vector<8x8xf32>
      %120 = arith.mulf %119, %119 : vector<8x8xf32>
      %cst_57 = arith.constant dense<0.000000e+00> : vector<8xf32>
      %121 = vector.multi_reduction <add>, %120, %cst_57 [1] : vector<8x8xf32> to vector<8xf32>
      %122 = vector.shape_cast %121 : vector<8xf32> to vector<8x1xf32>
      %cst_58 = arith.constant 0.353553385 : f32
      %123 = vector.broadcast %cst_58 : f32 to vector<8x1xf32>
      %124 = arith.mulf %122, %123 : vector<8x1xf32>
      %125 = tpu.transpose %124, [1, 0] : vector<8x1xf32> -> vector<1x8xf32>
      %c2_59 = arith.constant 2 : index
      %c0_60 = arith.constant 0 : index
      %126 = vector.load %arg8[%c2_59, %c0_60] : memref<4x8xf32, #tpu.memory_space<vmem>>, vector<1x8xf32>
      tpu.vector_store %arg8[%c2_59, %c0_60], %125 {strides = array<i32>} : memref<4x8xf32, #tpu.memory_space<vmem>>, vector<1x8xf32>,
      %127 = vector.extract_strided_slice %101 {offsets = [0, 24], sizes = [8, 8], strides = [1, 1]} : vector<8x32xf32> to vector<8x8xf32>
      %128 = arith.mulf %127, %127 : vector<8x8xf32>
      %cst_61 = arith.constant dense<0.000000e+00> : vector<8xf32>
      %129 = vector.multi_reduction <add>, %128, %cst_61 [1] : vector<8x8xf32> to vector<8xf32>
      %130 = vector.shape_cast %129 : vector<8xf32> to vector<8x1xf32>
      %cst_62 = arith.constant 0.353553385 : f32
      %131 = vector.broadcast %cst_62 : f32 to vector<8x1xf32>
      %132 = arith.mulf %130, %131 : vector<8x1xf32>
      %133 = tpu.transpose %132, [1, 0] : vector<8x1xf32> -> vector<1x8xf32>
      %c3_63 = arith.constant 3 : index
      %c0_64 = arith.constant 0 : index
      %134 = vector.load %arg8[%c3_63, %c0_64] : memref<4x8xf32, #tpu.memory_space<vmem>>, vector<1x8xf32>
      tpu.vector_store %arg8[%c3_63, %c0_64], %133 {strides = array<i32>} : memref<4x8xf32, #tpu.memory_space<vmem>>, vector<1x8xf32>,
    } else {
    }
    %c0 = arith.constant 0 : index
    %c0_1 = arith.constant 0 : index
    %3 = vector.load %arg7[%c0, %c0_1] : memref<8x32xf32, #tpu.memory_space<vmem>>, vector<8x32xf32>
    %cst = arith.constant 0.000000e+00 : f32
    %4 = vector.broadcast %cst : f32 to vector<8x32xf32>
    %5 = vector.extract_strided_slice %3 {offsets = [0, 0], sizes = [8, 8], strides = [1, 1]} : vector<8x32xf32> to vector<8x8xf32>
    %cst_2 = arith.constant 0.707106769 : f32
    %6 = vector.broadcast %cst_2 : f32 to vector<8x8xf32>
    %7 = arith.mulf %5, %6 : vector<8x8xf32>
    %8 = vector.extract_strided_slice %3 {offsets = [0, 0], sizes = [8, 8], strides = [1, 1]} : vector<8x32xf32> to vector<8x8xf32>
    %cst_3 = arith.constant dense<0.000000e+00> : vector<8x8xf32>
    %9 = tpu.matmul %7, %8, %cst_3 {dimension_numbers = #tpu.dot_dimension_numbers<[1], [1], [0], [0], [0, 0, 1, 0], [], []>} : vector<8x8xf32>, vector<8x8xf32>, vector<8x8xf32> -> vector<8x8xf32>
    %c0_4 = arith.constant 0 : index
    %c0_5 = arith.constant 0 : index
    %10 = vector.load %arg8[%c0_4, %c0_5] : memref<4x8xf32, #tpu.memory_space<vmem>>, vector<1x8xf32>
    %11 = vector.broadcast %10 : vector<1x8xf32> to vector<8x8xf32>
    %12 = arith.subf %9, %11 : vector<8x8xf32>
    %cst_6 = arith.constant dense<0xFF800000> : vector<8xf32>
    %13 = vector.multi_reduction <maximumf>, %12, %cst_6 [1] : vector<8x8xf32> to vector<8xf32>
    %14 = vector.shape_cast %13 : vector<8xf32> to vector<8x1xf32>
    %15 = vector.broadcast %14 : vector<8x1xf32> to vector<8x8xf32>
    %16 = arith.subf %12, %15 : vector<8x8xf32>
    %17 = math.exp %16 : vector<8x8xf32>
    %cst_7 = arith.constant dense<0.000000e+00> : vector<8xf32>
    %18 = vector.multi_reduction <add>, %17, %cst_7 [1] : vector<8x8xf32> to vector<8xf32>
    %19 = vector.shape_cast %18 : vector<8xf32> to vector<8x1xf32>
    %cst_8 = arith.constant dense<0.000000e+00> : vector<8x8xf32>
    %20 = tpu.matmul %17, %8, %cst_8 {dimension_numbers = #tpu.dot_dimension_numbers<[1], [0], [0], [1], [0, 0, 1, 1], [], []>} : vector<8x8xf32>, vector<8x8xf32>, vector<8x8xf32> -> vector<8x8xf32>
    %21 = tpu.reciprocal %19 {approx = true} : vector<8x1xf32> -> vector<8x1xf32>
    %22 = vector.broadcast %21 : vector<8x1xf32> to vector<8x8xf32>
    %23 = arith.mulf %20, %22 : vector<8x8xf32>
    %c0_9 = arith.constant 0 : index
    %c0_10 = arith.constant 0 : index
    %24 = vector.load %arg4[%c0_9, %c0_10] : memref<32x32xf32, #tpu.memory_space<vmem>>, vector<8x32xf32>
    %cst_11 = arith.constant dense<0.000000e+00> : vector<8x32xf32>
    %25 = tpu.matmul %23, %24, %cst_11 {dimension_numbers = #tpu.dot_dimension_numbers<[1], [0], [0], [1], [0, 0, 1, 1], [], []>} : vector<8x8xf32>, vector<8x32xf32>, vector<8x32xf32> -> vector<8x32xf32>
    %26 = arith.addf %4, %25 : vector<8x32xf32>
    %27 = vector.extract_strided_slice %3 {offsets = [0, 8], sizes = [8, 8], strides = [1, 1]} : vector<8x32xf32> to vector<8x8xf32>
    %cst_12 = arith.constant 0.707106769 : f32
    %28 = vector.broadcast %cst_12 : f32 to vector<8x8xf32>
    %29 = arith.mulf %27, %28 : vector<8x8xf32>
    %30 = vector.extract_strided_slice %3 {offsets = [0, 8], sizes = [8, 8], strides = [1, 1]} : vector<8x32xf32> to vector<8x8xf32>
    %cst_13 = arith.constant dense<0.000000e+00> : vector<8x8xf32>
    %31 = tpu.matmul %29, %30, %cst_13 {dimension_numbers = #tpu.dot_dimension_numbers<[1], [1], [0], [0], [0, 0, 1, 0], [], []>} : vector<8x8xf32>, vector<8x8xf32>, vector<8x8xf32> -> vector<8x8xf32>
    %c1 = arith.constant 1 : index
    %c0_14 = arith.constant 0 : index
    %32 = vector.load %arg8[%c1, %c0_14] : memref<4x8xf32, #tpu.memory_space<vmem>>, vector<1x8xf32>
    %33 = vector.broadcast %32 : vector<1x8xf32> to vector<8x8xf32>
    %34 = arith.subf %31, %33 : vector<8x8xf32>
    %cst_15 = arith.constant dense<0xFF800000> : vector<8xf32>
    %35 = vector.multi_reduction <maximumf>, %34, %cst_15 [1] : vector<8x8xf32> to vector<8xf32>
    %36 = vector.shape_cast %35 : vector<8xf32> to vector<8x1xf32>
    %37 = vector.broadcast %36 : vector<8x1xf32> to vector<8x8xf32>
    %38 = arith.subf %34, %37 : vector<8x8xf32>
    %39 = math.exp %38 : vector<8x8xf32>
    %cst_16 = arith.constant dense<0.000000e+00> : vector<8xf32>
    %40 = vector.multi_reduction <add>, %39, %cst_16 [1] : vector<8x8xf32> to vector<8xf32>
    %41 = vector.shape_cast %40 : vector<8xf32> to vector<8x1xf32>
    %cst_17 = arith.constant dense<0.000000e+00> : vector<8x8xf32>
    %42 = tpu.matmul %39, %30, %cst_17 {dimension_numbers = #tpu.dot_dimension_numbers<[1], [0], [0], [1], [0, 0, 1, 1], [], []>} : vector<8x8xf32>, vector<8x8xf32>, vector<8x8xf32> -> vector<8x8xf32>
    %43 = tpu.reciprocal %41 {approx = true} : vector<8x1xf32> -> vector<8x1xf32>
    %44 = vector.broadcast %43 : vector<8x1xf32> to vector<8x8xf32>
    %45 = arith.mulf %42, %44 : vector<8x8xf32>
    %c8 = arith.constant 8 : index
    %c0_18 = arith.constant 0 : index
    %46 = vector.load %arg4[%c8, %c0_18] : memref<32x32xf32, #tpu.memory_space<vmem>>, vector<8x32xf32>
    %cst_19 = arith.constant dense<0.000000e+00> : vector<8x32xf32>
    %47 = tpu.matmul %45, %46, %cst_19 {dimension_numbers = #tpu.dot_dimension_numbers<[1], [0], [0], [1], [0, 0, 1, 1], [], []>} : vector<8x8xf32>, vector<8x32xf32>, vector<8x32xf32> -> vector<8x32xf32>
    %48 = arith.addf %26, %47 : vector<8x32xf32>
    %49 = vector.extract_strided_slice %3 {offsets = [0, 16], sizes = [8, 8], strides = [1, 1]} : vector<8x32xf32> to vector<8x8xf32>
    %cst_20 = arith.constant 0.707106769 : f32
    %50 = vector.broadcast %cst_20 : f32 to vector<8x8xf32>
    %51 = arith.mulf %49, %50 : vector<8x8xf32>
    %52 = vector.extract_strided_slice %3 {offsets = [0, 16], sizes = [8, 8], strides = [1, 1]} : vector<8x32xf32> to vector<8x8xf32>
    %cst_21 = arith.constant dense<0.000000e+00> : vector<8x8xf32>
    %53 = tpu.matmul %51, %52, %cst_21 {dimension_numbers = #tpu.dot_dimension_numbers<[1], [1], [0], [0], [0, 0, 1, 0], [], []>} : vector<8x8xf32>, vector<8x8xf32>, vector<8x8xf32> -> vector<8x8xf32>
    %c2 = arith.constant 2 : index
    %c0_22 = arith.constant 0 : index
    %54 = vector.load %arg8[%c2, %c0_22] : memref<4x8xf32, #tpu.memory_space<vmem>>, vector<1x8xf32>
    %55 = vector.broadcast %54 : vector<1x8xf32> to vector<8x8xf32>
    %56 = arith.subf %53, %55 : vector<8x8xf32>
    %cst_23 = arith.constant dense<0xFF800000> : vector<8xf32>
    %57 = vector.multi_reduction <maximumf>, %56, %cst_23 [1] : vector<8x8xf32> to vector<8xf32>
    %58 = vector.shape_cast %57 : vector<8xf32> to vector<8x1xf32>
    %59 = vector.broadcast %58 : vector<8x1xf32> to vector<8x8xf32>
    %60 = arith.subf %56, %59 : vector<8x8xf32>
    %61 = math.exp %60 : vector<8x8xf32>
    %cst_24 = arith.constant dense<0.000000e+00> : vector<8xf32>
    %62 = vector.multi_reduction <add>, %61, %cst_24 [1] : vector<8x8xf32> to vector<8xf32>
    %63 = vector.shape_cast %62 : vector<8xf32> to vector<8x1xf32>
    %cst_25 = arith.constant dense<0.000000e+00> : vector<8x8xf32>
    %64 = tpu.matmul %61, %52, %cst_25 {dimension_numbers = #tpu.dot_dimension_numbers<[1], [0], [0], [1], [0, 0, 1, 1], [], []>} : vector<8x8xf32>, vector<8x8xf32>, vector<8x8xf32> -> vector<8x8xf32>
    %65 = tpu.reciprocal %63 {approx = true} : vector<8x1xf32> -> vector<8x1xf32>
    %66 = vector.broadcast %65 : vector<8x1xf32> to vector<8x8xf32>
    %67 = arith.mulf %64, %66 : vector<8x8xf32>
    %c16 = arith.constant 16 : index
    %c0_26 = arith.constant 0 : index
    %68 = vector.load %arg4[%c16, %c0_26] : memref<32x32xf32, #tpu.memory_space<vmem>>, vector<8x32xf32>
    %cst_27 = arith.constant dense<0.000000e+00> : vector<8x32xf32>
    %69 = tpu.matmul %67, %68, %cst_27 {dimension_numbers = #tpu.dot_dimension_numbers<[1], [0], [0], [1], [0, 0, 1, 1], [], []>} : vector<8x8xf32>, vector<8x32xf32>, vector<8x32xf32> -> vector<8x32xf32>
    %70 = arith.addf %48, %69 : vector<8x32xf32>
    %71 = vector.extract_strided_slice %3 {offsets = [0, 24], sizes = [8, 8], strides = [1, 1]} : vector<8x32xf32> to vector<8x8xf32>
    %cst_28 = arith.constant 0.707106769 : f32
    %72 = vector.broadcast %cst_28 : f32 to vector<8x8xf32>
    %73 = arith.mulf %71, %72 : vector<8x8xf32>
    %74 = vector.extract_strided_slice %3 {offsets = [0, 24], sizes = [8, 8], strides = [1, 1]} : vector<8x32xf32> to vector<8x8xf32>
    %cst_29 = arith.constant dense<0.000000e+00> : vector<8x8xf32>
    %75 = tpu.matmul %73, %74, %cst_29 {dimension_numbers = #tpu.dot_dimension_numbers<[1], [1], [0], [0], [0, 0, 1, 0], [], []>} : vector<8x8xf32>, vector<8x8xf32>, vector<8x8xf32> -> vector<8x8xf32>
    %c3 = arith.constant 3 : index
    %c0_30 = arith.constant 0 : index
    %76 = vector.load %arg8[%c3, %c0_30] : memref<4x8xf32, #tpu.memory_space<vmem>>, vector<1x8xf32>
    %77 = vector.broadcast %76 : vector<1x8xf32> to vector<8x8xf32>
    %78 = arith.subf %75, %77 : vector<8x8xf32>
    %cst_31 = arith.constant dense<0xFF800000> : vector<8xf32>
    %79 = vector.multi_reduction <maximumf>, %78, %cst_31 [1] : vector<8x8xf32> to vector<8xf32>
    %80 = vector.shape_cast %79 : vector<8xf32> to vector<8x1xf32>
    %81 = vector.broadcast %80 : vector<8x1xf32> to vector<8x8xf32>
    %82 = arith.subf %78, %81 : vector<8x8xf32>
    %83 = math.exp %82 : vector<8x8xf32>
    %cst_32 = arith.constant dense<0.000000e+00> : vector<8xf32>
    %84 = vector.multi_reduction <add>, %83, %cst_32 [1] : vector<8x8xf32> to vector<8xf32>
    %85 = vector.shape_cast %84 : vector<8xf32> to vector<8x1xf32>
    %cst_33 = arith.constant dense<0.000000e+00> : vector<8x8xf32>
    %86 = tpu.matmul %83, %74, %cst_33 {dimension_numbers = #tpu.dot_dimension_numbers<[1], [0], [0], [1], [0, 0, 1, 1], [], []>} : vector<8x8xf32>, vector<8x8xf32>, vector<8x8xf32> -> vector<8x8xf32>
    %87 = tpu.reciprocal %85 {approx = true} : vector<8x1xf32> -> vector<8x1xf32>
    %88 = vector.broadcast %87 : vector<8x1xf32> to vector<8x8xf32>
    %89 = arith.mulf %86, %88 : vector<8x8xf32>
    %c24 = arith.constant 24 : index
    %c0_34 = arith.constant 0 : index
    %90 = vector.load %arg4[%c24, %c0_34] : memref<32x32xf32, #tpu.memory_space<vmem>>, vector<8x32xf32>
    %cst_35 = arith.constant dense<0.000000e+00> : vector<8x32xf32>
    %91 = tpu.matmul %89, %90, %cst_35 {dimension_numbers = #tpu.dot_dimension_numbers<[1], [0], [0], [1], [0, 0, 1, 1], [], []>} : vector<8x8xf32>, vector<8x32xf32>, vector<8x32xf32> -> vector<8x32xf32>
    %92 = arith.addf %70, %91 : vector<8x32xf32>
    %c0_36 = arith.constant 0 : index
    %c0_37 = arith.constant 0 : index
    %93 = vector.load %arg5[%c0_36, %c0_37] : memref<1x32xf32, #tpu.memory_space<vmem>>, vector<1x32xf32>
    %94 = vector.broadcast %93 : vector<1x32xf32> to vector<8x32xf32>
    %95 = arith.addf %92, %94 : vector<8x32xf32>
    %96 = vector.shape_cast %95 : vector<8x32xf32> to vector<1x8x32xf32>
    %c0_38 = arith.constant 0 : index
    %c0_39 = arith.constant 0 : index
    %c0_40 = arith.constant 0 : index
    %97 = vector.load %arg6[%c0_38, %c0_39, %c0_40] : memref<1x8x32xf32, #tpu.memory_space<vmem>>, vector<1x8x32xf32>
    tpu.vector_store %arg6[%c0_38, %c0_39, %c0_40], %96 {strides = array<i32>} : memref<1x8x32xf32, #tpu.memory_space<vmem>>, vector<1x8x32xf32>,
    return
  }
  func.func @transform_0(%arg0: i32, %arg1: i32) -> (i32, i32, i32) {
    %c0_i32 = arith.constant 0 : i32
    %c0_i32_0 = arith.constant 0 : i32
    %c0_i32_1 = arith.constant 0 : i32
    return %arg0, %c0_i32, %c0_i32_0 : i32, i32, i32
  }
  func.func @transform_1(%arg0: i32, %arg1: i32) -> (i32, i32) {
    %c0_i32 = arith.constant 0 : i32
    %c0_i32_0 = arith.constant 0 : i32
    %c0_i32_1 = arith.constant 0 : i32
    return %c0_i32, %c0_i32_0 : i32, i32
  }
  func.func @transform_2(%arg0: i32, %arg1: i32) -> (i32, i32) {
    %c0_i32 = arith.constant 0 : i32
    %c0_i32_0 = arith.constant 0 : i32
    %c0_i32_1 = arith.constant 0 : i32
    return %c0_i32, %c0_i32_0 : i32, i32
  }
  func.func @transform_3(%arg0: i32, %arg1: i32) -> (i32, i32) {
    %c0_i32 = arith.constant 0 : i32
    %c0_i32_0 = arith.constant 0 : i32
    %c0_i32_1 = arith.constant 0 : i32
    return %c0_i32, %c0_i32_0 : i32, i32
  }
  func.func @transform_4(%arg0: i32, %arg1: i32) -> (i32, i32, i32) {
    %c0_i32 = arith.constant 0 : i32
    %c0_i32_0 = arith.constant 0 : i32
    return %arg0, %arg1, %c0_i32 : i32, i32, i32
  }
}

</mosaic_0001>

<llo_original>
// kernel: tpu_custom_call.1
$region0: #{tpu_custom_call.1}
  #allocation0 [shape = 'u32[]', space=smem, size = 0x4, offset = 0x4, fixed_abs, tag = 'smem constant byte address 0x4 - core index']
  #allocation1 [shape = 'u32[144,128]{1,0:T(1,128)}', space=vmem, size = 0x12000, scoped, tag = 'internal scratch']
  #allocation2 [shape = 'f32[8,32]{1,0:T(8,128)}', space=vmem, size = 0x1000, scoped, tag = 'scratch operand']
  #allocation3 [shape = 'f32[4,8]{1,0:T(4,128)}', space=vmem, size = 0x800, scoped, tag = 'scratch operand']
  %s0 = inlined_call_operand.hbm [shape: f32[2,8,32], index: 0, kind: input, shape index: {}]
  %s1 = inlined_call_operand.hbm [shape: f32[32,32], index: 1, kind: input, shape index: {}]
  %s2 = inlined_call_operand.hbm [shape: f32[32,32], index: 2, kind: input, shape index: {}]
  %s3 = inlined_call_operand.vmem [shape: f32[1,32], index: 3, kind: input, shape index: {}]
  %s4 = inlined_call_operand.hbm [shape: f32[2,8,32], index: 4, kind: output, shape index: {}]
  %s5 = sld [smem:[#allocation0]]
  $region65: #{tpu_custom_call.1} parent=0
    _
  %s7 = ssub.s32 1, %s5
  %s8 = scalar_select 0, %s7, %s5
  $region1: #{tpu_custom_call.1} parent=0
    #allocation4 [shape = 'u8[4096]{0}', space=vmem, size = 0x1000, scoped, tag = 'input window, operand 0, single buffered']
    #allocation5 [shape = 's32[2]{0}', space=sflag, size = 0x8, scoped, tag = 'scoped memory for tpu_custom_call.1']
    #allocation6 [shape = 's32[2]{0}', space=sflag, size = 0x8, scoped, tag = 'scoped memory for tpu_custom_call.1']
    #allocation7 [shape = 'u8[16384]{0}', space=vmem, size = 0x4000, scoped, tag = 'input window, operand 1, single buffered']
    #allocation8 [shape = 's32[1]{0}', space=sflag, size = 0x4, scoped, tag = 'scoped memory for tpu_custom_call.1']
    #allocation9 [shape = 'u8[16384]{0}', space=vmem, size = 0x4000, scoped, tag = 'input window, operand 2, single buffered']
    #allocation10 [shape = 'u8[8192]{0}', space=vmem, size = 0x2000, scoped, tag = 'output window, operand 0']
    %9 = vsyncpa [#allocation5], 0
    %10 = vsyncpa [#allocation8], 0
    %11 = vsyncpa [#allocation6], 0
    %s12 = scalar_lea.sflag [#allocation6], 1
    %13 = vsyncpa %s12, 0
    loop: start=0, step=1, limit=4
    $region2: #{tpu_custom_call.1} parent=1 // loop_pre_header
      _
    $region3: #{tpu_custom_call.1} parent=1 // loop_header
      %s15 = sphi 0, %s19
      %p16 = scmp.ge.s32.totalorder %s15, 4
      %s22 = sphi 0, %s34
      %s23 = sphi 0, %s30
      %s24 = sphi 0, %s22
      %s25 = sphi 0, %s23
      %s26 = sphi 0, %s24
      %s27 = sphi 0, %s25
      %s37 = sphi 0, %s39
      %s40 = sphi 0, %s37
      %s41 = sphi 0, %s40
      %s57 = sphi 0, %s41
      %s61 = sphi 0, %s61
      %s63 = sphi 0, %s61
      %s64 = sphi 0, %s63
      %s78 = sphi 0, %s64
      %s82 = sphi 0, %s82
      %s84 = sphi 0, %s82
      %s85 = sphi 0, %s84
      %s99 = sphi 0, %s85
      %s103 = sphi 0, %s103
      %s105 = sphi 0, %s103
      %s106 = sphi 0, %s105
      %s120 = sphi 0, %s106
      %s128 = sphi 0, %s130
      %s131 = sphi 0, %s128
      %s132 = sphi 0, %s131
      %s148 = sphi 0, %s132
    $region4: #{tpu_custom_call.1} parent=1 // loop_header_branch
      %18 = sbr.rel (%p16) target = $region8
    $region5: #{tpu_custom_call.1} parent=1 // loop_body
      %s20 = ssub.s32 %s15, 1
      %s21 = ssub.s32 %s15, 2
      %s28 = sadd.s32 1, %s23
      %p29 = scmp.ge.s32.totalorder %s28, 1
      %s30 = scalar_select %p29, 0, %s28
      %s31 = sadd.s32 1, %s22
      %s32 = scalar_select %p29, %s31, %s22
      %p33 = scmp.ge.s32.totalorder %s32, 2
      %s34 = scalar_select %p33, 0, %s32
      %s35 = ssub.s32 %s22, %s34
      %p36 = scmp.eq.s32.totalorder %s35, 0
      %s38 = sadd.s32 %s37, 1
      %s39 = scalar_select %p36, %s37, %s38
      %p42 = pneg %p36
      %p43 = scmp.eq.s32.totalorder %s15, 1
      %p44 = por %p42, %p43
      %p45 = scmp.ne.s32.totalorder %s37, %s40
      %p46 = scmp.eq.s32.totalorder %s15, 0
      %p47 = por %p45, %p46
      %p48 = scmp.ne.s32.totalorder %s37, %s40
      %p49 = scmp.eq.s32.totalorder %s20, 1
      %p50 = por %p48, %p49
      %p51 = scmp.ne.s32.totalorder %s40, %s41
      %p52 = scmp.eq.s32.totalorder %s20, 0
      %p53 = por %p51, %p52
      %p54 = scmp.ne.s32.totalorder %s40, %s41
      %p55 = scmp.eq.s32.totalorder %s21, 1
      %p56 = por %p54, %p55
      %p58 = scmp.ne.s32.totalorder %s41, %s57
      %p59 = scmp.eq.s32.totalorder %s21, 0
      %p60 = por %p58, %p59
      %s62 = sadd.s32 %s61, 1
      %p65 = scmp.eq.s32.totalorder %s15, 1
      %p66 = scmp.ne.s32.totalorder %s61, %s63
      %p67 = scmp.eq.s32.totalorder %s15, 0
      %p68 = por %p66, %p67
      %p69 = scmp.ne.s32.totalorder %s61, %s63
      %p70 = scmp.eq.s32.totalorder %s20, 1
      %p71 = por %p69, %p70
      %p72 = scmp.ne.s32.totalorder %s63, %s64
      %p73 = scmp.eq.s32.totalorder %s20, 0
      %p74 = por %p72, %p73
      %p75 = scmp.ne.s32.totalorder %s63, %s64
      %p76 = scmp.eq.s32.totalorder %s21, 1
      %p77 = por %p75, %p76
      %p79 = scmp.ne.s32.totalorder %s64, %s78
      %p80 = scmp.eq.s32.totalorder %s21, 0
      %p81 = por %p79, %p80
      %s83 = sadd.s32 %s82, 1
      %p86 = scmp.eq.s32.totalorder %s15, 1
      %p87 = scmp.ne.s32.totalorder %s82, %s84
      %p88 = scmp.eq.s32.totalorder %s15, 0
      %p89 = por %p87, %p88
      %p90 = scmp.ne.s32.totalorder %s82, %s84
      %p91 = scmp.eq.s32.totalorder %s20, 1
      %p92 = por %p90, %p91
      %p93 = scmp.ne.s32.totalorder %s84, %s85
      %p94 = scmp.eq.s32.totalorder %s20, 0
      %p95 = por %p93, %p94
      %p96 = scmp.ne.s32.totalorder %s84, %s85
      %p97 = scmp.eq.s32.totalorder %s21, 1
      %p98 = por %p96, %p97
      %p100 = scmp.ne.s32.totalorder %s85, %s99
      %p101 = scmp.eq.s32.totalorder %s21, 0
      %p102 = por %p100, %p101
      %s104 = sadd.s32 %s103, 1
      %p107 = scmp.eq.s32.totalorder %s15, 1
      %p108 = scmp.ne.s32.totalorder %s103, %s105
      %p109 = scmp.eq.s32.totalorder %s15, 0
      %p110 = por %p108, %p109
      %p111 = scmp.ne.s32.totalorder %s103, %s105
      %p112 = scmp.eq.s32.totalorder %s20, 1
      %p113 = por %p111, %p112
      %p114 = scmp.ne.s32.totalorder %s105, %s106
      %p115 = scmp.eq.s32.totalorder %s20, 0
      %p116 = por %p114, %p115
      %p117 = scmp.ne.s32.totalorder %s105, %s106
      %p118 = scmp.eq.s32.totalorder %s21, 1
      %p119 = por %p117, %p118
      %p121 = scmp.ne.s32.totalorder %s106, %s120
      %p122 = scmp.eq.s32.totalorder %s21, 0
      %p123 = por %p121, %p122
      %s124 = ssub.s32 %s22, %s34
      %s125 = ssub.s32 %s23, %s30
      %s126 = sor.u32 %s124, %s125
      %p127 = scmp.eq.s32.totalorder %s126, 0
      %s129 = sadd.s32 %s128, 1
      %s130 = scalar_select %p127, %s128, %s129
      %p133 = pneg %p127
      %p134 = scmp.eq.s32.totalorder %s15, 1
      %p135 = por %p133, %p134
      %p136 = scmp.ne.s32.totalorder %s128, %s131
      %p137 = scmp.eq.s32.totalorder %s15, 0
      %p138 = por %p136, %p137
      %p139 = scmp.ne.s32.totalorder %s128, %s131
      %p140 = scmp.eq.s32.totalorder %s20, 1
      %p141 = por %p139, %p140
      %p142 = scmp.ne.s32.totalorder %s131, %s132
      %p143 = scmp.eq.s32.totalorder %s20, 0
      %p144 = por %p142, %p143
      %p145 = scmp.ne.s32.totalorder %s131, %s132
      %p146 = scmp.eq.s32.totalorder %s21, 1
      %p147 = por %p145, %p146
      %p149 = scmp.ne.s32.totalorder %s132, %s148
      %p150 = scmp.eq.s32.totalorder %s21, 0
      %p151 = por %p149, %p150
      %p152 = scmp.le.s32.totalorder 1, %s15
      %p153 = scmp.lt.s32.totalorder %s15, 3
      %p154 = pnand %p152, %p153
      %p155 = pneg %p154
      // Predicated region
      $region9: #{tpu_custom_call.1} parent=5 // pred_check
        _
      $region10: #{tpu_custom_call.1} parent=5 // pred_check_branch
        %157 = sbr.rel (%p154) target = $region12
      $region11: #{tpu_custom_call.1} parent=5 // pred_region
        %s158 = ssub.s32 %s15, 1
        // Predicated region
        $region13: #{tpu_custom_call.1} parent=11 // pred_check
          %p159 = pneg %p53
        $region14: #{tpu_custom_call.1} parent=11 // pred_check_branch
          %161 = sbr.rel (%p159) target = $region16
        $region15: #{tpu_custom_call.1} parent=11 // pred_region
          %s163 = ssub.s32 128, 128
          %164 = vsyncadd [#allocation5], %s163
          %s165 = smul.addr %s24, 128
          %s166 = scalar_lea.hbm %s0, %s165
          %s168 = sshll.u32 [#allocation4], 4
          %s169 = int_to_ptr.vmem [resolvable:$true] %s168
          %171 = dma.hbm_to_vmem [thread:$0]  %s166, 128, %s169, [#allocation5]
        $region16: #{tpu_custom_call.1} parent=11 // pred_fallthru
          _
        // Predicated region
        $region17: #{tpu_custom_call.1} parent=11 // pred_check
          %p172 = pneg %p74
        $region18: #{tpu_custom_call.1} parent=11 // pred_check_branch
          %174 = sbr.rel (%p172) target = $region20
        $region19: #{tpu_custom_call.1} parent=11 // pred_region
          %s176 = ssub.s32 512, 512
          %177 = vsyncadd [#allocation8], %s176
          %s178 = sshll.u32 [#allocation7], 4
          %s179 = int_to_ptr.vmem [resolvable:$true] %s178
          %184 = dma.hbm_to_vmem [thread:$0]  %s1, 512, %s179, [#allocation8], 128, 128, 8
        $region20: #{tpu_custom_call.1} parent=11 // pred_fallthru
          _
        // Predicated region
        $region21: #{tpu_custom_call.1} parent=11 // pred_check
          %p185 = pneg %p95
        $region22: #{tpu_custom_call.1} parent=11 // pred_check_branch
          %187 = sbr.rel (%p185) target = $region24
        $region23: #{tpu_custom_call.1} parent=11 // pred_region
          %s189 = ssub.s32 512, 512
          %190 = vsyncadd [#allocation8], %s189
          %s191 = sshll.u32 [#allocation9], 4
          %s192 = int_to_ptr.vmem [resolvable:$true] %s191
          %197 = dma.hbm_to_vmem [thread:$0]  %s2, 512, %s192, [#allocation8], 128, 128, 8
        $region24: #{tpu_custom_call.1} parent=11 // pred_fallthru
          _
        // Predicated region
        $region25: #{tpu_custom_call.1} parent=11 // pred_check
          %p198 = pneg %p116
        $region26: #{tpu_custom_call.1} parent=11 // pred_check_branch
          %200 = sbr.rel (%p198) target = $region28
        $region27: #{tpu_custom_call.1} parent=11 // pred_region
          _
        $region28: #{tpu_custom_call.1} parent=11 // pred_fallthru
          _
      $region12: #{tpu_custom_call.1} parent=5 // pred_fallthru
        _
      %p201 = scmp.lt.s32.totalorder %s15, 2
      // Predicated region
      $region29: #{tpu_custom_call.1} parent=5 // pred_check
        %p202 = pneg %p201
      $region30: #{tpu_custom_call.1} parent=5 // pred_check_branch
        %204 = sbr.rel (%p202) target = $region32
      $region31: #{tpu_custom_call.1} parent=5 // pred_region
        _
      $region32: #{tpu_custom_call.1} parent=5 // pred_fallthru
        _
      %p205 = scmp.le.s32.totalorder 1, %s15
      %p206 = scmp.lt.s32.totalorder %s15, 3
      %p207 = pnand %p205, %p206
      %p208 = pneg %p207
      // Predicated region
      $region33: #{tpu_custom_call.1} parent=5 // pred_check
        _
      $region34: #{tpu_custom_call.1} parent=5 // pred_check_branch
        %210 = sbr.rel (%p207) target = $region36
      $region35: #{tpu_custom_call.1} parent=5 // pred_region
        %s211 = ssub.s32 %s15, 1
        // Predicated region
        $region37: #{tpu_custom_call.1} parent=35 // pred_check
          %p212 = pneg %p53
        $region38: #{tpu_custom_call.1} parent=35 // pred_check_branch
          %214 = sbr.rel (%p212) target = $region40
        $region39: #{tpu_custom_call.1} parent=35 // pred_region
          %215 = dma.done [#allocation5], 128
        $region40: #{tpu_custom_call.1} parent=35 // pred_fallthru
          _
        // Predicated region
        $region41: #{tpu_custom_call.1} parent=35 // pred_check
          %p216 = pneg %p74
        $region42: #{tpu_custom_call.1} parent=35 // pred_check_branch
          %218 = sbr.rel (%p216) target = $region44
        $region43: #{tpu_custom_call.1} parent=35 // pred_region
          %219 = dma.done [#allocation8], 512
        $region44: #{tpu_custom_call.1} parent=35 // pred_fallthru
          _
        // Predicated region
        $region45: #{tpu_custom_call.1} parent=35 // pred_check
          %p220 = pneg %p95
        $region46: #{tpu_custom_call.1} parent=35 // pred_check_branch
          %222 = sbr.rel (%p220) target = $region48
        $region47: #{tpu_custom_call.1} parent=35 // pred_region
          %223 = dma.done [#allocation8], 512
        $region48: #{tpu_custom_call.1} parent=35 // pred_fallthru
          _
        %p224 = pneg %p53
        %p225 = pneg %p50
        %p226 = pneg %p74
        %p227 = pneg %p71
        %p228 = pneg %p95
        %p229 = pneg %p92
        %p230 = pneg %p116
        %p231 = pneg %p113
        %p232 = pneg %p144
        %p233 = pneg %p141
        %s234 = sand.u32 %s131, 1
        %s235 = scalar_lea.sflag [#allocation6], %s234
        %s236 = sand.u32 %s131, 1
        %s237 = smul.addr %s236, 8
        %s238 = scalar_lea.vmem [#allocation10], %s237
        %p239 = scmp.eq.s32.totalorder %s25, 0
        // Predicated region
        $region49: #{tpu_custom_call.1} parent=35 // pred_check
          %p240 = pneg %p239
        $region50: #{tpu_custom_call.1} parent=35 // pred_check_branch
          %242 = sbr.rel (%p240) target = $region52
        $region51: #{tpu_custom_call.1} parent=35 // pred_region
          %v243 = vld [vmem:[#allocation4] sm:$0xff]
          %v244 = vld [vmem:[#allocation7] sm:$0xff]
          %v245 = vld [vmem:[#allocation7 + $0x8] sm:$0xff]
          %v246 = vld [vmem:[#allocation7 + $0x10] sm:$0xff]
          %v247 = vld [vmem:[#allocation7 + $0x18] sm:$0xff]
          %vm248 = vcmask 261120
          %v250 = vsel %vm248, %v243, 0
          %252 = vmatprep.subr.mxu0 0.0
          %253 = vmatpush1.msra.mxu0 %v244
          %254 = vmatprep.subr.mxu0 0.0
          %255 = vmatpush1.msra.mxu0 %v245
          %256 = vmatprep.subr.mxu0 0.0
          %257 = vmatpush1.msra.mxu0 %v246
          %258 = vmatprep.subr.mxu0 0.0
          %259 = vmatpush1.msra.mxu0 %v247
          %260 = vmatprep.subr.mxu0 0.0
          %261 = vmatpush1.msra.mxu0 0.0
          %262 = vmatprep.subr.mxu0 0.0
          %263 = vmatpush1.msra.mxu0 0.0
          %264 = vmatprep.subr.mxu0 0.0
          %265 = vmatpush1.msra.mxu0 0.0
          %266 = vmatprep.subr.mxu0 0.0
          %267 = vmatpush1.msra.mxu0 0.0
          %268 = vmatprep.subr.mxu0 0.0
          %269 = vmatpush1.msra.mxu0 0.0
          %270 = vmatprep.subr.mxu0 0.0
          %271 = vmatpush1.msra.mxu0 0.0
          %272 = vmatprep.subr.mxu0 0.0
          %273 = vmatpush1.msra.mxu0 0.0
          %274 = vmatprep.subr.mxu0 0.0
          %275 = vmatpush1.msra.mxu0 0.0
          %276 = vmatprep.subr.mxu0 0.0
          %277 = vmatpush1.msra.mxu0 0.0
          %278 = vmatprep.subr.mxu0 0.0
          %279 = vmatpush1.msra.mxu0 0.0
          %280 = vmatprep.subr.mxu0 0.0
          %281 = vmatpush1.msra.mxu0 0.0
          %282 = vmatprep.subr.mxu0 0.0
          %283 = vmatpush1.msra.mxu0 0.0
          %284 = vmatprep.subr.mxu0 0.0
          %285 = vmatpush1.msra.mxu0 0.0
          %286 = vmatprep.subr.mxu0 0.0
          %287 = vmatpush1.msra.mxu0 0.0
          %288 = vmatprep.subr.mxu0 0.0
          %289 = vmatpush1.msra.mxu0 0.0
          %290 = vmatprep.subr.mxu0 0.0
          %291 = vmatpush1.msra.mxu0 0.0
          %292 = vmatprep.subr.mxu0 0.0
          %293 = vmatpush1.msra.mxu0 0.0
          %294 = vmatprep.subr.mxu0 0.0
          %295 = vmatpush1.msra.mxu0 0.0
          %296 = vmatprep.subr.mxu0 0.0
          %297 = vmatpush1.msra.mxu0 0.0
          %298 = vmatprep.subr.mxu0 0.0
          %299 = vmatpush1.msra.mxu0 0.0
          %300 = vmatprep.subr.mxu0 0.0
          %301 = vmatpush1.msra.mxu0 0.0
          %302 = vmatprep.subr.mxu0 0.0
          %303 = vmatpush1.msra.mxu0 0.0
          %304 = vmatprep.subr.mxu0 0.0
          %305 = vmatpush1.msra.mxu0 0.0
          %306 = vmatprep.subr.mxu0 0.0
          %307 = vmatpush1.msra.mxu0 0.0
          %308 = vmatprep.subr.mxu0 0.0
          %309 = vmatpush1.msra.mxu0 0.0
          %310 = vmatprep.subr.mxu0 0.0
          %311 = vmatpush1.msra.mxu0 0.0
          %312 = vmatprep.subr.mxu0 0.0
          %313 = vmatpush1.msra.mxu0 0.0
          %314 = vmatprep.subr.mxu0 0.0
          %315 = vmatpush1.msra.mxu0 0.0
          %316 = vmatprep.mubr.f32.mxu0 0.0
          %317 = vmatmul.mubr.f32.gmra.mrb[0].mxu0 %v250
          %v318 = vpop.f32.mrb[0].mxu0
          %v319 = vadd.f32 0.0, %v318
          %v320 = vpop.f32.mrb[0].mxu0
          %321 = vdwg.mxu0
          %322 = vst.msk [vmem:[#allocation2] sm:$0xff] %vm248, %v319
          %v323 = vmul.f32 %v319, %v319
          %vm324 = vcmask 64512
          %v325 = vsel %vm324, %v323, 0.0
          %326 = vadd.xlane.f32.xlu0 %v325
          %v327 = vpop.xlane.xlu0 %326
          %v328 = vmul.f32 %v327, 0.35355338
          %329 = vxpose.xlu0.b32.start [1/16] %v328, 128
          %330 = vxpose.xlu0.b32.cont [2/16] 0.0, 128
          %331 = vxpose.xlu0.b32.cont [3/16] 0.0, 128
          %332 = vxpose.xlu0.b32.cont [4/16] 0.0, 128
          %333 = vxpose.xlu0.b32.cont [5/16] 0.0, 128
          %334 = vxpose.xlu0.b32.cont [6/16] 0.0, 128
          %335 = vxpose.xlu0.b32.cont [7/16] 0.0, 128
          %336 = vxpose.xlu0.b32.cont [8/16] 0.0, 128
          %337 = vxpose.xlu0.b32.cont [9/16] 0.0, 128
          %338 = vxpose.xlu0.b32.cont [10/16] 0.0, 128
          %339 = vxpose.xlu0.b32.cont [11/16] 0.0, 128
          %340 = vxpose.xlu0.b32.cont [12/16] 0.0, 128
          %341 = vxpose.xlu0.b32.cont [13/16] 0.0, 128
          %342 = vxpose.xlu0.b32.cont [14/16] 0.0, 128
          %343 = vxpose.xlu0.b32.cont [15/16] 0.0, 128
          %344 = vxpose.xlu0.b32.end [16/16] 0.0, 128
          %v345 = vpop.trf.xlu0
          %v346 = vpop.trf.xlu0
          %v347 = vpop.trf.xlu0
          %v348 = vpop.trf.xlu0
          %v349 = vpop.trf.xlu0
          %v350 = vpop.trf.xlu0
          %v351 = vpop.trf.xlu0
          %v352 = vpop.trf.xlu0
          %v353 = vpop.trf.xlu0
          %v354 = vpop.trf.xlu0
          %v355 = vpop.trf.xlu0
          %v356 = vpop.trf.xlu0
          %v357 = vpop.trf.xlu0
          %v358 = vpop.trf.xlu0
          %v359 = vpop.trf.xlu0
          %v360 = vpop.trf.xlu0
          %vm361 = vcmask 57344
          %362 = vst.msk [vmem:[#allocation3] sm:$0x1] %vm361, %v345
          %364 = vrot.lane.b32.xlu0 %v323, 120
          %v365 = vpop.permute.xlu0 %364
          %v367 = vsel %vm324, %v365, 0.0
          %368 = vadd.xlane.f32.xlu0 %v367
          %v369 = vpop.xlane.xlu0 %368
          %v370 = vmul.f32 %v369, 0.35355338
          %371 = vxpose.xlu0.b32.start [1/16] %v370, 128
          %372 = vxpose.xlu0.b32.cont [2/16] 0.0, 128
          %373 = vxpose.xlu0.b32.cont [3/16] 0.0, 128
          %374 = vxpose.xlu0.b32.cont [4/16] 0.0, 128
          %375 = vxpose.xlu0.b32.cont [5/16] 0.0, 128
          %376 = vxpose.xlu0.b32.cont [6/16] 0.0, 128
          %377 = vxpose.xlu0.b32.cont [7/16] 0.0, 128
          %378 = vxpose.xlu0.b32.cont [8/16] 0.0, 128
          %379 = vxpose.xlu0.b32.cont [9/16] 0.0, 128
          %380 = vxpose.xlu0.b32.cont [10/16] 0.0, 128
          %381 = vxpose.xlu0.b32.cont [11/16] 0.0, 128
          %382 = vxpose.xlu0.b32.cont [12/16] 0.0, 128
          %383 = vxpose.xlu0.b32.cont [13/16] 0.0, 128
          %384 = vxpose.xlu0.b32.cont [14/16] 0.0, 128
          %385 = vxpose.xlu0.b32.cont [15/16] 0.0, 128
          %386 = vxpose.xlu0.b32.end [16/16] 0.0, 128
          %v387 = vpop.trf.xlu0
          %v388 = vpop.trf.xlu0
          %v389 = vpop.trf.xlu0
          %v390 = vpop.trf.xlu0
          %v391 = vpop.trf.xlu0
          %v392 = vpop.trf.xlu0
          %v393 = vpop.trf.xlu0
          %v394 = vpop.trf.xlu0
          %v395 = vpop.trf.xlu0
          %v396 = vpop.trf.xlu0
          %v397 = vpop.trf.xlu0
          %v398 = vpop.trf.xlu0
          %v399 = vpop.trf.xlu0
          %v400 = vpop.trf.xlu0
          %v401 = vpop.trf.xlu0
          %v402 = vpop.trf.xlu0
          %403 = vst.msk [vmem:[#allocation3 + $0x1] sm:$0x1] %vm361, %v387
          %404 = vrot.lane.b32.xlu0 %v323, 112
          %v405 = vpop.permute.xlu0 %404
          %v407 = vsel %vm324, %v405, 0.0
          %408 = vadd.xlane.f32.xlu0 %v407
          %v409 = vpop.xlane.xlu0 %408
          %v410 = vmul.f32 %v409, 0.35355338
          %411 = vxpose.xlu0.b32.start [1/16] %v410, 128
          %412 = vxpose.xlu0.b32.cont [2/16] 0.0, 128
          %413 = vxpose.xlu0.b32.cont [3/16] 0.0, 128
          %414 = vxpose.xlu0.b32.cont [4/16] 0.0, 128
          %415 = vxpose.xlu0.b32.cont [5/16] 0.0, 128
          %416 = vxpose.xlu0.b32.cont [6/16] 0.0, 128
          %417 = vxpose.xlu0.b32.cont [7/16] 0.0, 128
          %418 = vxpose.xlu0.b32.cont [8/16] 0.0, 128
          %419 = vxpose.xlu0.b32.cont [9/16] 0.0, 128
          %420 = vxpose.xlu0.b32.cont [10/16] 0.0, 128
          %421 = vxpose.xlu0.b32.cont [11/16] 0.0, 128
          %422 = vxpose.xlu0.b32.cont [12/16] 0.0, 128
          %423 = vxpose.xlu0.b32.cont [13/16] 0.0, 128
          %424 = vxpose.xlu0.b32.cont [14/16] 0.0, 128
          %425 = vxpose.xlu0.b32.cont [15/16] 0.0, 128
          %426 = vxpose.xlu0.b32.end [16/16] 0.0, 128
          %v427 = vpop.trf.xlu0
          %v428 = vpop.trf.xlu0
          %v429 = vpop.trf.xlu0
          %v430 = vpop.trf.xlu0
          %v431 = vpop.trf.xlu0
          %v432 = vpop.trf.xlu0
          %v433 = vpop.trf.xlu0
          %v434 = vpop.trf.xlu0
          %v435 = vpop.trf.xlu0
          %v436 = vpop.trf.xlu0
          %v437 = vpop.trf.xlu0
          %v438 = vpop.trf.xlu0
          %v439 = vpop.trf.xlu0
          %v440 = vpop.trf.xlu0
          %v441 = vpop.trf.xlu0
          %v442 = vpop.trf.xlu0
          %443 = vst.msk [vmem:[#allocation3 + $0x2] sm:$0x1] %vm361, %v427
          %444 = vrot.lane.b32.xlu0 %v323, 104
          %v445 = vpop.permute.xlu0 %444
          %v447 = vsel %vm324, %v445, 0.0
          %448 = vadd.xlane.f32.xlu0 %v447
          %v449 = vpop.xlane.xlu0 %448
          %v450 = vmul.f32 %v449, 0.35355338
          %451 = vxpose.xlu0.b32.start [1/16] %v450, 128
          %452 = vxpose.xlu0.b32.cont [2/16] 0.0, 128
          %453 = vxpose.xlu0.b32.cont [3/16] 0.0, 128
          %454 = vxpose.xlu0.b32.cont [4/16] 0.0, 128
          %455 = vxpose.xlu0.b32.cont [5/16] 0.0, 128
          %456 = vxpose.xlu0.b32.cont [6/16] 0.0, 128
          %457 = vxpose.xlu0.b32.cont [7/16] 0.0, 128
          %458 = vxpose.xlu0.b32.cont [8/16] 0.0, 128
          %459 = vxpose.xlu0.b32.cont [9/16] 0.0, 128
          %460 = vxpose.xlu0.b32.cont [10/16] 0.0, 128
          %461 = vxpose.xlu0.b32.cont [11/16] 0.0, 128
          %462 = vxpose.xlu0.b32.cont [12/16] 0.0, 128
          %463 = vxpose.xlu0.b32.cont [13/16] 0.0, 128
          %464 = vxpose.xlu0.b32.cont [14/16] 0.0, 128
          %465 = vxpose.xlu0.b32.cont [15/16] 0.0, 128
          %466 = vxpose.xlu0.b32.end [16/16] 0.0, 128
          %v467 = vpop.trf.xlu0
          %v468 = vpop.trf.xlu0
          %v469 = vpop.trf.xlu0
          %v470 = vpop.trf.xlu0
          %v471 = vpop.trf.xlu0
          %v472 = vpop.trf.xlu0
          %v473 = vpop.trf.xlu0
          %v474 = vpop.trf.xlu0
          %v475 = vpop.trf.xlu0
          %v476 = vpop.trf.xlu0
          %v477 = vpop.trf.xlu0
          %v478 = vpop.trf.xlu0
          %v479 = vpop.trf.xlu0
          %v480 = vpop.trf.xlu0
          %v481 = vpop.trf.xlu0
          %v482 = vpop.trf.xlu0
          %483 = vst.msk [vmem:[#allocation3 + $0x3] sm:$0x1] %vm361, %v467
        $region52: #{tpu_custom_call.1} parent=35 // pred_fallthru
          _
        %v484 = vld [vmem:[#allocation2] sm:$0xff]
        %v485 = vmul.f32 %v484, 0.70710677
        %vm486 = vcmask 64512
        %v488 = vsel %vm486, %v485, 0
        %v491 = vsel %vm486, %v484, 0
        %493 = vmatprep.subr.mxu0 0.0
        %494 = vmatpush1.xpose.msra.mxu0 %v491
        %495 = vmatprep.subr.mxu0 0.0
        %496 = vmatpush1.xpose.msra.mxu0 0.0
        %497 = vmatprep.subr.mxu0 0.0
        %498 = vmatpush1.xpose.msra.mxu0 0.0
        %499 = vmatprep.subr.mxu0 0.0
        %500 = vmatpush1.xpose.msra.mxu0 0.0
        %501 = vmatprep.subr.mxu0 0.0
        %502 = vmatpush1.xpose.msra.mxu0 0.0
        %503 = vmatprep.subr.mxu0 0.0
        %504 = vmatpush1.xpose.msra.mxu0 0.0
        %505 = vmatprep.subr.mxu0 0.0
        %506 = vmatpush1.xpose.msra.mxu0 0.0
        %507 = vmatprep.subr.mxu0 0.0
        %508 = vmatpush1.xpose.msra.mxu0 0.0
        %509 = vmatprep.subr.mxu0 0.0
        %510 = vmatpush1.xpose.msra.mxu0 0.0
        %511 = vmatprep.subr.mxu0 0.0
        %512 = vmatpush1.xpose.msra.mxu0 0.0
        %513 = vmatprep.subr.mxu0 0.0
        %514 = vmatpush1.xpose.msra.mxu0 0.0
        %515 = vmatprep.subr.mxu0 0.0
        %516 = vmatpush1.xpose.msra.mxu0 0.0
        %517 = vmatprep.subr.mxu0 0.0
        %518 = vmatpush1.xpose.msra.mxu0 0.0
        %519 = vmatprep.subr.mxu0 0.0
        %520 = vmatpush1.xpose.msra.mxu0 0.0
        %521 = vmatprep.subr.mxu0 0.0
        %522 = vmatpush1.xpose.msra.mxu0 0.0
        %523 = vmatprep.subr.mxu0 0.0
        %524 = vmatpush1.xpose.msra.mxu0 0.0
        %525 = vmatprep.subr.mxu0 0.0
        %526 = vmatpush1.xpose.msra.mxu0 0.0
        %527 = vmatprep.subr.mxu0 0.0
        %528 = vmatpush1.xpose.msra.mxu0 0.0
        %529 = vmatprep.subr.mxu0 0.0
        %530 = vmatpush1.xpose.msra.mxu0 0.0
        %531 = vmatprep.subr.mxu0 0.0
        %532 = vmatpush1.xpose.msra.mxu0 0.0
        %533 = vmatprep.subr.mxu0 0.0
        %534 = vmatpush1.xpose.msra.mxu0 0.0
        %535 = vmatprep.subr.mxu0 0.0
        %536 = vmatpush1.xpose.msra.mxu0 0.0
        %537 = vmatprep.subr.mxu0 0.0
        %538 = vmatpush1.xpose.msra.mxu0 0.0
        %539 = vmatprep.subr.mxu0 0.0
        %540 = vmatpush1.xpose.msra.mxu0 0.0
        %541 = vmatprep.subr.mxu0 0.0
        %542 = vmatpush1.xpose.msra.mxu0 0.0
        %543 = vmatprep.subr.mxu0 0.0
        %544 = vmatpush1.xpose.msra.mxu0 0.0
        %545 = vmatprep.subr.mxu0 0.0
        %546 = vmatpush1.xpose.msra.mxu0 0.0
        %547 = vmatprep.subr.mxu0 0.0
        %548 = vmatpush1.xpose.msra.mxu0 0.0
        %549 = vmatprep.subr.mxu0 0.0
        %550 = vmatpush1.xpose.msra.mxu0 0.0
        %551 = vmatprep.subr.mxu0 0.0
        %552 = vmatpush1.xpose.msra.mxu0 0.0
        %553 = vmatprep.subr.mxu0 0.0
        %554 = vmatpush1.xpose.msra.mxu0 0.0
        %555 = vmatprep.subr.mxu0 0.0
        %556 = vmatpush1.xpose.msra.mxu0 0.0
        %557 = vmatprep.mubr.f32.mxu0 0.0
        %558 = vmatmul.mubr.f32.gmra.mrb[0].mxu0 %v488
        %v559 = vpop.f32.mrb[0].mxu0
        %v560 = vadd.f32 0.0, %v559
        %v561 = vpop.f32.mrb[0].mxu0
        %562 = vdwg.mxu0
        %v563 = vld [vmem:[#allocation3] sm:$0x1]
        %v564 = vlaneseq
        %v565 = vshrl.u32 %v564, 7
        %v566 = vsub.s32 0, %v565
        %v567 = vrot.slane %v563, %v566
        %v568 = vsub.f32 %v560, %v567
        %v569 = vsel %vm486, %v568, -inf
        %570 = vmax.xlane.f32.xlu0 %v569
        %v571 = vpop.xlane.xlu0 %570
        %v572 = vsub.f32 %v568, %v571
        %v573 = vmul.f32 %v572, 1.442695
        %v574 = vpow.pop %v573
        %v575 = vsel %vm486, %v574, 0.0
        %576 = vadd.xlane.f32.xlu0 %v575
        %v577 = vpop.xlane.xlu0 %576
        %v579 = vsel %vm486, %v574, 0
        %581 = vmatprep.subr.mxu0 0.0
        %582 = vmatpush1.msra.mxu0 %v484
        %583 = vmatprep.subr.mxu0 0.0
        %584 = vmatpush1.msra.mxu0 0.0
        %585 = vmatprep.subr.mxu0 0.0
        %586 = vmatpush1.msra.mxu0 0.0
        %587 = vmatprep.subr.mxu0 0.0
        %588 = vmatpush1.msra.mxu0 0.0
        %589 = vmatprep.subr.mxu0 0.0
        %590 = vmatpush1.msra.mxu0 0.0
        %591 = vmatprep.subr.mxu0 0.0
        %592 = vmatpush1.msra.mxu0 0.0
        %593 = vmatprep.subr.mxu0 0.0
        %594 = vmatpush1.msra.mxu0 0.0
        %595 = vmatprep.subr.mxu0 0.0
        %596 = vmatpush1.msra.mxu0 0.0
        %597 = vmatprep.subr.mxu0 0.0
        %598 = vmatpush1.msra.mxu0 0.0
        %599 = vmatprep.subr.mxu0 0.0
        %600 = vmatpush1.msra.mxu0 0.0
        %601 = vmatprep.subr.mxu0 0.0
        %602 = vmatpush1.msra.mxu0 0.0
        %603 = vmatprep.subr.mxu0 0.0
        %604 = vmatpush1.msra.mxu0 0.0
        %605 = vmatprep.subr.mxu0 0.0
        %606 = vmatpush1.msra.mxu0 0.0
        %607 = vmatprep.subr.mxu0 0.0
        %608 = vmatpush1.msra.mxu0 0.0
        %609 = vmatprep.subr.mxu0 0.0
        %610 = vmatpush1.msra.mxu0 0.0
        %611 = vmatprep.subr.mxu0 0.0
        %612 = vmatpush1.msra.mxu0 0.0
        %613 = vmatprep.subr.mxu0 0.0
        %614 = vmatpush1.msra.mxu0 0.0
        %615 = vmatprep.subr.mxu0 0.0
        %616 = vmatpush1.msra.mxu0 0.0
        %617 = vmatprep.subr.mxu0 0.0
        %618 = vmatpush1.msra.mxu0 0.0
        %619 = vmatprep.subr.mxu0 0.0
        %620 = vmatpush1.msra.mxu0 0.0
        %621 = vmatprep.subr.mxu0 0.0
        %622 = vmatpush1.msra.mxu0 0.0
        %623 = vmatprep.subr.mxu0 0.0
        %624 = vmatpush1.msra.mxu0 0.0
        %625 = vmatprep.subr.mxu0 0.0
        %626 = vmatpush1.msra.mxu0 0.0
        %627 = vmatprep.subr.mxu0 0.0
        %628 = vmatpush1.msra.mxu0 0.0
        %629 = vmatprep.subr.mxu0 0.0
        %630 = vmatpush1.msra.mxu0 0.0
        %631 = vmatprep.subr.mxu0 0.0
        %632 = vmatpush1.msra.mxu0 0.0
        %633 = vmatprep.subr.mxu0 0.0
        %634 = vmatpush1.msra.mxu0 0.0
        %635 = vmatprep.subr.mxu0 0.0
        %636 = vmatpush1.msra.mxu0 0.0
        %637 = vmatprep.subr.mxu0 0.0
        %638 = vmatpush1.msra.mxu0 0.0
        %639 = vmatprep.subr.mxu0 0.0
        %640 = vmatpush1.msra.mxu0 0.0
        %641 = vmatprep.subr.mxu0 0.0
        %642 = vmatpush1.msra.mxu0 0.0
        %643 = vmatprep.subr.mxu0 0.0
        %644 = vmatpush1.msra.mxu0 0.0
        %645 = vmatprep.mubr.f32.mxu0 0.0
        %646 = vmatmul.mubr.f32.gmra.mrb[0].mxu0 %v579
        %v647 = vpop.f32.mrb[0].mxu0
        %v648 = vadd.f32 0.0, %v647
        %v649 = vpop.f32.mrb[0].mxu0
        %650 = vdwg.mxu0
        %v651 = vrcp.pop %v577
        %v652 = vmul.f32 %v648, %v651
        %v653 = vld [vmem:[#allocation9] sm:$0xff]
        %654 = vrot.lane.b32.xlu0 %v485, 120
        %v655 = vpop.permute.xlu0 %654
        %656 = vrot.lane.b32.xlu0 %v484, 120
        %v657 = vpop.permute.xlu0 %656
        %v658 = vsel %vm486, %v655, 0
        %v660 = vsel %vm486, %v657, 0
        %662 = vmatprep.subr.mxu0 0.0
        %663 = vmatpush1.xpose.msra.mxu0 %v660
        %664 = vmatprep.subr.mxu0 0.0
        %665 = vmatpush1.xpose.msra.mxu0 0.0
        %666 = vmatprep.subr.mxu0 0.0
        %667 = vmatpush1.xpose.msra.mxu0 0.0
        %668 = vmatprep.subr.mxu0 0.0
        %669 = vmatpush1.xpose.msra.mxu0 0.0
        %670 = vmatprep.subr.mxu0 0.0
        %671 = vmatpush1.xpose.msra.mxu0 0.0
        %672 = vmatprep.subr.mxu0 0.0
        %673 = vmatpush1.xpose.msra.mxu0 0.0
        %674 = vmatprep.subr.mxu0 0.0
        %675 = vmatpush1.xpose.msra.mxu0 0.0
        %676 = vmatprep.subr.mxu0 0.0
        %677 = vmatpush1.xpose.msra.mxu0 0.0
        %678 = vmatprep.subr.mxu0 0.0
        %679 = vmatpush1.xpose.msra.mxu0 0.0
        %680 = vmatprep.subr.mxu0 0.0
        %681 = vmatpush1.xpose.msra.mxu0 0.0
        %682 = vmatprep.subr.mxu0 0.0
        %683 = vmatpush1.xpose.msra.mxu0 0.0
        %684 = vmatprep.subr.mxu0 0.0
        %685 = vmatpush1.xpose.msra.mxu0 0.0
        %686 = vmatprep.subr.mxu0 0.0
        %687 = vmatpush1.xpose.msra.mxu0 0.0
        %688 = vmatprep.subr.mxu0 0.0
        %689 = vmatpush1.xpose.msra.mxu0 0.0
        %690 = vmatprep.subr.mxu0 0.0
        %691 = vmatpush1.xpose.msra.mxu0 0.0
        %692 = vmatprep.subr.mxu0 0.0
        %693 = vmatpush1.xpose.msra.mxu0 0.0
        %694 = vmatprep.subr.mxu0 0.0
        %695 = vmatpush1.xpose.msra.mxu0 0.0
        %696 = vmatprep.subr.mxu0 0.0
        %697 = vmatpush1.xpose.msra.mxu0 0.0
        %698 = vmatprep.subr.mxu0 0.0
        %699 = vmatpush1.xpose.msra.mxu0 0.0
        %700 = vmatprep.subr.mxu0 0.0
        %701 = vmatpush1.xpose.msra.mxu0 0.0
        %702 = vmatprep.subr.mxu0 0.0
        %703 = vmatpush1.xpose.msra.mxu0 0.0
        %704 = vmatprep.subr.mxu0 0.0
        %705 = vmatpush1.xpose.msra.mxu0 0.0
        %706 = vmatprep.subr.mxu0 0.0
        %707 = vmatpush1.xpose.msra.mxu0 0.0
        %708 = vmatprep.subr.mxu0 0.0
        %709 = vmatpush1.xpose.msra.mxu0 0.0
        %710 = vmatprep.subr.mxu0 0.0
        %711 = vmatpush1.xpose.msra.mxu0 0.0
        %712 = vmatprep.subr.mxu0 0.0
        %713 = vmatpush1.xpose.msra.mxu0 0.0
        %714 = vmatprep.subr.mxu0 0.0
        %715 = vmatpush1.xpose.msra.mxu0 0.0
        %716 = vmatprep.subr.mxu0 0.0
        %717 = vmatpush1.xpose.msra.mxu0 0.0
        %718 = vmatprep.subr.mxu0 0.0
        %719 = vmatpush1.xpose.msra.mxu0 0.0
        %720 = vmatprep.subr.mxu0 0.0
        %721 = vmatpush1.xpose.msra.mxu0 0.0
        %722 = vmatprep.subr.mxu0 0.0
        %723 = vmatpush1.xpose.msra.mxu0 0.0
        %724 = vmatprep.subr.mxu0 0.0
        %725 = vmatpush1.xpose.msra.mxu0 0.0
        %726 = vmatprep.mubr.f32.mxu0 0.0
        %727 = vmatmul.mubr.f32.gmra.mrb[0].mxu0 %v658
        %v728 = vpop.f32.mrb[0].mxu0
        %v729 = vadd.f32 0.0, %v728
        %v730 = vpop.f32.mrb[0].mxu0
        %731 = vdwg.mxu0
        %v732 = vld [vmem:[#allocation3 + $0x1] sm:$0x1]
        %v733 = vlaneseq
        %v734 = vshrl.u32 %v733, 7
        %v735 = vsub.s32 0, %v734
        %v736 = vrot.slane %v732, %v735
        %v737 = vsub.f32 %v729, %v736
        %v738 = vsel %vm486, %v737, -inf
        %739 = vmax.xlane.f32.xlu0 %v738
        %v740 = vpop.xlane.xlu0 %739
        %v741 = vsub.f32 %v737, %v740
        %v742 = vmul.f32 %v741, 1.442695
        %v743 = vpow.pop %v742
        %v744 = vsel %vm486, %v743, 0.0
        %745 = vadd.xlane.f32.xlu0 %v744
        %v746 = vpop.xlane.xlu0 %745
        %v749 = vsel %vm486, %v743, 0
        %751 = vmatprep.subr.mxu0 0.0
        %752 = vmatpush1.msra.mxu0 %v657
        %753 = vmatprep.subr.mxu0 0.0
        %754 = vmatpush1.msra.mxu0 0.0
        %755 = vmatprep.subr.mxu0 0.0
        %756 = vmatpush1.msra.mxu0 0.0
        %757 = vmatprep.subr.mxu0 0.0
        %758 = vmatpush1.msra.mxu0 0.0
        %759 = vmatprep.subr.mxu0 0.0
        %760 = vmatpush1.msra.mxu0 0.0
        %761 = vmatprep.subr.mxu0 0.0
        %762 = vmatpush1.msra.mxu0 0.0
        %763 = vmatprep.subr.mxu0 0.0
        %764 = vmatpush1.msra.mxu0 0.0
        %765 = vmatprep.subr.mxu0 0.0
        %766 = vmatpush1.msra.mxu0 0.0
        %767 = vmatprep.subr.mxu0 0.0
        %768 = vmatpush1.msra.mxu0 0.0
        %769 = vmatprep.subr.mxu0 0.0
        %770 = vmatpush1.msra.mxu0 0.0
        %771 = vmatprep.subr.mxu0 0.0
        %772 = vmatpush1.msra.mxu0 0.0
        %773 = vmatprep.subr.mxu0 0.0
        %774 = vmatpush1.msra.mxu0 0.0
        %775 = vmatprep.subr.mxu0 0.0
        %776 = vmatpush1.msra.mxu0 0.0
        %777 = vmatprep.subr.mxu0 0.0
        %778 = vmatpush1.msra.mxu0 0.0
        %779 = vmatprep.subr.mxu0 0.0
        %780 = vmatpush1.msra.mxu0 0.0
        %781 = vmatprep.subr.mxu0 0.0
        %782 = vmatpush1.msra.mxu0 0.0
        %783 = vmatprep.subr.mxu0 0.0
        %784 = vmatpush1.msra.mxu0 0.0
        %785 = vmatprep.subr.mxu0 0.0
        %786 = vmatpush1.msra.mxu0 0.0
        %787 = vmatprep.subr.mxu0 0.0
        %788 = vmatpush1.msra.mxu0 0.0
        %789 = vmatprep.subr.mxu0 0.0
        %790 = vmatpush1.msra.mxu0 0.0
        %791 = vmatprep.subr.mxu0 0.0
        %792 = vmatpush1.msra.mxu0 0.0
        %793 = vmatprep.subr.mxu0 0.0
        %794 = vmatpush1.msra.mxu0 0.0
        %795 = vmatprep.subr.mxu0 0.0
        %796 = vmatpush1.msra.mxu0 0.0
        %797 = vmatprep.subr.mxu0 0.0
        %798 = vmatpush1.msra.mxu0 0.0
        %799 = vmatprep.subr.mxu0 0.0
        %800 = vmatpush1.msra.mxu0 0.0
        %801 = vmatprep.subr.mxu0 0.0
        %802 = vmatpush1.msra.mxu0 0.0
        %803 = vmatprep.subr.mxu0 0.0
        %804 = vmatpush1.msra.mxu0 0.0
        %805 = vmatprep.subr.mxu0 0.0
        %806 = vmatpush1.msra.mxu0 0.0
        %807 = vmatprep.subr.mxu0 0.0
        %808 = vmatpush1.msra.mxu0 0.0
        %809 = vmatprep.subr.mxu0 0.0
        %810 = vmatpush1.msra.mxu0 0.0
        %811 = vmatprep.subr.mxu0 0.0
        %812 = vmatpush1.msra.mxu0 0.0
        %813 = vmatprep.subr.mxu0 0.0
        %814 = vmatpush1.msra.mxu0 0.0
        %815 = vmatprep.mubr.f32.mxu0 0.0
        %816 = vmatmul.mubr.f32.gmra.mrb[0].mxu0 %v749
        %v817 = vpop.f32.mrb[0].mxu0
        %v818 = vadd.f32 0.0, %v817
        %v819 = vpop.f32.mrb[0].mxu0
        %820 = vdwg.mxu0
        %v821 = vrcp.pop %v746
        %v822 = vmul.f32 %v818, %v821
        %v823 = vld [vmem:[#allocation9 + $0x8] sm:$0xff]
        %v825 = vsel %vm486, %v822, 0
        %827 = vmatprep.subr.mxu0 0.0
        %828 = vmatpush1.msra.mxu0 %v823
        %829 = vmatprep.subr.mxu0 0.0
        %830 = vmatpush1.msra.mxu0 0.0
        %831 = vmatprep.subr.mxu0 0.0
        %832 = vmatpush1.msra.mxu0 0.0
        %833 = vmatprep.subr.mxu0 0.0
        %834 = vmatpush1.msra.mxu0 0.0
        %835 = vmatprep.subr.mxu0 0.0
        %836 = vmatpush1.msra.mxu0 0.0
        %837 = vmatprep.subr.mxu0 0.0
        %838 = vmatpush1.msra.mxu0 0.0
        %839 = vmatprep.subr.mxu0 0.0
        %840 = vmatpush1.msra.mxu0 0.0
        %841 = vmatprep.subr.mxu0 0.0
        %842 = vmatpush1.msra.mxu0 0.0
        %843 = vmatprep.subr.mxu0 0.0
        %844 = vmatpush1.msra.mxu0 0.0
        %845 = vmatprep.subr.mxu0 0.0
        %846 = vmatpush1.msra.mxu0 0.0
        %847 = vmatprep.subr.mxu0 0.0
        %848 = vmatpush1.msra.mxu0 0.0
        %849 = vmatprep.subr.mxu0 0.0
        %850 = vmatpush1.msra.mxu0 0.0
        %851 = vmatprep.subr.mxu0 0.0
        %852 = vmatpush1.msra.mxu0 0.0
        %853 = vmatprep.subr.mxu0 0.0
        %854 = vmatpush1.msra.mxu0 0.0
        %855 = vmatprep.subr.mxu0 0.0
        %856 = vmatpush1.msra.mxu0 0.0
        %857 = vmatprep.subr.mxu0 0.0
        %858 = vmatpush1.msra.mxu0 0.0
        %859 = vmatprep.subr.mxu0 0.0
        %860 = vmatpush1.msra.mxu0 0.0
        %861 = vmatprep.subr.mxu0 0.0
        %862 = vmatpush1.msra.mxu0 0.0
        %863 = vmatprep.subr.mxu0 0.0
        %864 = vmatpush1.msra.mxu0 0.0
        %865 = vmatprep.subr.mxu0 0.0
        %866 = vmatpush1.msra.mxu0 0.0
        %867 = vmatprep.subr.mxu0 0.0
        %868 = vmatpush1.msra.mxu0 0.0
        %869 = vmatprep.subr.mxu0 0.0
        %870 = vmatpush1.msra.mxu0 0.0
        %871 = vmatprep.subr.mxu0 0.0
        %872 = vmatpush1.msra.mxu0 0.0
        %873 = vmatprep.subr.mxu0 0.0
        %874 = vmatpush1.msra.mxu0 0.0
        %875 = vmatprep.subr.mxu0 0.0
        %876 = vmatpush1.msra.mxu0 0.0
        %877 = vmatprep.subr.mxu0 0.0
        %878 = vmatpush1.msra.mxu0 0.0
        %879 = vmatprep.subr.mxu0 0.0
        %880 = vmatpush1.msra.mxu0 0.0
        %881 = vmatprep.subr.mxu0 0.0
        %882 = vmatpush1.msra.mxu0 0.0
        %883 = vmatprep.subr.mxu0 0.0
        %884 = vmatpush1.msra.mxu0 0.0
        %885 = vmatprep.subr.mxu0 0.0
        %886 = vmatpush1.msra.mxu0 0.0
        %887 = vmatprep.subr.mxu0 0.0
        %888 = vmatpush1.msra.mxu0 0.0
        %889 = vmatprep.subr.mxu0 0.0
        %890 = vmatpush1.msra.mxu0 0.0
        %891 = vmatprep.mubr.f32.mxu0 0.0
        %892 = vmatmul.mubr.f32.gmra.mrb[0].mxu0 %v825
        %v893 = vpop.f32.mrb[0].mxu0
        %v894 = vadd.f32 0.0, %v893
        %v895 = vpop.f32.mrb[0].mxu0
        %896 = vdwg.mxu0
        %v898 = vsel %vm486, %v652, 0
        %900 = vmatprep.subr.mxu0 0.0
        %901 = vmatpush1.msra.mxu0 %v653
        %902 = vmatprep.subr.mxu0 0.0
        %903 = vmatpush1.msra.mxu0 0.0
        %904 = vmatprep.subr.mxu0 0.0
        %905 = vmatpush1.msra.mxu0 0.0
        %906 = vmatprep.subr.mxu0 0.0
        %907 = vmatpush1.msra.mxu0 0.0
        %908 = vmatprep.subr.mxu0 0.0
        %909 = vmatpush1.msra.mxu0 0.0
        %910 = vmatprep.subr.mxu0 0.0
        %911 = vmatpush1.msra.mxu0 0.0
        %912 = vmatprep.subr.mxu0 0.0
        %913 = vmatpush1.msra.mxu0 0.0
        %914 = vmatprep.subr.mxu0 0.0
        %915 = vmatpush1.msra.mxu0 0.0
        %916 = vmatprep.subr.mxu0 0.0
        %917 = vmatpush1.msra.mxu0 0.0
        %918 = vmatprep.subr.mxu0 0.0
        %919 = vmatpush1.msra.mxu0 0.0
        %920 = vmatprep.subr.mxu0 0.0
        %921 = vmatpush1.msra.mxu0 0.0
        %922 = vmatprep.subr.mxu0 0.0
        %923 = vmatpush1.msra.mxu0 0.0
        %924 = vmatprep.subr.mxu0 0.0
        %925 = vmatpush1.msra.mxu0 0.0
        %926 = vmatprep.subr.mxu0 0.0
        %927 = vmatpush1.msra.mxu0 0.0
        %928 = vmatprep.subr.mxu0 0.0
        %929 = vmatpush1.msra.mxu0 0.0
        %930 = vmatprep.subr.mxu0 0.0
        %931 = vmatpush1.msra.mxu0 0.0
        %932 = vmatprep.subr.mxu0 0.0
        %933 = vmatpush1.msra.mxu0 0.0
        %934 = vmatprep.subr.mxu0 0.0
        %935 = vmatpush1.msra.mxu0 0.0
        %936 = vmatprep.subr.mxu0 0.0
        %937 = vmatpush1.msra.mxu0 0.0
        %938 = vmatprep.subr.mxu0 0.0
        %939 = vmatpush1.msra.mxu0 0.0
        %940 = vmatprep.subr.mxu0 0.0
        %941 = vmatpush1.msra.mxu0 0.0
        %942 = vmatprep.subr.mxu0 0.0
        %943 = vmatpush1.msra.mxu0 0.0
        %944 = vmatprep.subr.mxu0 0.0
        %945 = vmatpush1.msra.mxu0 0.0
        %946 = vmatprep.subr.mxu0 0.0
        %947 = vmatpush1.msra.mxu0 0.0
        %948 = vmatprep.subr.mxu0 0.0
        %949 = vmatpush1.msra.mxu0 0.0
        %950 = vmatprep.subr.mxu0 0.0
        %951 = vmatpush1.msra.mxu0 0.0
        %952 = vmatprep.subr.mxu0 0.0
        %953 = vmatpush1.msra.mxu0 0.0
        %954 = vmatprep.subr.mxu0 0.0
        %955 = vmatpush1.msra.mxu0 0.0
        %956 = vmatprep.subr.mxu0 0.0
        %957 = vmatpush1.msra.mxu0 0.0
        %958 = vmatprep.subr.mxu0 0.0
        %959 = vmatpush1.msra.mxu0 0.0
        %960 = vmatprep.subr.mxu0 0.0
        %961 = vmatpush1.msra.mxu0 0.0
        %962 = vmatprep.subr.mxu0 0.0
        %963 = vmatpush1.msra.mxu0 0.0
        %964 = vmatprep.mubr.f32.mxu0 0.0
        %965 = vmatmul.mubr.f32.gmra.mrb[0].mxu0 %v898
        %v966 = vpop.f32.mrb[0].mxu0
        %v967 = vadd.f32 %v894, %v966
        %v968 = vpop.f32.mrb[0].mxu0
        %969 = vdwg.mxu0
        %970 = vrot.lane.b32.xlu0 %v485, 112
        %v971 = vpop.permute.xlu0 %970
        %972 = vrot.lane.b32.xlu0 %v484, 112
        %v973 = vpop.permute.xlu0 %972
        %v974 = vsel %vm486, %v971, 0
        %v976 = vsel %vm486, %v973, 0
        %978 = vmatprep.subr.mxu0 0.0
        %979 = vmatpush1.xpose.msra.mxu0 %v976
        %980 = vmatprep.subr.mxu0 0.0
        %981 = vmatpush1.xpose.msra.mxu0 0.0
        %982 = vmatprep.subr.mxu0 0.0
        %983 = vmatpush1.xpose.msra.mxu0 0.0
        %984 = vmatprep.subr.mxu0 0.0
        %985 = vmatpush1.xpose.msra.mxu0 0.0
        %986 = vmatprep.subr.mxu0 0.0
        %987 = vmatpush1.xpose.msra.mxu0 0.0
        %988 = vmatprep.subr.mxu0 0.0
        %989 = vmatpush1.xpose.msra.mxu0 0.0
        %990 = vmatprep.subr.mxu0 0.0
        %991 = vmatpush1.xpose.msra.mxu0 0.0
        %992 = vmatprep.subr.mxu0 0.0
        %993 = vmatpush1.xpose.msra.mxu0 0.0
        %994 = vmatprep.subr.mxu0 0.0
        %995 = vmatpush1.xpose.msra.mxu0 0.0
        %996 = vmatprep.subr.mxu0 0.0
        %997 = vmatpush1.xpose.msra.mxu0 0.0
        %998 = vmatprep.subr.mxu0 0.0
        %999 = vmatpush1.xpose.msra.mxu0 0.0
        %1000 = vmatprep.subr.mxu0 0.0
        %1001 = vmatpush1.xpose.msra.mxu0 0.0
        %1002 = vmatprep.subr.mxu0 0.0
        %1003 = vmatpush1.xpose.msra.mxu0 0.0
        %1004 = vmatprep.subr.mxu0 0.0
        %1005 = vmatpush1.xpose.msra.mxu0 0.0
        %1006 = vmatprep.subr.mxu0 0.0
        %1007 = vmatpush1.xpose.msra.mxu0 0.0
        %1008 = vmatprep.subr.mxu0 0.0
        %1009 = vmatpush1.xpose.msra.mxu0 0.0
        %1010 = vmatprep.subr.mxu0 0.0
        %1011 = vmatpush1.xpose.msra.mxu0 0.0
        %1012 = vmatprep.subr.mxu0 0.0
        %1013 = vmatpush1.xpose.msra.mxu0 0.0
        %1014 = vmatprep.subr.mxu0 0.0
        %1015 = vmatpush1.xpose.msra.mxu0 0.0
        %1016 = vmatprep.subr.mxu0 0.0
        %1017 = vmatpush1.xpose.msra.mxu0 0.0
        %1018 = vmatprep.subr.mxu0 0.0
        %1019 = vmatpush1.xpose.msra.mxu0 0.0
        %1020 = vmatprep.subr.mxu0 0.0
        %1021 = vmatpush1.xpose.msra.mxu0 0.0
        %1022 = vmatprep.subr.mxu0 0.0
        %1023 = vmatpush1.xpose.msra.mxu0 0.0
        %1024 = vmatprep.subr.mxu0 0.0
        %1025 = vmatpush1.xpose.msra.mxu0 0.0
        %1026 = vmatprep.subr.mxu0 0.0
        %1027 = vmatpush1.xpose.msra.mxu0 0.0
        %1028 = vmatprep.subr.mxu0 0.0
        %1029 = vmatpush1.xpose.msra.mxu0 0.0
        %1030 = vmatprep.subr.mxu0 0.0
        %1031 = vmatpush1.xpose.msra.mxu0 0.0
        %1032 = vmatprep.subr.mxu0 0.0
        %1033 = vmatpush1.xpose.msra.mxu0 0.0
        %1034 = vmatprep.subr.mxu0 0.0
        %1035 = vmatpush1.xpose.msra.mxu0 0.0
        %1036 = vmatprep.subr.mxu0 0.0
        %1037 = vmatpush1.xpose.msra.mxu0 0.0
        %1038 = vmatprep.subr.mxu0 0.0
        %1039 = vmatpush1.xpose.msra.mxu0 0.0
        %1040 = vmatprep.subr.mxu0 0.0
        %1041 = vmatpush1.xpose.msra.mxu0 0.0
        %1042 = vmatprep.mubr.f32.mxu0 0.0
        %1043 = vmatmul.mubr.f32.gmra.mrb[0].mxu0 %v974
        %v1044 = vpop.f32.mrb[0].mxu0
        %v1045 = vadd.f32 0.0, %v1044
        %v1046 = vpop.f32.mrb[0].mxu0
        %1047 = vdwg.mxu0
        %v1048 = vld [vmem:[#allocation3 + $0x2] sm:$0x1]
        %v1049 = vlaneseq
        %v1050 = vshrl.u32 %v1049, 7
        %v1051 = vsub.s32 0, %v1050
        %v1052 = vrot.slane %v1048, %v1051
        %v1053 = vsub.f32 %v1045, %v1052
        %v1054 = vsel %vm486, %v1053, -inf
        %1055 = vmax.xlane.f32.xlu0 %v1054
        %v1056 = vpop.xlane.xlu0 %1055
        %v1057 = vsub.f32 %v1053, %v1056
        %v1058 = vmul.f32 %v1057, 1.442695
        %v1059 = vpow.pop %v1058
        %v1060 = vsel %vm486, %v1059, 0.0
        %1061 = vadd.xlane.f32.xlu0 %v1060
        %v1062 = vpop.xlane.xlu0 %1061
        %v1065 = vsel %vm486, %v1059, 0
        %1067 = vmatprep.subr.mxu0 0.0
        %1068 = vmatpush1.msra.mxu0 %v973
        %1069 = vmatprep.subr.mxu0 0.0
        %1070 = vmatpush1.msra.mxu0 0.0
        %1071 = vmatprep.subr.mxu0 0.0
        %1072 = vmatpush1.msra.mxu0 0.0
        %1073 = vmatprep.subr.mxu0 0.0
        %1074 = vmatpush1.msra.mxu0 0.0
        %1075 = vmatprep.subr.mxu0 0.0
        %1076 = vmatpush1.msra.mxu0 0.0
        %1077 = vmatprep.subr.mxu0 0.0
        %1078 = vmatpush1.msra.mxu0 0.0
        %1079 = vmatprep.subr.mxu0 0.0
        %1080 = vmatpush1.msra.mxu0 0.0
        %1081 = vmatprep.subr.mxu0 0.0
        %1082 = vmatpush1.msra.mxu0 0.0
        %1083 = vmatprep.subr.mxu0 0.0
        %1084 = vmatpush1.msra.mxu0 0.0
        %1085 = vmatprep.subr.mxu0 0.0
        %1086 = vmatpush1.msra.mxu0 0.0
        %1087 = vmatprep.subr.mxu0 0.0
        %1088 = vmatpush1.msra.mxu0 0.0
        %1089 = vmatprep.subr.mxu0 0.0
        %1090 = vmatpush1.msra.mxu0 0.0
        %1091 = vmatprep.subr.mxu0 0.0
        %1092 = vmatpush1.msra.mxu0 0.0
        %1093 = vmatprep.subr.mxu0 0.0
        %1094 = vmatpush1.msra.mxu0 0.0
        %1095 = vmatprep.subr.mxu0 0.0
        %1096 = vmatpush1.msra.mxu0 0.0
        %1097 = vmatprep.subr.mxu0 0.0
        %1098 = vmatpush1.msra.mxu0 0.0
        %1099 = vmatprep.subr.mxu0 0.0
        %1100 = vmatpush1.msra.mxu0 0.0
        %1101 = vmatprep.subr.mxu0 0.0
        %1102 = vmatpush1.msra.mxu0 0.0
        %1103 = vmatprep.subr.mxu0 0.0
        %1104 = vmatpush1.msra.mxu0 0.0
        %1105 = vmatprep.subr.mxu0 0.0
        %1106 = vmatpush1.msra.mxu0 0.0
        %1107 = vmatprep.subr.mxu0 0.0
        %1108 = vmatpush1.msra.mxu0 0.0
        %1109 = vmatprep.subr.mxu0 0.0
        %1110 = vmatpush1.msra.mxu0 0.0
        %1111 = vmatprep.subr.mxu0 0.0
        %1112 = vmatpush1.msra.mxu0 0.0
        %1113 = vmatprep.subr.mxu0 0.0
        %1114 = vmatpush1.msra.mxu0 0.0
        %1115 = vmatprep.subr.mxu0 0.0
        %1116 = vmatpush1.msra.mxu0 0.0
        %1117 = vmatprep.subr.mxu0 0.0
        %1118 = vmatpush1.msra.mxu0 0.0
        %1119 = vmatprep.subr.mxu0 0.0
        %1120 = vmatpush1.msra.mxu0 0.0
        %1121 = vmatprep.subr.mxu0 0.0
        %1122 = vmatpush1.msra.mxu0 0.0
        %1123 = vmatprep.subr.mxu0 0.0
        %1124 = vmatpush1.msra.mxu0 0.0
        %1125 = vmatprep.subr.mxu0 0.0
        %1126 = vmatpush1.msra.mxu0 0.0
        %1127 = vmatprep.subr.mxu0 0.0
        %1128 = vmatpush1.msra.mxu0 0.0
        %1129 = vmatprep.subr.mxu0 0.0
        %1130 = vmatpush1.msra.mxu0 0.0
        %1131 = vmatprep.mubr.f32.mxu0 0.0
        %1132 = vmatmul.mubr.f32.gmra.mrb[0].mxu0 %v1065
        %v1133 = vpop.f32.mrb[0].mxu0
        %v1134 = vadd.f32 0.0, %v1133
        %v1135 = vpop.f32.mrb[0].mxu0
        %1136 = vdwg.mxu0
        %v1137 = vrcp.pop %v1062
        %v1138 = vmul.f32 %v1134, %v1137
        %v1139 = vld [vmem:[#allocation9 + $0x10] sm:$0xff]
        %v1141 = vsel %vm486, %v1138, 0
        %1143 = vmatprep.subr.mxu0 0.0
        %1144 = vmatpush1.msra.mxu0 %v1139
        %1145 = vmatprep.subr.mxu0 0.0
        %1146 = vmatpush1.msra.mxu0 0.0
        %1147 = vmatprep.subr.mxu0 0.0
        %1148 = vmatpush1.msra.mxu0 0.0
        %1149 = vmatprep.subr.mxu0 0.0
        %1150 = vmatpush1.msra.mxu0 0.0
        %1151 = vmatprep.subr.mxu0 0.0
        %1152 = vmatpush1.msra.mxu0 0.0
        %1153 = vmatprep.subr.mxu0 0.0
        %1154 = vmatpush1.msra.mxu0 0.0
        %1155 = vmatprep.subr.mxu0 0.0
        %1156 = vmatpush1.msra.mxu0 0.0
        %1157 = vmatprep.subr.mxu0 0.0
        %1158 = vmatpush1.msra.mxu0 0.0
        %1159 = vmatprep.subr.mxu0 0.0
        %1160 = vmatpush1.msra.mxu0 0.0
        %1161 = vmatprep.subr.mxu0 0.0
        %1162 = vmatpush1.msra.mxu0 0.0
        %1163 = vmatprep.subr.mxu0 0.0
        %1164 = vmatpush1.msra.mxu0 0.0
        %1165 = vmatprep.subr.mxu0 0.0
        %1166 = vmatpush1.msra.mxu0 0.0
        %1167 = vmatprep.subr.mxu0 0.0
        %1168 = vmatpush1.msra.mxu0 0.0
        %1169 = vmatprep.subr.mxu0 0.0
        %1170 = vmatpush1.msra.mxu0 0.0
        %1171 = vmatprep.subr.mxu0 0.0
        %1172 = vmatpush1.msra.mxu0 0.0
        %1173 = vmatprep.subr.mxu0 0.0
        %1174 = vmatpush1.msra.mxu0 0.0
        %1175 = vmatprep.subr.mxu0 0.0
        %1176 = vmatpush1.msra.mxu0 0.0
        %1177 = vmatprep.subr.mxu0 0.0
        %1178 = vmatpush1.msra.mxu0 0.0
        %1179 = vmatprep.subr.mxu0 0.0
        %1180 = vmatpush1.msra.mxu0 0.0
        %1181 = vmatprep.subr.mxu0 0.0
        %1182 = vmatpush1.msra.mxu0 0.0
        %1183 = vmatprep.subr.mxu0 0.0
        %1184 = vmatpush1.msra.mxu0 0.0
        %1185 = vmatprep.subr.mxu0 0.0
        %1186 = vmatpush1.msra.mxu0 0.0
        %1187 = vmatprep.subr.mxu0 0.0
        %1188 = vmatpush1.msra.mxu0 0.0
        %1189 = vmatprep.subr.mxu0 0.0
        %1190 = vmatpush1.msra.mxu0 0.0
        %1191 = vmatprep.subr.mxu0 0.0
        %1192 = vmatpush1.msra.mxu0 0.0
        %1193 = vmatprep.subr.mxu0 0.0
        %1194 = vmatpush1.msra.mxu0 0.0
        %1195 = vmatprep.subr.mxu0 0.0
        %1196 = vmatpush1.msra.mxu0 0.0
        %1197 = vmatprep.subr.mxu0 0.0
        %1198 = vmatpush1.msra.mxu0 0.0
        %1199 = vmatprep.subr.mxu0 0.0
        %1200 = vmatpush1.msra.mxu0 0.0
        %1201 = vmatprep.subr.mxu0 0.0
        %1202 = vmatpush1.msra.mxu0 0.0
        %1203 = vmatprep.subr.mxu0 0.0
        %1204 = vmatpush1.msra.mxu0 0.0
        %1205 = vmatprep.subr.mxu0 0.0
        %1206 = vmatpush1.msra.mxu0 0.0
        %1207 = vmatprep.mubr.f32.mxu0 0.0
        %1208 = vmatmul.mubr.f32.gmra.mrb[0].mxu0 %v1141
        %v1209 = vpop.f32.mrb[0].mxu0
        %v1210 = vadd.f32 0.0, %v1209
        %v1211 = vpop.f32.mrb[0].mxu0
        %1212 = vdwg.mxu0
        %v1213 = vadd.f32 %v967, %v1210
        %1214 = vrot.lane.b32.xlu0 %v485, 104
        %v1215 = vpop.permute.xlu0 %1214
        %1216 = vrot.lane.b32.xlu0 %v484, 104
        %v1217 = vpop.permute.xlu0 %1216
        %v1218 = vsel %vm486, %v1215, 0
        %v1220 = vsel %vm486, %v1217, 0
        %1222 = vmatprep.subr.mxu0 0.0
        %1223 = vmatpush1.xpose.msra.mxu0 %v1220
        %1224 = vmatprep.subr.mxu0 0.0
        %1225 = vmatpush1.xpose.msra.mxu0 0.0
        %1226 = vmatprep.subr.mxu0 0.0
        %1227 = vmatpush1.xpose.msra.mxu0 0.0
        %1228 = vmatprep.subr.mxu0 0.0
        %1229 = vmatpush1.xpose.msra.mxu0 0.0
        %1230 = vmatprep.subr.mxu0 0.0
        %1231 = vmatpush1.xpose.msra.mxu0 0.0
        %1232 = vmatprep.subr.mxu0 0.0
        %1233 = vmatpush1.xpose.msra.mxu0 0.0
        %1234 = vmatprep.subr.mxu0 0.0
        %1235 = vmatpush1.xpose.msra.mxu0 0.0
        %1236 = vmatprep.subr.mxu0 0.0
        %1237 = vmatpush1.xpose.msra.mxu0 0.0
        %1238 = vmatprep.subr.mxu0 0.0
        %1239 = vmatpush1.xpose.msra.mxu0 0.0
        %1240 = vmatprep.subr.mxu0 0.0
        %1241 = vmatpush1.xpose.msra.mxu0 0.0
        %1242 = vmatprep.subr.mxu0 0.0
        %1243 = vmatpush1.xpose.msra.mxu0 0.0
        %1244 = vmatprep.subr.mxu0 0.0
        %1245 = vmatpush1.xpose.msra.mxu0 0.0
        %1246 = vmatprep.subr.mxu0 0.0
        %1247 = vmatpush1.xpose.msra.mxu0 0.0
        %1248 = vmatprep.subr.mxu0 0.0
        %1249 = vmatpush1.xpose.msra.mxu0 0.0
        %1250 = vmatprep.subr.mxu0 0.0
        %1251 = vmatpush1.xpose.msra.mxu0 0.0
        %1252 = vmatprep.subr.mxu0 0.0
        %1253 = vmatpush1.xpose.msra.mxu0 0.0
        %1254 = vmatprep.subr.mxu0 0.0
        %1255 = vmatpush1.xpose.msra.mxu0 0.0
        %1256 = vmatprep.subr.mxu0 0.0
        %1257 = vmatpush1.xpose.msra.mxu0 0.0
        %1258 = vmatprep.subr.mxu0 0.0
        %1259 = vmatpush1.xpose.msra.mxu0 0.0
        %1260 = vmatprep.subr.mxu0 0.0
        %1261 = vmatpush1.xpose.msra.mxu0 0.0
        %1262 = vmatprep.subr.mxu0 0.0
        %1263 = vmatpush1.xpose.msra.mxu0 0.0
        %1264 = vmatprep.subr.mxu0 0.0
        %1265 = vmatpush1.xpose.msra.mxu0 0.0
        %1266 = vmatprep.subr.mxu0 0.0
        %1267 = vmatpush1.xpose.msra.mxu0 0.0
        %1268 = vmatprep.subr.mxu0 0.0
        %1269 = vmatpush1.xpose.msra.mxu0 0.0
        %1270 = vmatprep.subr.mxu0 0.0
        %1271 = vmatpush1.xpose.msra.mxu0 0.0
        %1272 = vmatprep.subr.mxu0 0.0
        %1273 = vmatpush1.xpose.msra.mxu0 0.0
        %1274 = vmatprep.subr.mxu0 0.0
        %1275 = vmatpush1.xpose.msra.mxu0 0.0
        %1276 = vmatprep.subr.mxu0 0.0
        %1277 = vmatpush1.xpose.msra.mxu0 0.0
        %1278 = vmatprep.subr.mxu0 0.0
        %1279 = vmatpush1.xpose.msra.mxu0 0.0
        %1280 = vmatprep.subr.mxu0 0.0
        %1281 = vmatpush1.xpose.msra.mxu0 0.0
        %1282 = vmatprep.subr.mxu0 0.0
        %1283 = vmatpush1.xpose.msra.mxu0 0.0
        %1284 = vmatprep.subr.mxu0 0.0
        %1285 = vmatpush1.xpose.msra.mxu0 0.0
        %1286 = vmatprep.mubr.f32.mxu0 0.0
        %1287 = vmatmul.mubr.f32.gmra.mrb[0].mxu0 %v1218
        %v1288 = vpop.f32.mrb[0].mxu0
        %v1289 = vadd.f32 0.0, %v1288
        %v1290 = vpop.f32.mrb[0].mxu0
        %1291 = vdwg.mxu0
        %v1292 = vld [vmem:[#allocation3 + $0x3] sm:$0x1]
        %v1293 = vlaneseq
        %v1294 = vshrl.u32 %v1293, 7
        %v1295 = vsub.s32 0, %v1294
        %v1296 = vrot.slane %v1292, %v1295
        %v1297 = vsub.f32 %v1289, %v1296
        %v1298 = vsel %vm486, %v1297, -inf
        %1299 = vmax.xlane.f32.xlu0 %v1298
        %v1300 = vpop.xlane.xlu0 %1299
        %v1301 = vsub.f32 %v1297, %v1300
        %v1302 = vmul.f32 %v1301, 1.442695
        %v1303 = vpow.pop %v1302
        %v1304 = vsel %vm486, %v1303, 0.0
        %1305 = vadd.xlane.f32.xlu0 %v1304
        %v1306 = vpop.xlane.xlu0 %1305
        %v1309 = vsel %vm486, %v1303, 0
        %1311 = vmatprep.subr.mxu0 0.0
        %1312 = vmatpush1.msra.mxu0 %v1217
        %1313 = vmatprep.subr.mxu0 0.0
        %1314 = vmatpush1.msra.mxu0 0.0
        %1315 = vmatprep.subr.mxu0 0.0
        %1316 = vmatpush1.msra.mxu0 0.0
        %1317 = vmatprep.subr.mxu0 0.0
        %1318 = vmatpush1.msra.mxu0 0.0
        %1319 = vmatprep.subr.mxu0 0.0
        %1320 = vmatpush1.msra.mxu0 0.0
        %1321 = vmatprep.subr.mxu0 0.0
        %1322 = vmatpush1.msra.mxu0 0.0
        %1323 = vmatprep.subr.mxu0 0.0
        %1324 = vmatpush1.msra.mxu0 0.0
        %1325 = vmatprep.subr.mxu0 0.0
        %1326 = vmatpush1.msra.mxu0 0.0
        %1327 = vmatprep.subr.mxu0 0.0
        %1328 = vmatpush1.msra.mxu0 0.0
        %1329 = vmatprep.subr.mxu0 0.0
        %1330 = vmatpush1.msra.mxu0 0.0
        %1331 = vmatprep.subr.mxu0 0.0
        %1332 = vmatpush1.msra.mxu0 0.0
        %1333 = vmatprep.subr.mxu0 0.0
        %1334 = vmatpush1.msra.mxu0 0.0
        %1335 = vmatprep.subr.mxu0 0.0
        %1336 = vmatpush1.msra.mxu0 0.0
        %1337 = vmatprep.subr.mxu0 0.0
        %1338 = vmatpush1.msra.mxu0 0.0
        %1339 = vmatprep.subr.mxu0 0.0
        %1340 = vmatpush1.msra.mxu0 0.0
        %1341 = vmatprep.subr.mxu0 0.0
        %1342 = vmatpush1.msra.mxu0 0.0
        %1343 = vmatprep.subr.mxu0 0.0
        %1344 = vmatpush1.msra.mxu0 0.0
        %1345 = vmatprep.subr.mxu0 0.0
        %1346 = vmatpush1.msra.mxu0 0.0
        %1347 = vmatprep.subr.mxu0 0.0
        %1348 = vmatpush1.msra.mxu0 0.0
        %1349 = vmatprep.subr.mxu0 0.0
        %1350 = vmatpush1.msra.mxu0 0.0
        %1351 = vmatprep.subr.mxu0 0.0
        %1352 = vmatpush1.msra.mxu0 0.0
        %1353 = vmatprep.subr.mxu0 0.0
        %1354 = vmatpush1.msra.mxu0 0.0
        %1355 = vmatprep.subr.mxu0 0.0
        %1356 = vmatpush1.msra.mxu0 0.0
        %1357 = vmatprep.subr.mxu0 0.0
        %1358 = vmatpush1.msra.mxu0 0.0
        %1359 = vmatprep.subr.mxu0 0.0
        %1360 = vmatpush1.msra.mxu0 0.0
        %1361 = vmatprep.subr.mxu0 0.0
        %1362 = vmatpush1.msra.mxu0 0.0
        %1363 = vmatprep.subr.mxu0 0.0
        %1364 = vmatpush1.msra.mxu0 0.0
        %1365 = vmatprep.subr.mxu0 0.0
        %1366 = vmatpush1.msra.mxu0 0.0
        %1367 = vmatprep.subr.mxu0 0.0
        %1368 = vmatpush1.msra.mxu0 0.0
        %1369 = vmatprep.subr.mxu0 0.0
        %1370 = vmatpush1.msra.mxu0 0.0
        %1371 = vmatprep.subr.mxu0 0.0
        %1372 = vmatpush1.msra.mxu0 0.0
        %1373 = vmatprep.subr.mxu0 0.0
        %1374 = vmatpush1.msra.mxu0 0.0
        %1375 = vmatprep.mubr.f32.mxu0 0.0
        %1376 = vmatmul.mubr.f32.gmra.mrb[0].mxu0 %v1309
        %v1377 = vpop.f32.mrb[0].mxu0
        %v1378 = vadd.f32 0.0, %v1377
        %v1379 = vpop.f32.mrb[0].mxu0
        %1380 = vdwg.mxu0
        %v1381 = vrcp.pop %v1306
        %v1382 = vmul.f32 %v1378, %v1381
        %v1383 = vld [vmem:[#allocation9 + $0x18] sm:$0xff]
        %v1385 = vsel %vm486, %v1382, 0
        %1387 = vmatprep.subr.mxu0 0.0
        %1388 = vmatpush1.msra.mxu0 %v1383
        %1389 = vmatprep.subr.mxu0 0.0
        %1390 = vmatpush1.msra.mxu0 0.0
        %1391 = vmatprep.subr.mxu0 0.0
        %1392 = vmatpush1.msra.mxu0 0.0
        %1393 = vmatprep.subr.mxu0 0.0
        %1394 = vmatpush1.msra.mxu0 0.0
        %1395 = vmatprep.subr.mxu0 0.0
        %1396 = vmatpush1.msra.mxu0 0.0
        %1397 = vmatprep.subr.mxu0 0.0
        %1398 = vmatpush1.msra.mxu0 0.0
        %1399 = vmatprep.subr.mxu0 0.0
        %1400 = vmatpush1.msra.mxu0 0.0
        %1401 = vmatprep.subr.mxu0 0.0
        %1402 = vmatpush1.msra.mxu0 0.0
        %1403 = vmatprep.subr.mxu0 0.0
        %1404 = vmatpush1.msra.mxu0 0.0
        %1405 = vmatprep.subr.mxu0 0.0
        %1406 = vmatpush1.msra.mxu0 0.0
        %1407 = vmatprep.subr.mxu0 0.0
        %1408 = vmatpush1.msra.mxu0 0.0
        %1409 = vmatprep.subr.mxu0 0.0
        %1410 = vmatpush1.msra.mxu0 0.0
        %1411 = vmatprep.subr.mxu0 0.0
        %1412 = vmatpush1.msra.mxu0 0.0
        %1413 = vmatprep.subr.mxu0 0.0
        %1414 = vmatpush1.msra.mxu0 0.0
        %1415 = vmatprep.subr.mxu0 0.0
        %1416 = vmatpush1.msra.mxu0 0.0
        %1417 = vmatprep.subr.mxu0 0.0
        %1418 = vmatpush1.msra.mxu0 0.0
        %1419 = vmatprep.subr.mxu0 0.0
        %1420 = vmatpush1.msra.mxu0 0.0
        %1421 = vmatprep.subr.mxu0 0.0
        %1422 = vmatpush1.msra.mxu0 0.0
        %1423 = vmatprep.subr.mxu0 0.0
        %1424 = vmatpush1.msra.mxu0 0.0
        %1425 = vmatprep.subr.mxu0 0.0
        %1426 = vmatpush1.msra.mxu0 0.0
        %1427 = vmatprep.subr.mxu0 0.0
        %1428 = vmatpush1.msra.mxu0 0.0
        %1429 = vmatprep.subr.mxu0 0.0
        %1430 = vmatpush1.msra.mxu0 0.0
        %1431 = vmatprep.subr.mxu0 0.0
        %1432 = vmatpush1.msra.mxu0 0.0
        %1433 = vmatprep.subr.mxu0 0.0
        %1434 = vmatpush1.msra.mxu0 0.0
        %1435 = vmatprep.subr.mxu0 0.0
        %1436 = vmatpush1.msra.mxu0 0.0
        %1437 = vmatprep.subr.mxu0 0.0
        %1438 = vmatpush1.msra.mxu0 0.0
        %1439 = vmatprep.subr.mxu0 0.0
        %1440 = vmatpush1.msra.mxu0 0.0
        %1441 = vmatprep.subr.mxu0 0.0
        %1442 = vmatpush1.msra.mxu0 0.0
        %1443 = vmatprep.subr.mxu0 0.0
        %1444 = vmatpush1.msra.mxu0 0.0
        %1445 = vmatprep.subr.mxu0 0.0
        %1446 = vmatpush1.msra.mxu0 0.0
        %1447 = vmatprep.subr.mxu0 0.0
        %1448 = vmatpush1.msra.mxu0 0.0
        %1449 = vmatprep.subr.mxu0 0.0
        %1450 = vmatpush1.msra.mxu0 0.0
        %1451 = vmatprep.mubr.f32.mxu0 0.0
        %1452 = vmatmul.mubr.f32.gmra.mrb[0].mxu0 %v1385
        %v1453 = vpop.f32.mrb[0].mxu0
        %v1454 = vadd.f32 0.0, %v1453
        %v1455 = vpop.f32.mrb[0].mxu0
        %1456 = vdwg.mxu0
        %v1457 = vadd.f32 %v1213, %v1454
        %v1458 = vld [vmem:[%s3] sm:$0x1]
        %v1460 = vlaneseq
        %v1461 = vshrl.u32 %v1460, 7
        %v1462 = vsub.s32 0, %v1461
        %v1463 = vrot.slane %v1458, %v1462
        %v1465 = vadd.f32 %v1457, %v1463
        %vm1466 = vcmask 261120
        %1467 = vst.msk [vmem:[%s238] sm:$0xff] %vm1466, %v1465
        %s1468 = sand.u32 %s131, 1
        %s1469 = scalar_lea.sflag [#allocation6], %s1468
        %s1470 = sand.u32 %s131, 1
        %s1471 = smul.addr %s1470, 8
        %s1472 = scalar_lea.vmem [#allocation10], %s1471
        // Predicated region
        $region53: #{tpu_custom_call.1} parent=35 // pred_check
          %p1473 = pneg %p141
        $region54: #{tpu_custom_call.1} parent=35 // pred_check_branch
          %1475 = sbr.rel (%p1473) target = $region56
        $region55: #{tpu_custom_call.1} parent=35 // pred_region
          %s1477 = ssub.s32 128, 128
          %1478 = vsyncadd %s1469, %s1477
          %s1479 = sadd.s32 %s25, %s24
          %s1480 = smul.addr %s1479, 128
          %s1481 = scalar_lea.hbm %s4, %s1480
          %s1483 = sshll.u32 %s1472, 4
          %s1484 = int_to_ptr.vmem [resolvable:$true] %s1483
          %1486 = dma.vmem_to_hbm [thread:$0]  %s1484, 128, %s1481, %s1469
        $region56: #{tpu_custom_call.1} parent=35 // pred_fallthru
          _
      $region36: #{tpu_custom_call.1} parent=5 // pred_fallthru
        _
      %p1487 = scmp.le.s32.totalorder 2, %s15
      // Predicated region
      $region57: #{tpu_custom_call.1} parent=5 // pred_check
        %p1488 = pneg %p1487
      $region58: #{tpu_custom_call.1} parent=5 // pred_check_branch
        %1490 = sbr.rel (%p1488) target = $region60
      $region59: #{tpu_custom_call.1} parent=5 // pred_region
        %s1491 = ssub.s32 %s15, 2
        // Predicated region
        $region61: #{tpu_custom_call.1} parent=59 // pred_check
          %p1492 = pneg %p147
        $region62: #{tpu_custom_call.1} parent=59 // pred_check_branch
          %1494 = sbr.rel (%p1492) target = $region64
        $region63: #{tpu_custom_call.1} parent=59 // pred_region
          %s1495 = sand.u32 %s132, 1
          %s1496 = scalar_lea.sflag [#allocation6], %s1495
          %s1497 = sand.u32 %s132, 1
          %s1498 = smul.addr %s1497, 8
          %s1499 = scalar_lea.vmem [#allocation10], %s1498
          %1500 = dma.done %s1496, 128
        $region64: #{tpu_custom_call.1} parent=59 // pred_fallthru
          _
      $region60: #{tpu_custom_call.1} parent=5 // pred_fallthru
        _
    $region6: #{tpu_custom_call.1} parent=1 // loop_footer
      %s19 = sadd.s32 1, %s15
    $region7: #{tpu_custom_call.1} parent=1 // loop_footer_branch
      %14 = sbr.rel target = $region3
    $region8: #{tpu_custom_call.1} parent=1 // loop_exit
      _
    %1501 = vsyncpa [#allocation5], 1
    %s1502 = scalar_lea.sflag [#allocation5], 1
    %1503 = vsyncpa %s1502, 1
    %1504 = vsyncpa [#allocation8], 1
    %1505 = vsyncpa [#allocation6], 1
    %s1506 = scalar_lea.sflag [#allocation6], 1
    %1507 = vsyncpa %s1506, 1

// kernel: tpu_custom_call.1
$region0: #{tpu_custom_call.1}
  #allocation0 [shape = 'u32[]', space=smem, size = 0x4, offset = 0x4, fixed_abs, tag = 'smem constant byte address 0x4 - core index']
  #allocation1 [shape = 'u32[144,128]{1,0:T(1,128)}', space=vmem, size = 0x12000, scoped, tag = 'internal scratch']
  #allocation2 [shape = 'f32[8,32]{1,0:T(8,128)}', space=vmem, size = 0x1000, scoped, tag = 'scratch operand']
  #allocation3 [shape = 'f32[4,8]{1,0:T(4,128)}', space=vmem, size = 0x800, scoped, tag = 'scratch operand']
  %s0 = inlined_call_operand.hbm [shape: f32[2,8,32], index: 0, kind: input, shape index: {}]
  %s1 = inlined_call_operand.hbm [shape: f32[32,32], index: 1, kind: input, shape index: {}]
  %s2 = inlined_call_operand.hbm [shape: f32[32,32], index: 2, kind: input, shape index: {}]
  %s3 = inlined_call_operand.vmem [shape: f32[1,32], index: 3, kind: input, shape index: {}]
  %s4 = inlined_call_operand.hbm [shape: f32[2,8,32], index: 4, kind: output, shape index: {}]
  %s5 = sld [smem:[#allocation0]]
  $region65: #{tpu_custom_call.1} parent=0
    _
  %s7 = ssub.s32 1, %s5
  %s8 = scalar_select 0, %s7, %s5
  $region1: #{tpu_custom_call.1} parent=0
    #allocation4 [shape = 'u8[8192]{0}', space=vmem, size = 0x2000, scoped, tag = 'input window, operand 0']
    #allocation5 [shape = 's32[2]{0}', space=sflag, size = 0x8, scoped, tag = 'scoped memory for tpu_custom_call.1']
    #allocation6 [shape = 's32[2]{0}', space=sflag, size = 0x8, scoped, tag = 'scoped memory for tpu_custom_call.1']
    #allocation7 [shape = 'u8[16384]{0}', space=vmem, size = 0x4000, scoped, tag = 'input window, operand 1, single buffered']
    #allocation8 [shape = 's32[1]{0}', space=sflag, size = 0x4, scoped, tag = 'scoped memory for tpu_custom_call.1']
    #allocation9 [shape = 'u8[16384]{0}', space=vmem, size = 0x4000, scoped, tag = 'input window, operand 2, single buffered']
    #allocation10 [shape = 'u8[8192]{0}', space=vmem, size = 0x2000, scoped, tag = 'output window, operand 0']
    %9 = vsyncpa [#allocation5], 0
    %s10 = scalar_lea.sflag [#allocation5], 1
    %11 = vsyncpa %s10, 0
    %12 = vsyncpa [#allocation8], 0
    %13 = vsyncpa [#allocation6], 0
    %s14 = scalar_lea.sflag [#allocation6], 1
    %15 = vsyncpa %s14, 0
    loop: start=0, step=1, limit=4
    $region2: #{tpu_custom_call.1} parent=1 // loop_pre_header
      _
    $region3: #{tpu_custom_call.1} parent=1 // loop_header
      %s17 = sphi 0, %s21
      %p18 = scmp.ge.s32.totalorder %s17, 4
      %s24 = sphi 0, %s36
      %s25 = sphi 0, %s32
      %s26 = sphi 0, %s24
      %s27 = sphi 0, %s25
      %s28 = sphi 0, %s26
      %s29 = sphi 0, %s27
      %s39 = sphi 0, %s41
      %s42 = sphi 0, %s39
      %s43 = sphi 0, %s42
      %s59 = sphi 0, %s43
      %s63 = sphi 0, %s63
      %s65 = sphi 0, %s63
      %s66 = sphi 0, %s65
      %s80 = sphi 0, %s66
      %s84 = sphi 0, %s84
      %s86 = sphi 0, %s84
      %s87 = sphi 0, %s86
      %s101 = sphi 0, %s87
      %s105 = sphi 0, %s105
      %s107 = sphi 0, %s105
      %s108 = sphi 0, %s107
      %s122 = sphi 0, %s108
      %s130 = sphi 0, %s132
      %s133 = sphi 0, %s130
      %s134 = sphi 0, %s133
      %s150 = sphi 0, %s134
    $region4: #{tpu_custom_call.1} parent=1 // loop_header_branch
      %20 = sbr.rel (%p18) target = $region8
    $region5: #{tpu_custom_call.1} parent=1 // loop_body
      %s22 = ssub.s32 %s17, 1
      %s23 = ssub.s32 %s17, 2
      %s30 = sadd.s32 1, %s25
      %p31 = scmp.ge.s32.totalorder %s30, 1
      %s32 = scalar_select %p31, 0, %s30
      %s33 = sadd.s32 1, %s24
      %s34 = scalar_select %p31, %s33, %s24
      %p35 = scmp.ge.s32.totalorder %s34, 2
      %s36 = scalar_select %p35, 0, %s34
      %s37 = ssub.s32 %s24, %s36
      %p38 = scmp.eq.s32.totalorder %s37, 0
      %s40 = sadd.s32 %s39, 1
      %s41 = scalar_select %p38, %s39, %s40
      %p44 = pneg %p38
      %p45 = scmp.eq.s32.totalorder %s17, 1
      %p46 = por %p44, %p45
      %p47 = scmp.ne.s32.totalorder %s39, %s42
      %p48 = scmp.eq.s32.totalorder %s17, 0
      %p49 = por %p47, %p48
      %p50 = scmp.ne.s32.totalorder %s39, %s42
      %p51 = scmp.eq.s32.totalorder %s22, 1
      %p52 = por %p50, %p51
      %p53 = scmp.ne.s32.totalorder %s42, %s43
      %p54 = scmp.eq.s32.totalorder %s22, 0
      %p55 = por %p53, %p54
      %p56 = scmp.ne.s32.totalorder %s42, %s43
      %p57 = scmp.eq.s32.totalorder %s23, 1
      %p58 = por %p56, %p57
      %p60 = scmp.ne.s32.totalorder %s43, %s59
      %p61 = scmp.eq.s32.totalorder %s23, 0
      %p62 = por %p60, %p61
      %s64 = sadd.s32 %s63, 1
      %p67 = scmp.eq.s32.totalorder %s17, 1
      %p68 = scmp.ne.s32.totalorder %s63, %s65
      %p69 = scmp.eq.s32.totalorder %s17, 0
      %p70 = por %p68, %p69
      %p71 = scmp.ne.s32.totalorder %s63, %s65
      %p72 = scmp.eq.s32.totalorder %s22, 1
      %p73 = por %p71, %p72
      %p74 = scmp.ne.s32.totalorder %s65, %s66
      %p75 = scmp.eq.s32.totalorder %s22, 0
      %p76 = por %p74, %p75
      %p77 = scmp.ne.s32.totalorder %s65, %s66
      %p78 = scmp.eq.s32.totalorder %s23, 1
      %p79 = por %p77, %p78
      %p81 = scmp.ne.s32.totalorder %s66, %s80
      %p82 = scmp.eq.s32.totalorder %s23, 0
      %p83 = por %p81, %p82
      %s85 = sadd.s32 %s84, 1
      %p88 = scmp.eq.s32.totalorder %s17, 1
      %p89 = scmp.ne.s32.totalorder %s84, %s86
      %p90 = scmp.eq.s32.totalorder %s17, 0
      %p91 = por %p89, %p90
      %p92 = scmp.ne.s32.totalorder %s84, %s86
      %p93 = scmp.eq.s32.totalorder %s22, 1
      %p94 = por %p92, %p93
      %p95 = scmp.ne.s32.totalorder %s86, %s87
      %p96 = scmp.eq.s32.totalorder %s22, 0
      %p97 = por %p95, %p96
      %p98 = scmp.ne.s32.totalorder %s86, %s87
      %p99 = scmp.eq.s32.totalorder %s23, 1
      %p100 = por %p98, %p99
      %p102 = scmp.ne.s32.totalorder %s87, %s101
      %p103 = scmp.eq.s32.totalorder %s23, 0
      %p104 = por %p102, %p103
      %s106 = sadd.s32 %s105, 1
      %p109 = scmp.eq.s32.totalorder %s17, 1
      %p110 = scmp.ne.s32.totalorder %s105, %s107
      %p111 = scmp.eq.s32.totalorder %s17, 0
      %p112 = por %p110, %p111
      %p113 = scmp.ne.s32.totalorder %s105, %s107
      %p114 = scmp.eq.s32.totalorder %s22, 1
      %p115 = por %p113, %p114
      %p116 = scmp.ne.s32.totalorder %s107, %s108
      %p117 = scmp.eq.s32.totalorder %s22, 0
      %p118 = por %p116, %p117
      %p119 = scmp.ne.s32.totalorder %s107, %s108
      %p120 = scmp.eq.s32.totalorder %s23, 1
      %p121 = por %p119, %p120
      %p123 = scmp.ne.s32.totalorder %s108, %s122
      %p124 = scmp.eq.s32.totalorder %s23, 0
      %p125 = por %p123, %p124
      %s126 = ssub.s32 %s24, %s36
      %s127 = ssub.s32 %s25, %s32
      %s128 = sor.u32 %s126, %s127
      %p129 = scmp.eq.s32.totalorder %s128, 0
      %s131 = sadd.s32 %s130, 1
      %s132 = scalar_select %p129, %s130, %s131
      %p135 = pneg %p129
      %p136 = scmp.eq.s32.totalorder %s17, 1
      %p137 = por %p135, %p136
      %p138 = scmp.ne.s32.totalorder %s130, %s133
      %p139 = scmp.eq.s32.totalorder %s17, 0
      %p140 = por %p138, %p139
      %p141 = scmp.ne.s32.totalorder %s130, %s133
      %p142 = scmp.eq.s32.totalorder %s22, 1
      %p143 = por %p141, %p142
      %p144 = scmp.ne.s32.totalorder %s133, %s134
      %p145 = scmp.eq.s32.totalorder %s22, 0
      %p146 = por %p144, %p145
      %p147 = scmp.ne.s32.totalorder %s133, %s134
      %p148 = scmp.eq.s32.totalorder %s23, 1
      %p149 = por %p147, %p148
      %p151 = scmp.ne.s32.totalorder %s134, %s150
      %p152 = scmp.eq.s32.totalorder %s23, 0
      %p153 = por %p151, %p152
      %p154 = scmp.le.s32.totalorder 1, %s17
      %p155 = scmp.lt.s32.totalorder %s17, 3
      %p156 = pnand %p154, %p155
      %p157 = pneg %p156
      // Predicated region
      $region9: #{tpu_custom_call.1} parent=5 // pred_check
        _
      $region10: #{tpu_custom_call.1} parent=5 // pred_check_branch
        %159 = sbr.rel (%p156) target = $region12
      $region11: #{tpu_custom_call.1} parent=5 // pred_region
        %s160 = ssub.s32 %s17, 1
        // Predicated region
        $region13: #{tpu_custom_call.1} parent=11 // pred_check
          %p161 = pneg %p76
        $region14: #{tpu_custom_call.1} parent=11 // pred_check_branch
          %163 = sbr.rel (%p161) target = $region16
        $region15: #{tpu_custom_call.1} parent=11 // pred_region
          %s165 = ssub.s32 512, 512
          %166 = vsyncadd [#allocation8], %s165
          %s167 = sshll.u32 [#allocation7], 4
          %s168 = int_to_ptr.vmem [resolvable:$true] %s167
          %173 = dma.hbm_to_vmem [thread:$0]  %s1, 512, %s168, [#allocation8], 128, 128, 8
        $region16: #{tpu_custom_call.1} parent=11 // pred_fallthru
          _
        // Predicated region
        $region17: #{tpu_custom_call.1} parent=11 // pred_check
          %p174 = pneg %p97
        $region18: #{tpu_custom_call.1} parent=11 // pred_check_branch
          %176 = sbr.rel (%p174) target = $region20
        $region19: #{tpu_custom_call.1} parent=11 // pred_region
          %s178 = ssub.s32 512, 512
          %179 = vsyncadd [#allocation8], %s178
          %s180 = sshll.u32 [#allocation9], 4
          %s181 = int_to_ptr.vmem [resolvable:$true] %s180
          %186 = dma.hbm_to_vmem [thread:$0]  %s2, 512, %s181, [#allocation8], 128, 128, 8
        $region20: #{tpu_custom_call.1} parent=11 // pred_fallthru
          _
        // Predicated region
        $region21: #{tpu_custom_call.1} parent=11 // pred_check
          %p187 = pneg %p118
        $region22: #{tpu_custom_call.1} parent=11 // pred_check_branch
          %189 = sbr.rel (%p187) target = $region24
        $region23: #{tpu_custom_call.1} parent=11 // pred_region
          _
        $region24: #{tpu_custom_call.1} parent=11 // pred_fallthru
          _
      $region12: #{tpu_custom_call.1} parent=5 // pred_fallthru
        _
      %p190 = scmp.lt.s32.totalorder %s17, 2
      // Predicated region
      $region25: #{tpu_custom_call.1} parent=5 // pred_check
        %p191 = pneg %p190
      $region26: #{tpu_custom_call.1} parent=5 // pred_check_branch
        %193 = sbr.rel (%p191) target = $region28
      $region27: #{tpu_custom_call.1} parent=5 // pred_region
        // Predicated region
        $region29: #{tpu_custom_call.1} parent=27 // pred_check
          %p194 = pneg %p49
        $region30: #{tpu_custom_call.1} parent=27 // pred_check_branch
          %196 = sbr.rel (%p194) target = $region32
        $region31: #{tpu_custom_call.1} parent=27 // pred_region
          %s197 = sand.u32 %s39, 1
          %s198 = scalar_lea.sflag [#allocation5], %s197
          %s199 = sand.u32 %s39, 1
          %s200 = smul.addr %s199, 8
          %s201 = scalar_lea.vmem [#allocation4], %s200
          %s203 = ssub.s32 128, 128
          %204 = vsyncadd %s198, %s203
          %s205 = smul.addr %s24, 128
          %s206 = scalar_lea.hbm %s0, %s205
          %s208 = sshll.u32 %s201, 4
          %s209 = int_to_ptr.vmem [resolvable:$true] %s208
          %211 = dma.hbm_to_vmem [thread:$0]  %s206, 128, %s209, %s198
        $region32: #{tpu_custom_call.1} parent=27 // pred_fallthru
          _
      $region28: #{tpu_custom_call.1} parent=5 // pred_fallthru
        _
      %p212 = scmp.le.s32.totalorder 1, %s17
      %p213 = scmp.lt.s32.totalorder %s17, 3
      %p214 = pnand %p212, %p213
      %p215 = pneg %p214
      // Predicated region
      $region33: #{tpu_custom_call.1} parent=5 // pred_check
        _
      $region34: #{tpu_custom_call.1} parent=5 // pred_check_branch
        %217 = sbr.rel (%p214) target = $region36
      $region35: #{tpu_custom_call.1} parent=5 // pred_region
        %s218 = ssub.s32 %s17, 1
        %s219 = sand.u32 %s42, 1
        %s220 = scalar_lea.sflag [#allocation5], %s219
        %s221 = sand.u32 %s42, 1
        %s222 = smul.addr %s221, 8
        %s223 = scalar_lea.vmem [#allocation4], %s222
        // Predicated region
        $region37: #{tpu_custom_call.1} parent=35 // pred_check
          %p224 = pneg %p55
        $region38: #{tpu_custom_call.1} parent=35 // pred_check_branch
          %226 = sbr.rel (%p224) target = $region40
        $region39: #{tpu_custom_call.1} parent=35 // pred_region
          %227 = dma.done %s220, 128
        $region40: #{tpu_custom_call.1} parent=35 // pred_fallthru
          _
        // Predicated region
        $region41: #{tpu_custom_call.1} parent=35 // pred_check
          %p228 = pneg %p76
        $region42: #{tpu_custom_call.1} parent=35 // pred_check_branch
          %230 = sbr.rel (%p228) target = $region44
        $region43: #{tpu_custom_call.1} parent=35 // pred_region
          %231 = dma.done [#allocation8], 512
        $region44: #{tpu_custom_call.1} parent=35 // pred_fallthru
          _
        // Predicated region
        $region45: #{tpu_custom_call.1} parent=35 // pred_check
          %p232 = pneg %p97
        $region46: #{tpu_custom_call.1} parent=35 // pred_check_branch
          %234 = sbr.rel (%p232) target = $region48
        $region47: #{tpu_custom_call.1} parent=35 // pred_region
          %235 = dma.done [#allocation8], 512
        $region48: #{tpu_custom_call.1} parent=35 // pred_fallthru
          _
        %s236 = sand.u32 %s42, 1
        %s237 = scalar_lea.sflag [#allocation5], %s236
        %s238 = sand.u32 %s42, 1
        %s239 = smul.addr %s238, 8
        %s240 = scalar_lea.vmem [#allocation4], %s239
        %p241 = pneg %p55
        %p242 = pneg %p52
        %p243 = pneg %p76
        %p244 = pneg %p73
        %p245 = pneg %p97
        %p246 = pneg %p94
        %p247 = pneg %p118
        %p248 = pneg %p115
        %p249 = pneg %p146
        %p250 = pneg %p143
        %s251 = sand.u32 %s133, 1
        %s252 = scalar_lea.sflag [#allocation6], %s251
        %s253 = sand.u32 %s133, 1
        %s254 = smul.addr %s253, 8
        %s255 = scalar_lea.vmem [#allocation10], %s254
        %p256 = scmp.eq.s32.totalorder %s27, 0
        // Predicated region
        $region49: #{tpu_custom_call.1} parent=35 // pred_check
          %p257 = pneg %p256
        $region50: #{tpu_custom_call.1} parent=35 // pred_check_branch
          %259 = sbr.rel (%p257) target = $region52
        $region51: #{tpu_custom_call.1} parent=35 // pred_region
          %v260 = vld [vmem:[%s223] sm:$0xff]
          %v261 = vld [vmem:[#allocation7] sm:$0xff]
          %v262 = vld [vmem:[#allocation7 + $0x8] sm:$0xff]
          %v263 = vld [vmem:[#allocation7 + $0x10] sm:$0xff]
          %v264 = vld [vmem:[#allocation7 + $0x18] sm:$0xff]
          %vm265 = vcmask 261120
          %v267 = vsel %vm265, %v260, 0
          %269 = vmatprep.subr.mxu0 0.0
          %270 = vmatpush1.msra.mxu0 %v261
          %271 = vmatprep.subr.mxu0 0.0
          %272 = vmatpush1.msra.mxu0 %v262
          %273 = vmatprep.subr.mxu0 0.0
          %274 = vmatpush1.msra.mxu0 %v263
          %275 = vmatprep.subr.mxu0 0.0
          %276 = vmatpush1.msra.mxu0 %v264
          %277 = vmatprep.subr.mxu0 0.0
          %278 = vmatpush1.msra.mxu0 0.0
          %279 = vmatprep.subr.mxu0 0.0
          %280 = vmatpush1.msra.mxu0 0.0
          %281 = vmatprep.subr.mxu0 0.0
          %282 = vmatpush1.msra.mxu0 0.0
          %283 = vmatprep.subr.mxu0 0.0
          %284 = vmatpush1.msra.mxu0 0.0
          %285 = vmatprep.subr.mxu0 0.0
          %286 = vmatpush1.msra.mxu0 0.0
          %287 = vmatprep.subr.mxu0 0.0
          %288 = vmatpush1.msra.mxu0 0.0
          %289 = vmatprep.subr.mxu0 0.0
          %290 = vmatpush1.msra.mxu0 0.0
          %291 = vmatprep.subr.mxu0 0.0
          %292 = vmatpush1.msra.mxu0 0.0
          %293 = vmatprep.subr.mxu0 0.0
          %294 = vmatpush1.msra.mxu0 0.0
          %295 = vmatprep.subr.mxu0 0.0
          %296 = vmatpush1.msra.mxu0 0.0
          %297 = vmatprep.subr.mxu0 0.0
          %298 = vmatpush1.msra.mxu0 0.0
          %299 = vmatprep.subr.mxu0 0.0
          %300 = vmatpush1.msra.mxu0 0.0
          %301 = vmatprep.subr.mxu0 0.0
          %302 = vmatpush1.msra.mxu0 0.0
          %303 = vmatprep.subr.mxu0 0.0
          %304 = vmatpush1.msra.mxu0 0.0
          %305 = vmatprep.subr.mxu0 0.0
          %306 = vmatpush1.msra.mxu0 0.0
          %307 = vmatprep.subr.mxu0 0.0
          %308 = vmatpush1.msra.mxu0 0.0
          %309 = vmatprep.subr.mxu0 0.0
          %310 = vmatpush1.msra.mxu0 0.0
          %311 = vmatprep.subr.mxu0 0.0
          %312 = vmatpush1.msra.mxu0 0.0
          %313 = vmatprep.subr.mxu0 0.0
          %314 = vmatpush1.msra.mxu0 0.0
          %315 = vmatprep.subr.mxu0 0.0
          %316 = vmatpush1.msra.mxu0 0.0
          %317 = vmatprep.subr.mxu0 0.0
          %318 = vmatpush1.msra.mxu0 0.0
          %319 = vmatprep.subr.mxu0 0.0
          %320 = vmatpush1.msra.mxu0 0.0
          %321 = vmatprep.subr.mxu0 0.0
          %322 = vmatpush1.msra.mxu0 0.0
          %323 = vmatprep.subr.mxu0 0.0
          %324 = vmatpush1.msra.mxu0 0.0
          %325 = vmatprep.subr.mxu0 0.0
          %326 = vmatpush1.msra.mxu0 0.0
          %327 = vmatprep.subr.mxu0 0.0
          %328 = vmatpush1.msra.mxu0 0.0
          %329 = vmatprep.subr.mxu0 0.0
          %330 = vmatpush1.msra.mxu0 0.0
          %331 = vmatprep.subr.mxu0 0.0
          %332 = vmatpush1.msra.mxu0 0.0
          %333 = vmatprep.mubr.f32.mxu0 0.0
          %334 = vmatmul.mubr.f32.gmra.mrb[0].mxu0 %v267
          %v335 = vpop.f32.mrb[0].mxu0
          %v336 = vadd.f32 0.0, %v335
          %v337 = vpop.f32.mrb[0].mxu0
          %338 = vdwg.mxu0
          %339 = vst.msk [vmem:[#allocation2] sm:$0xff] %vm265, %v336
          %v340 = vmul.f32 %v336, %v336
          %vm341 = vcmask 64512
          %v342 = vsel %vm341, %v340, 0.0
          %343 = vadd.xlane.f32.xlu0 %v342
          %v344 = vpop.xlane.xlu0 %343
          %v345 = vmul.f32 %v344, 0.35355338
          %346 = vxpose.xlu0.b32.start [1/16] %v345, 128
          %347 = vxpose.xlu0.b32.cont [2/16] 0.0, 128
          %348 = vxpose.xlu0.b32.cont [3/16] 0.0, 128
          %349 = vxpose.xlu0.b32.cont [4/16] 0.0, 128
          %350 = vxpose.xlu0.b32.cont [5/16] 0.0, 128
          %351 = vxpose.xlu0.b32.cont [6/16] 0.0, 128
          %352 = vxpose.xlu0.b32.cont [7/16] 0.0, 128
          %353 = vxpose.xlu0.b32.cont [8/16] 0.0, 128
          %354 = vxpose.xlu0.b32.cont [9/16] 0.0, 128
          %355 = vxpose.xlu0.b32.cont [10/16] 0.0, 128
          %356 = vxpose.xlu0.b32.cont [11/16] 0.0, 128
          %357 = vxpose.xlu0.b32.cont [12/16] 0.0, 128
          %358 = vxpose.xlu0.b32.cont [13/16] 0.0, 128
          %359 = vxpose.xlu0.b32.cont [14/16] 0.0, 128
          %360 = vxpose.xlu0.b32.cont [15/16] 0.0, 128
          %361 = vxpose.xlu0.b32.end [16/16] 0.0, 128
          %v362 = vpop.trf.xlu0
          %v363 = vpop.trf.xlu0
          %v364 = vpop.trf.xlu0
          %v365 = vpop.trf.xlu0
          %v366 = vpop.trf.xlu0
          %v367 = vpop.trf.xlu0
          %v368 = vpop.trf.xlu0
          %v369 = vpop.trf.xlu0
          %v370 = vpop.trf.xlu0
          %v371 = vpop.trf.xlu0
          %v372 = vpop.trf.xlu0
          %v373 = vpop.trf.xlu0
          %v374 = vpop.trf.xlu0
          %v375 = vpop.trf.xlu0
          %v376 = vpop.trf.xlu0
          %v377 = vpop.trf.xlu0
          %vm378 = vcmask 57344
          %379 = vst.msk [vmem:[#allocation3] sm:$0x1] %vm378, %v362
          %381 = vrot.lane.b32.xlu0 %v340, 120
          %v382 = vpop.permute.xlu0 %381
          %v384 = vsel %vm341, %v382, 0.0
          %385 = vadd.xlane.f32.xlu0 %v384
          %v386 = vpop.xlane.xlu0 %385
          %v387 = vmul.f32 %v386, 0.35355338
          %388 = vxpose.xlu0.b32.start [1/16] %v387, 128
          %389 = vxpose.xlu0.b32.cont [2/16] 0.0, 128
          %390 = vxpose.xlu0.b32.cont [3/16] 0.0, 128
          %391 = vxpose.xlu0.b32.cont [4/16] 0.0, 128
          %392 = vxpose.xlu0.b32.cont [5/16] 0.0, 128
          %393 = vxpose.xlu0.b32.cont [6/16] 0.0, 128
          %394 = vxpose.xlu0.b32.cont [7/16] 0.0, 128
          %395 = vxpose.xlu0.b32.cont [8/16] 0.0, 128
          %396 = vxpose.xlu0.b32.cont [9/16] 0.0, 128
          %397 = vxpose.xlu0.b32.cont [10/16] 0.0, 128
          %398 = vxpose.xlu0.b32.cont [11/16] 0.0, 128
          %399 = vxpose.xlu0.b32.cont [12/16] 0.0, 128
          %400 = vxpose.xlu0.b32.cont [13/16] 0.0, 128
          %401 = vxpose.xlu0.b32.cont [14/16] 0.0, 128
          %402 = vxpose.xlu0.b32.cont [15/16] 0.0, 128
          %403 = vxpose.xlu0.b32.end [16/16] 0.0, 128
          %v404 = vpop.trf.xlu0
          %v405 = vpop.trf.xlu0
          %v406 = vpop.trf.xlu0
          %v407 = vpop.trf.xlu0
          %v408 = vpop.trf.xlu0
          %v409 = vpop.trf.xlu0
          %v410 = vpop.trf.xlu0
          %v411 = vpop.trf.xlu0
          %v412 = vpop.trf.xlu0
          %v413 = vpop.trf.xlu0
          %v414 = vpop.trf.xlu0
          %v415 = vpop.trf.xlu0
          %v416 = vpop.trf.xlu0
          %v417 = vpop.trf.xlu0
          %v418 = vpop.trf.xlu0
          %v419 = vpop.trf.xlu0
          %420 = vst.msk [vmem:[#allocation3 + $0x1] sm:$0x1] %vm378, %v404
          %421 = vrot.lane.b32.xlu0 %v340, 112
          %v422 = vpop.permute.xlu0 %421
          %v424 = vsel %vm341, %v422, 0.0
          %425 = vadd.xlane.f32.xlu0 %v424
          %v426 = vpop.xlane.xlu0 %425
          %v427 = vmul.f32 %v426, 0.35355338
          %428 = vxpose.xlu0.b32.start [1/16] %v427, 128
          %429 = vxpose.xlu0.b32.cont [2/16] 0.0, 128
          %430 = vxpose.xlu0.b32.cont [3/16] 0.0, 128
          %431 = vxpose.xlu0.b32.cont [4/16] 0.0, 128
          %432 = vxpose.xlu0.b32.cont [5/16] 0.0, 128
          %433 = vxpose.xlu0.b32.cont [6/16] 0.0, 128
          %434 = vxpose.xlu0.b32.cont [7/16] 0.0, 128
          %435 = vxpose.xlu0.b32.cont [8/16] 0.0, 128
          %436 = vxpose.xlu0.b32.cont [9/16] 0.0, 128
          %437 = vxpose.xlu0.b32.cont [10/16] 0.0, 128
          %438 = vxpose.xlu0.b32.cont [11/16] 0.0, 128
          %439 = vxpose.xlu0.b32.cont [12/16] 0.0, 128
          %440 = vxpose.xlu0.b32.cont [13/16] 0.0, 128
          %441 = vxpose.xlu0.b32.cont [14/16] 0.0, 128
          %442 = vxpose.xlu0.b32.cont [15/16] 0.0, 128
          %443 = vxpose.xlu0.b32.end [16/16] 0.0, 128
          %v444 = vpop.trf.xlu0
          %v445 = vpop.trf.xlu0
          %v446 = vpop.trf.xlu0
          %v447 = vpop.trf.xlu0
          %v448 = vpop.trf.xlu0
          %v449 = vpop.trf.xlu0
          %v450 = vpop.trf.xlu0
          %v451 = vpop.trf.xlu0
          %v452 = vpop.trf.xlu0
          %v453 = vpop.trf.xlu0
          %v454 = vpop.trf.xlu0
          %v455 = vpop.trf.xlu0
          %v456 = vpop.trf.xlu0
          %v457 = vpop.trf.xlu0
          %v458 = vpop.trf.xlu0
          %v459 = vpop.trf.xlu0
          %460 = vst.msk [vmem:[#allocation3 + $0x2] sm:$0x1] %vm378, %v444
          %461 = vrot.lane.b32.xlu0 %v340, 104
          %v462 = vpop.permute.xlu0 %461
          %v464 = vsel %vm341, %v462, 0.0
          %465 = vadd.xlane.f32.xlu0 %v464
          %v466 = vpop.xlane.xlu0 %465
          %v467 = vmul.f32 %v466, 0.35355338
          %468 = vxpose.xlu0.b32.start [1/16] %v467, 128
          %469 = vxpose.xlu0.b32.cont [2/16] 0.0, 128
          %470 = vxpose.xlu0.b32.cont [3/16] 0.0, 128
          %471 = vxpose.xlu0.b32.cont [4/16] 0.0, 128
          %472 = vxpose.xlu0.b32.cont [5/16] 0.0, 128
          %473 = vxpose.xlu0.b32.cont [6/16] 0.0, 128
          %474 = vxpose.xlu0.b32.cont [7/16] 0.0, 128
          %475 = vxpose.xlu0.b32.cont [8/16] 0.0, 128
          %476 = vxpose.xlu0.b32.cont [9/16] 0.0, 128
          %477 = vxpose.xlu0.b32.cont [10/16] 0.0, 128
          %478 = vxpose.xlu0.b32.cont [11/16] 0.0, 128
          %479 = vxpose.xlu0.b32.cont [12/16] 0.0, 128
          %480 = vxpose.xlu0.b32.cont [13/16] 0.0, 128
          %481 = vxpose.xlu0.b32.cont [14/16] 0.0, 128
          %482 = vxpose.xlu0.b32.cont [15/16] 0.0, 128
          %483 = vxpose.xlu0.b32.end [16/16] 0.0, 128
          %v484 = vpop.trf.xlu0
          %v485 = vpop.trf.xlu0
          %v486 = vpop.trf.xlu0
          %v487 = vpop.trf.xlu0
          %v488 = vpop.trf.xlu0
          %v489 = vpop.trf.xlu0
          %v490 = vpop.trf.xlu0
          %v491 = vpop.trf.xlu0
          %v492 = vpop.trf.xlu0
          %v493 = vpop.trf.xlu0
          %v494 = vpop.trf.xlu0
          %v495 = vpop.trf.xlu0
          %v496 = vpop.trf.xlu0
          %v497 = vpop.trf.xlu0
          %v498 = vpop.trf.xlu0
          %v499 = vpop.trf.xlu0
          %500 = vst.msk [vmem:[#allocation3 + $0x3] sm:$0x1] %vm378, %v484
        $region52: #{tpu_custom_call.1} parent=35 // pred_fallthru
          _
        %v501 = vld [vmem:[#allocation2] sm:$0xff]
        %v502 = vmul.f32 %v501, 0.70710677
        %vm503 = vcmask 64512
        %v505 = vsel %vm503, %v502, 0
        %v508 = vsel %vm503, %v501, 0
        %510 = vmatprep.subr.mxu0 0.0
        %511 = vmatpush1.xpose.msra.mxu0 %v508
        %512 = vmatprep.subr.mxu0 0.0
        %513 = vmatpush1.xpose.msra.mxu0 0.0
        %514 = vmatprep.subr.mxu0 0.0
        %515 = vmatpush1.xpose.msra.mxu0 0.0
        %516 = vmatprep.subr.mxu0 0.0
        %517 = vmatpush1.xpose.msra.mxu0 0.0
        %518 = vmatprep.subr.mxu0 0.0
        %519 = vmatpush1.xpose.msra.mxu0 0.0
        %520 = vmatprep.subr.mxu0 0.0
        %521 = vmatpush1.xpose.msra.mxu0 0.0
        %522 = vmatprep.subr.mxu0 0.0
        %523 = vmatpush1.xpose.msra.mxu0 0.0
        %524 = vmatprep.subr.mxu0 0.0
        %525 = vmatpush1.xpose.msra.mxu0 0.0
        %526 = vmatprep.subr.mxu0 0.0
        %527 = vmatpush1.xpose.msra.mxu0 0.0
        %528 = vmatprep.subr.mxu0 0.0
        %529 = vmatpush1.xpose.msra.mxu0 0.0
        %530 = vmatprep.subr.mxu0 0.0
        %531 = vmatpush1.xpose.msra.mxu0 0.0
        %532 = vmatprep.subr.mxu0 0.0
        %533 = vmatpush1.xpose.msra.mxu0 0.0
        %534 = vmatprep.subr.mxu0 0.0
        %535 = vmatpush1.xpose.msra.mxu0 0.0
        %536 = vmatprep.subr.mxu0 0.0
        %537 = vmatpush1.xpose.msra.mxu0 0.0
        %538 = vmatprep.subr.mxu0 0.0
        %539 = vmatpush1.xpose.msra.mxu0 0.0
        %540 = vmatprep.subr.mxu0 0.0
        %541 = vmatpush1.xpose.msra.mxu0 0.0
        %542 = vmatprep.subr.mxu0 0.0
        %543 = vmatpush1.xpose.msra.mxu0 0.0
        %544 = vmatprep.subr.mxu0 0.0
        %545 = vmatpush1.xpose.msra.mxu0 0.0
        %546 = vmatprep.subr.mxu0 0.0
        %547 = vmatpush1.xpose.msra.mxu0 0.0
        %548 = vmatprep.subr.mxu0 0.0
        %549 = vmatpush1.xpose.msra.mxu0 0.0
        %550 = vmatprep.subr.mxu0 0.0
        %551 = vmatpush1.xpose.msra.mxu0 0.0
        %552 = vmatprep.subr.mxu0 0.0
        %553 = vmatpush1.xpose.msra.mxu0 0.0
        %554 = vmatprep.subr.mxu0 0.0
        %555 = vmatpush1.xpose.msra.mxu0 0.0
        %556 = vmatprep.subr.mxu0 0.0
        %557 = vmatpush1.xpose.msra.mxu0 0.0
        %558 = vmatprep.subr.mxu0 0.0
        %559 = vmatpush1.xpose.msra.mxu0 0.0
        %560 = vmatprep.subr.mxu0 0.0
        %561 = vmatpush1.xpose.msra.mxu0 0.0
        %562 = vmatprep.subr.mxu0 0.0
        %563 = vmatpush1.xpose.msra.mxu0 0.0
        %564 = vmatprep.subr.mxu0 0.0
        %565 = vmatpush1.xpose.msra.mxu0 0.0
        %566 = vmatprep.subr.mxu0 0.0
        %567 = vmatpush1.xpose.msra.mxu0 0.0
        %568 = vmatprep.subr.mxu0 0.0
        %569 = vmatpush1.xpose.msra.mxu0 0.0
        %570 = vmatprep.subr.mxu0 0.0
        %571 = vmatpush1.xpose.msra.mxu0 0.0
        %572 = vmatprep.subr.mxu0 0.0
        %573 = vmatpush1.xpose.msra.mxu0 0.0
        %574 = vmatprep.mubr.f32.mxu0 0.0
        %575 = vmatmul.mubr.f32.gmra.mrb[0].mxu0 %v505
        %v576 = vpop.f32.mrb[0].mxu0
        %v577 = vadd.f32 0.0, %v576
        %v578 = vpop.f32.mrb[0].mxu0
        %579 = vdwg.mxu0
        %v580 = vld [vmem:[#allocation3] sm:$0x1]
        %v581 = vlaneseq
        %v582 = vshrl.u32 %v581, 7
        %v583 = vsub.s32 0, %v582
        %v584 = vrot.slane %v580, %v583
        %v585 = vsub.f32 %v577, %v584
        %v586 = vsel %vm503, %v585, -inf
        %587 = vmax.xlane.f32.xlu0 %v586
        %v588 = vpop.xlane.xlu0 %587
        %v589 = vsub.f32 %v585, %v588
        %v590 = vmul.f32 %v589, 1.442695
        %v591 = vpow.pop %v590
        %v592 = vsel %vm503, %v591, 0.0
        %593 = vadd.xlane.f32.xlu0 %v592
        %v594 = vpop.xlane.xlu0 %593
        %v596 = vsel %vm503, %v591, 0
        %598 = vmatprep.subr.mxu0 0.0
        %599 = vmatpush1.msra.mxu0 %v501
        %600 = vmatprep.subr.mxu0 0.0
        %601 = vmatpush1.msra.mxu0 0.0
        %602 = vmatprep.subr.mxu0 0.0
        %603 = vmatpush1.msra.mxu0 0.0
        %604 = vmatprep.subr.mxu0 0.0
        %605 = vmatpush1.msra.mxu0 0.0
        %606 = vmatprep.subr.mxu0 0.0
        %607 = vmatpush1.msra.mxu0 0.0
        %608 = vmatprep.subr.mxu0 0.0
        %609 = vmatpush1.msra.mxu0 0.0
        %610 = vmatprep.subr.mxu0 0.0
        %611 = vmatpush1.msra.mxu0 0.0
        %612 = vmatprep.subr.mxu0 0.0
        %613 = vmatpush1.msra.mxu0 0.0
        %614 = vmatprep.subr.mxu0 0.0
        %615 = vmatpush1.msra.mxu0 0.0
        %616 = vmatprep.subr.mxu0 0.0
        %617 = vmatpush1.msra.mxu0 0.0
        %618 = vmatprep.subr.mxu0 0.0
        %619 = vmatpush1.msra.mxu0 0.0
        %620 = vmatprep.subr.mxu0 0.0
        %621 = vmatpush1.msra.mxu0 0.0
        %622 = vmatprep.subr.mxu0 0.0
        %623 = vmatpush1.msra.mxu0 0.0
        %624 = vmatprep.subr.mxu0 0.0
        %625 = vmatpush1.msra.mxu0 0.0
        %626 = vmatprep.subr.mxu0 0.0
        %627 = vmatpush1.msra.mxu0 0.0
        %628 = vmatprep.subr.mxu0 0.0
        %629 = vmatpush1.msra.mxu0 0.0
        %630 = vmatprep.subr.mxu0 0.0
        %631 = vmatpush1.msra.mxu0 0.0
        %632 = vmatprep.subr.mxu0 0.0
        %633 = vmatpush1.msra.mxu0 0.0
        %634 = vmatprep.subr.mxu0 0.0
        %635 = vmatpush1.msra.mxu0 0.0
        %636 = vmatprep.subr.mxu0 0.0
        %637 = vmatpush1.msra.mxu0 0.0
        %638 = vmatprep.subr.mxu0 0.0
        %639 = vmatpush1.msra.mxu0 0.0
        %640 = vmatprep.subr.mxu0 0.0
        %641 = vmatpush1.msra.mxu0 0.0
        %642 = vmatprep.subr.mxu0 0.0
        %643 = vmatpush1.msra.mxu0 0.0
        %644 = vmatprep.subr.mxu0 0.0
        %645 = vmatpush1.msra.mxu0 0.0
        %646 = vmatprep.subr.mxu0 0.0
        %647 = vmatpush1.msra.mxu0 0.0
        %648 = vmatprep.subr.mxu0 0.0
        %649 = vmatpush1.msra.mxu0 0.0
        %650 = vmatprep.subr.mxu0 0.0
        %651 = vmatpush1.msra.mxu0 0.0
        %652 = vmatprep.subr.mxu0 0.0
        %653 = vmatpush1.msra.mxu0 0.0
        %654 = vmatprep.subr.mxu0 0.0
        %655 = vmatpush1.msra.mxu0 0.0
        %656 = vmatprep.subr.mxu0 0.0
        %657 = vmatpush1.msra.mxu0 0.0
        %658 = vmatprep.subr.mxu0 0.0
        %659 = vmatpush1.msra.mxu0 0.0
        %660 = vmatprep.subr.mxu0 0.0
        %661 = vmatpush1.msra.mxu0 0.0
        %662 = vmatprep.mubr.f32.mxu0 0.0
        %663 = vmatmul.mubr.f32.gmra.mrb[0].mxu0 %v596
        %v664 = vpop.f32.mrb[0].mxu0
        %v665 = vadd.f32 0.0, %v664
        %v666 = vpop.f32.mrb[0].mxu0
        %667 = vdwg.mxu0
        %v668 = vrcp.pop %v594
        %v669 = vmul.f32 %v665, %v668
        %v670 = vld [vmem:[#allocation9] sm:$0xff]
        %671 = vrot.lane.b32.xlu0 %v502, 120
        %v672 = vpop.permute.xlu0 %671
        %673 = vrot.lane.b32.xlu0 %v501, 120
        %v674 = vpop.permute.xlu0 %673
        %v675 = vsel %vm503, %v672, 0
        %v677 = vsel %vm503, %v674, 0
        %679 = vmatprep.subr.mxu0 0.0
        %680 = vmatpush1.xpose.msra.mxu0 %v677
        %681 = vmatprep.subr.mxu0 0.0
        %682 = vmatpush1.xpose.msra.mxu0 0.0
        %683 = vmatprep.subr.mxu0 0.0
        %684 = vmatpush1.xpose.msra.mxu0 0.0
        %685 = vmatprep.subr.mxu0 0.0
        %686 = vmatpush1.xpose.msra.mxu0 0.0
        %687 = vmatprep.subr.mxu0 0.0
        %688 = vmatpush1.xpose.msra.mxu0 0.0
        %689 = vmatprep.subr.mxu0 0.0
        %690 = vmatpush1.xpose.msra.mxu0 0.0
        %691 = vmatprep.subr.mxu0 0.0
        %692 = vmatpush1.xpose.msra.mxu0 0.0
        %693 = vmatprep.subr.mxu0 0.0
        %694 = vmatpush1.xpose.msra.mxu0 0.0
        %695 = vmatprep.subr.mxu0 0.0
        %696 = vmatpush1.xpose.msra.mxu0 0.0
        %697 = vmatprep.subr.mxu0 0.0
        %698 = vmatpush1.xpose.msra.mxu0 0.0
        %699 = vmatprep.subr.mxu0 0.0
        %700 = vmatpush1.xpose.msra.mxu0 0.0
        %701 = vmatprep.subr.mxu0 0.0
        %702 = vmatpush1.xpose.msra.mxu0 0.0
        %703 = vmatprep.subr.mxu0 0.0
        %704 = vmatpush1.xpose.msra.mxu0 0.0
        %705 = vmatprep.subr.mxu0 0.0
        %706 = vmatpush1.xpose.msra.mxu0 0.0
        %707 = vmatprep.subr.mxu0 0.0
        %708 = vmatpush1.xpose.msra.mxu0 0.0
        %709 = vmatprep.subr.mxu0 0.0
        %710 = vmatpush1.xpose.msra.mxu0 0.0
        %711 = vmatprep.subr.mxu0 0.0
        %712 = vmatpush1.xpose.msra.mxu0 0.0
        %713 = vmatprep.subr.mxu0 0.0
        %714 = vmatpush1.xpose.msra.mxu0 0.0
        %715 = vmatprep.subr.mxu0 0.0
        %716 = vmatpush1.xpose.msra.mxu0 0.0
        %717 = vmatprep.subr.mxu0 0.0
        %718 = vmatpush1.xpose.msra.mxu0 0.0
        %719 = vmatprep.subr.mxu0 0.0
        %720 = vmatpush1.xpose.msra.mxu0 0.0
        %721 = vmatprep.subr.mxu0 0.0
        %722 = vmatpush1.xpose.msra.mxu0 0.0
        %723 = vmatprep.subr.mxu0 0.0
        %724 = vmatpush1.xpose.msra.mxu0 0.0
        %725 = vmatprep.subr.mxu0 0.0
        %726 = vmatpush1.xpose.msra.mxu0 0.0
        %727 = vmatprep.subr.mxu0 0.0
        %728 = vmatpush1.xpose.msra.mxu0 0.0
        %729 = vmatprep.subr.mxu0 0.0
        %730 = vmatpush1.xpose.msra.mxu0 0.0
        %731 = vmatprep.subr.mxu0 0.0
        %732 = vmatpush1.xpose.msra.mxu0 0.0
        %733 = vmatprep.subr.mxu0 0.0
        %734 = vmatpush1.xpose.msra.mxu0 0.0
        %735 = vmatprep.subr.mxu0 0.0
        %736 = vmatpush1.xpose.msra.mxu0 0.0
        %737 = vmatprep.subr.mxu0 0.0
        %738 = vmatpush1.xpose.msra.mxu0 0.0
        %739 = vmatprep.subr.mxu0 0.0
        %740 = vmatpush1.xpose.msra.mxu0 0.0
        %741 = vmatprep.subr.mxu0 0.0
        %742 = vmatpush1.xpose.msra.mxu0 0.0
        %743 = vmatprep.mubr.f32.mxu0 0.0
        %744 = vmatmul.mubr.f32.gmra.mrb[0].mxu0 %v675
        %v745 = vpop.f32.mrb[0].mxu0
        %v746 = vadd.f32 0.0, %v745
        %v747 = vpop.f32.mrb[0].mxu0
        %748 = vdwg.mxu0
        %v749 = vld [vmem:[#allocation3 + $0x1] sm:$0x1]
        %v750 = vlaneseq
        %v751 = vshrl.u32 %v750, 7
        %v752 = vsub.s32 0, %v751
        %v753 = vrot.slane %v749, %v752
        %v754 = vsub.f32 %v746, %v753
        %v755 = vsel %vm503, %v754, -inf
        %756 = vmax.xlane.f32.xlu0 %v755
        %v757 = vpop.xlane.xlu0 %756
        %v758 = vsub.f32 %v754, %v757
        %v759 = vmul.f32 %v758, 1.442695
        %v760 = vpow.pop %v759
        %v761 = vsel %vm503, %v760, 0.0
        %762 = vadd.xlane.f32.xlu0 %v761
        %v763 = vpop.xlane.xlu0 %762
        %v766 = vsel %vm503, %v760, 0
        %768 = vmatprep.subr.mxu0 0.0
        %769 = vmatpush1.msra.mxu0 %v674
        %770 = vmatprep.subr.mxu0 0.0
        %771 = vmatpush1.msra.mxu0 0.0
        %772 = vmatprep.subr.mxu0 0.0
        %773 = vmatpush1.msra.mxu0 0.0
        %774 = vmatprep.subr.mxu0 0.0
        %775 = vmatpush1.msra.mxu0 0.0
        %776 = vmatprep.subr.mxu0 0.0
        %777 = vmatpush1.msra.mxu0 0.0
        %778 = vmatprep.subr.mxu0 0.0
        %779 = vmatpush1.msra.mxu0 0.0
        %780 = vmatprep.subr.mxu0 0.0
        %781 = vmatpush1.msra.mxu0 0.0
        %782 = vmatprep.subr.mxu0 0.0
        %783 = vmatpush1.msra.mxu0 0.0
        %784 = vmatprep.subr.mxu0 0.0
        %785 = vmatpush1.msra.mxu0 0.0
        %786 = vmatprep.subr.mxu0 0.0
        %787 = vmatpush1.msra.mxu0 0.0
        %788 = vmatprep.subr.mxu0 0.0
        %789 = vmatpush1.msra.mxu0 0.0
        %790 = vmatprep.subr.mxu0 0.0
        %791 = vmatpush1.msra.mxu0 0.0
        %792 = vmatprep.subr.mxu0 0.0
        %793 = vmatpush1.msra.mxu0 0.0
        %794 = vmatprep.subr.mxu0 0.0
        %795 = vmatpush1.msra.mxu0 0.0
        %796 = vmatprep.subr.mxu0 0.0
        %797 = vmatpush1.msra.mxu0 0.0
        %798 = vmatprep.subr.mxu0 0.0
        %799 = vmatpush1.msra.mxu0 0.0
        %800 = vmatprep.subr.mxu0 0.0
        %801 = vmatpush1.msra.mxu0 0.0
        %802 = vmatprep.subr.mxu0 0.0
        %803 = vmatpush1.msra.mxu0 0.0
        %804 = vmatprep.subr.mxu0 0.0
        %805 = vmatpush1.msra.mxu0 0.0
        %806 = vmatprep.subr.mxu0 0.0
        %807 = vmatpush1.msra.mxu0 0.0
        %808 = vmatprep.subr.mxu0 0.0
        %809 = vmatpush1.msra.mxu0 0.0
        %810 = vmatprep.subr.mxu0 0.0
        %811 = vmatpush1.msra.mxu0 0.0
        %812 = vmatprep.subr.mxu0 0.0
        %813 = vmatpush1.msra.mxu0 0.0
        %814 = vmatprep.subr.mxu0 0.0
        %815 = vmatpush1.msra.mxu0 0.0
        %816 = vmatprep.subr.mxu0 0.0
        %817 = vmatpush1.msra.mxu0 0.0
        %818 = vmatprep.subr.mxu0 0.0
        %819 = vmatpush1.msra.mxu0 0.0
        %820 = vmatprep.subr.mxu0 0.0
        %821 = vmatpush1.msra.mxu0 0.0
        %822 = vmatprep.subr.mxu0 0.0
        %823 = vmatpush1.msra.mxu0 0.0
        %824 = vmatprep.subr.mxu0 0.0
        %825 = vmatpush1.msra.mxu0 0.0
        %826 = vmatprep.subr.mxu0 0.0
        %827 = vmatpush1.msra.mxu0 0.0
        %828 = vmatprep.subr.mxu0 0.0
        %829 = vmatpush1.msra.mxu0 0.0
        %830 = vmatprep.subr.mxu0 0.0
        %831 = vmatpush1.msra.mxu0 0.0
        %832 = vmatprep.mubr.f32.mxu0 0.0
        %833 = vmatmul.mubr.f32.gmra.mrb[0].mxu0 %v766
        %v834 = vpop.f32.mrb[0].mxu0
        %v835 = vadd.f32 0.0, %v834
        %v836 = vpop.f32.mrb[0].mxu0
        %837 = vdwg.mxu0
        %v838 = vrcp.pop %v763
        %v839 = vmul.f32 %v835, %v838
        %v840 = vld [vmem:[#allocation9 + $0x8] sm:$0xff]
        %v842 = vsel %vm503, %v839, 0
        %844 = vmatprep.subr.mxu0 0.0
        %845 = vmatpush1.msra.mxu0 %v840
        %846 = vmatprep.subr.mxu0 0.0
        %847 = vmatpush1.msra.mxu0 0.0
        %848 = vmatprep.subr.mxu0 0.0
        %849 = vmatpush1.msra.mxu0 0.0
        %850 = vmatprep.subr.mxu0 0.0
        %851 = vmatpush1.msra.mxu0 0.0
        %852 = vmatprep.subr.mxu0 0.0
        %853 = vmatpush1.msra.mxu0 0.0
        %854 = vmatprep.subr.mxu0 0.0
        %855 = vmatpush1.msra.mxu0 0.0
        %856 = vmatprep.subr.mxu0 0.0
        %857 = vmatpush1.msra.mxu0 0.0
        %858 = vmatprep.subr.mxu0 0.0
        %859 = vmatpush1.msra.mxu0 0.0
        %860 = vmatprep.subr.mxu0 0.0
        %861 = vmatpush1.msra.mxu0 0.0
        %862 = vmatprep.subr.mxu0 0.0
        %863 = vmatpush1.msra.mxu0 0.0
        %864 = vmatprep.subr.mxu0 0.0
        %865 = vmatpush1.msra.mxu0 0.0
        %866 = vmatprep.subr.mxu0 0.0
        %867 = vmatpush1.msra.mxu0 0.0
        %868 = vmatprep.subr.mxu0 0.0
        %869 = vmatpush1.msra.mxu0 0.0
        %870 = vmatprep.subr.mxu0 0.0
        %871 = vmatpush1.msra.mxu0 0.0
        %872 = vmatprep.subr.mxu0 0.0
        %873 = vmatpush1.msra.mxu0 0.0
        %874 = vmatprep.subr.mxu0 0.0
        %875 = vmatpush1.msra.mxu0 0.0
        %876 = vmatprep.subr.mxu0 0.0
        %877 = vmatpush1.msra.mxu0 0.0
        %878 = vmatprep.subr.mxu0 0.0
        %879 = vmatpush1.msra.mxu0 0.0
        %880 = vmatprep.subr.mxu0 0.0
        %881 = vmatpush1.msra.mxu0 0.0
        %882 = vmatprep.subr.mxu0 0.0
        %883 = vmatpush1.msra.mxu0 0.0
        %884 = vmatprep.subr.mxu0 0.0
        %885 = vmatpush1.msra.mxu0 0.0
        %886 = vmatprep.subr.mxu0 0.0
        %887 = vmatpush1.msra.mxu0 0.0
        %888 = vmatprep.subr.mxu0 0.0
        %889 = vmatpush1.msra.mxu0 0.0
        %890 = vmatprep.subr.mxu0 0.0
        %891 = vmatpush1.msra.mxu0 0.0
        %892 = vmatprep.subr.mxu0 0.0
        %893 = vmatpush1.msra.mxu0 0.0
        %894 = vmatprep.subr.mxu0 0.0
        %895 = vmatpush1.msra.mxu0 0.0
        %896 = vmatprep.subr.mxu0 0.0
        %897 = vmatpush1.msra.mxu0 0.0
        %898 = vmatprep.subr.mxu0 0.0
        %899 = vmatpush1.msra.mxu0 0.0
        %900 = vmatprep.subr.mxu0 0.0
        %901 = vmatpush1.msra.mxu0 0.0
        %902 = vmatprep.subr.mxu0 0.0
        %903 = vmatpush1.msra.mxu0 0.0
        %904 = vmatprep.subr.mxu0 0.0
        %905 = vmatpush1.msra.mxu0 0.0
        %906 = vmatprep.subr.mxu0 0.0
        %907 = vmatpush1.msra.mxu0 0.0
        %908 = vmatprep.mubr.f32.mxu0 0.0
        %909 = vmatmul.mubr.f32.gmra.mrb[0].mxu0 %v842
        %v910 = vpop.f32.mrb[0].mxu0
        %v911 = vadd.f32 0.0, %v910
        %v912 = vpop.f32.mrb[0].mxu0
        %913 = vdwg.mxu0
        %v915 = vsel %vm503, %v669, 0
        %917 = vmatprep.subr.mxu0 0.0
        %918 = vmatpush1.msra.mxu0 %v670
        %919 = vmatprep.subr.mxu0 0.0
        %920 = vmatpush1.msra.mxu0 0.0
        %921 = vmatprep.subr.mxu0 0.0
        %922 = vmatpush1.msra.mxu0 0.0
        %923 = vmatprep.subr.mxu0 0.0
        %924 = vmatpush1.msra.mxu0 0.0
        %925 = vmatprep.subr.mxu0 0.0
        %926 = vmatpush1.msra.mxu0 0.0
        %927 = vmatprep.subr.mxu0 0.0
        %928 = vmatpush1.msra.mxu0 0.0
        %929 = vmatprep.subr.mxu0 0.0
        %930 = vmatpush1.msra.mxu0 0.0
        %931 = vmatprep.subr.mxu0 0.0
        %932 = vmatpush1.msra.mxu0 0.0
        %933 = vmatprep.subr.mxu0 0.0
        %934 = vmatpush1.msra.mxu0 0.0
        %935 = vmatprep.subr.mxu0 0.0
        %936 = vmatpush1.msra.mxu0 0.0
        %937 = vmatprep.subr.mxu0 0.0
        %938 = vmatpush1.msra.mxu0 0.0
        %939 = vmatprep.subr.mxu0 0.0
        %940 = vmatpush1.msra.mxu0 0.0
        %941 = vmatprep.subr.mxu0 0.0
        %942 = vmatpush1.msra.mxu0 0.0
        %943 = vmatprep.subr.mxu0 0.0
        %944 = vmatpush1.msra.mxu0 0.0
        %945 = vmatprep.subr.mxu0 0.0
        %946 = vmatpush1.msra.mxu0 0.0
        %947 = vmatprep.subr.mxu0 0.0
        %948 = vmatpush1.msra.mxu0 0.0
        %949 = vmatprep.subr.mxu0 0.0
        %950 = vmatpush1.msra.mxu0 0.0
        %951 = vmatprep.subr.mxu0 0.0
        %952 = vmatpush1.msra.mxu0 0.0
        %953 = vmatprep.subr.mxu0 0.0
        %954 = vmatpush1.msra.mxu0 0.0
        %955 = vmatprep.subr.mxu0 0.0
        %956 = vmatpush1.msra.mxu0 0.0
        %957 = vmatprep.subr.mxu0 0.0
        %958 = vmatpush1.msra.mxu0 0.0
        %959 = vmatprep.subr.mxu0 0.0
        %960 = vmatpush1.msra.mxu0 0.0
        %961 = vmatprep.subr.mxu0 0.0
        %962 = vmatpush1.msra.mxu0 0.0
        %963 = vmatprep.subr.mxu0 0.0
        %964 = vmatpush1.msra.mxu0 0.0
        %965 = vmatprep.subr.mxu0 0.0
        %966 = vmatpush1.msra.mxu0 0.0
        %967 = vmatprep.subr.mxu0 0.0
        %968 = vmatpush1.msra.mxu0 0.0
        %969 = vmatprep.subr.mxu0 0.0
        %970 = vmatpush1.msra.mxu0 0.0
        %971 = vmatprep.subr.mxu0 0.0
        %972 = vmatpush1.msra.mxu0 0.0
        %973 = vmatprep.subr.mxu0 0.0
        %974 = vmatpush1.msra.mxu0 0.0
        %975 = vmatprep.subr.mxu0 0.0
        %976 = vmatpush1.msra.mxu0 0.0
        %977 = vmatprep.subr.mxu0 0.0
        %978 = vmatpush1.msra.mxu0 0.0
        %979 = vmatprep.subr.mxu0 0.0
        %980 = vmatpush1.msra.mxu0 0.0
        %981 = vmatprep.mubr.f32.mxu0 0.0
        %982 = vmatmul.mubr.f32.gmra.mrb[0].mxu0 %v915
        %v983 = vpop.f32.mrb[0].mxu0
        %v984 = vadd.f32 %v911, %v983
        %v985 = vpop.f32.mrb[0].mxu0
        %986 = vdwg.mxu0
        %987 = vrot.lane.b32.xlu0 %v502, 112
        %v988 = vpop.permute.xlu0 %987
        %989 = vrot.lane.b32.xlu0 %v501, 112
        %v990 = vpop.permute.xlu0 %989
        %v991 = vsel %vm503, %v988, 0
        %v993 = vsel %vm503, %v990, 0
        %995 = vmatprep.subr.mxu0 0.0
        %996 = vmatpush1.xpose.msra.mxu0 %v993
        %997 = vmatprep.subr.mxu0 0.0
        %998 = vmatpush1.xpose.msra.mxu0 0.0
        %999 = vmatprep.subr.mxu0 0.0
        %1000 = vmatpush1.xpose.msra.mxu0 0.0
        %1001 = vmatprep.subr.mxu0 0.0
        %1002 = vmatpush1.xpose.msra.mxu0 0.0
        %1003 = vmatprep.subr.mxu0 0.0
        %1004 = vmatpush1.xpose.msra.mxu0 0.0
        %1005 = vmatprep.subr.mxu0 0.0
        %1006 = vmatpush1.xpose.msra.mxu0 0.0
        %1007 = vmatprep.subr.mxu0 0.0
        %1008 = vmatpush1.xpose.msra.mxu0 0.0
        %1009 = vmatprep.subr.mxu0 0.0
        %1010 = vmatpush1.xpose.msra.mxu0 0.0
        %1011 = vmatprep.subr.mxu0 0.0
        %1012 = vmatpush1.xpose.msra.mxu0 0.0
        %1013 = vmatprep.subr.mxu0 0.0
        %1014 = vmatpush1.xpose.msra.mxu0 0.0
        %1015 = vmatprep.subr.mxu0 0.0
        %1016 = vmatpush1.xpose.msra.mxu0 0.0
        %1017 = vmatprep.subr.mxu0 0.0
        %1018 = vmatpush1.xpose.msra.mxu0 0.0
        %1019 = vmatprep.subr.mxu0 0.0
        %1020 = vmatpush1.xpose.msra.mxu0 0.0
        %1021 = vmatprep.subr.mxu0 0.0
        %1022 = vmatpush1.xpose.msra.mxu0 0.0
        %1023 = vmatprep.subr.mxu0 0.0
        %1024 = vmatpush1.xpose.msra.mxu0 0.0
        %1025 = vmatprep.subr.mxu0 0.0
        %1026 = vmatpush1.xpose.msra.mxu0 0.0
        %1027 = vmatprep.subr.mxu0 0.0
        %1028 = vmatpush1.xpose.msra.mxu0 0.0
        %1029 = vmatprep.subr.mxu0 0.0
        %1030 = vmatpush1.xpose.msra.mxu0 0.0
        %1031 = vmatprep.subr.mxu0 0.0
        %1032 = vmatpush1.xpose.msra.mxu0 0.0
        %1033 = vmatprep.subr.mxu0 0.0
        %1034 = vmatpush1.xpose.msra.mxu0 0.0
        %1035 = vmatprep.subr.mxu0 0.0
        %1036 = vmatpush1.xpose.msra.mxu0 0.0
        %1037 = vmatprep.subr.mxu0 0.0
        %1038 = vmatpush1.xpose.msra.mxu0 0.0
        %1039 = vmatprep.subr.mxu0 0.0
        %1040 = vmatpush1.xpose.msra.mxu0 0.0
        %1041 = vmatprep.subr.mxu0 0.0
        %1042 = vmatpush1.xpose.msra.mxu0 0.0
        %1043 = vmatprep.subr.mxu0 0.0
        %1044 = vmatpush1.xpose.msra.mxu0 0.0
        %1045 = vmatprep.subr.mxu0 0.0
        %1046 = vmatpush1.xpose.msra.mxu0 0.0
        %1047 = vmatprep.subr.mxu0 0.0
        %1048 = vmatpush1.xpose.msra.mxu0 0.0
        %1049 = vmatprep.subr.mxu0 0.0
        %1050 = vmatpush1.xpose.msra.mxu0 0.0
        %1051 = vmatprep.subr.mxu0 0.0
        %1052 = vmatpush1.xpose.msra.mxu0 0.0
        %1053 = vmatprep.subr.mxu0 0.0
        %1054 = vmatpush1.xpose.msra.mxu0 0.0
        %1055 = vmatprep.subr.mxu0 0.0
        %1056 = vmatpush1.xpose.msra.mxu0 0.0
        %1057 = vmatprep.subr.mxu0 0.0
        %1058 = vmatpush1.xpose.msra.mxu0 0.0
        %1059 = vmatprep.mubr.f32.mxu0 0.0
        %1060 = vmatmul.mubr.f32.gmra.mrb[0].mxu0 %v991
        %v1061 = vpop.f32.mrb[0].mxu0
        %v1062 = vadd.f32 0.0, %v1061
        %v1063 = vpop.f32.mrb[0].mxu0
        %1064 = vdwg.mxu0
        %v1065 = vld [vmem:[#allocation3 + $0x2] sm:$0x1]
        %v1066 = vlaneseq
        %v1067 = vshrl.u32 %v1066, 7
        %v1068 = vsub.s32 0, %v1067
        %v1069 = vrot.slane %v1065, %v1068
        %v1070 = vsub.f32 %v1062, %v1069
        %v1071 = vsel %vm503, %v1070, -inf
        %1072 = vmax.xlane.f32.xlu0 %v1071
        %v1073 = vpop.xlane.xlu0 %1072
        %v1074 = vsub.f32 %v1070, %v1073
        %v1075 = vmul.f32 %v1074, 1.442695
        %v1076 = vpow.pop %v1075
        %v1077 = vsel %vm503, %v1076, 0.0
        %1078 = vadd.xlane.f32.xlu0 %v1077
        %v1079 = vpop.xlane.xlu0 %1078
        %v1082 = vsel %vm503, %v1076, 0
        %1084 = vmatprep.subr.mxu0 0.0
        %1085 = vmatpush1.msra.mxu0 %v990
        %1086 = vmatprep.subr.mxu0 0.0
        %1087 = vmatpush1.msra.mxu0 0.0
        %1088 = vmatprep.subr.mxu0 0.0
        %1089 = vmatpush1.msra.mxu0 0.0
        %1090 = vmatprep.subr.mxu0 0.0
        %1091 = vmatpush1.msra.mxu0 0.0
        %1092 = vmatprep.subr.mxu0 0.0
        %1093 = vmatpush1.msra.mxu0 0.0
        %1094 = vmatprep.subr.mxu0 0.0
        %1095 = vmatpush1.msra.mxu0 0.0
        %1096 = vmatprep.subr.mxu0 0.0
        %1097 = vmatpush1.msra.mxu0 0.0
        %1098 = vmatprep.subr.mxu0 0.0
        %1099 = vmatpush1.msra.mxu0 0.0
        %1100 = vmatprep.subr.mxu0 0.0
        %1101 = vmatpush1.msra.mxu0 0.0
        %1102 = vmatprep.subr.mxu0 0.0
        %1103 = vmatpush1.msra.mxu0 0.0
        %1104 = vmatprep.subr.mxu0 0.0
        %1105 = vmatpush1.msra.mxu0 0.0
        %1106 = vmatprep.subr.mxu0 0.0
        %1107 = vmatpush1.msra.mxu0 0.0
        %1108 = vmatprep.subr.mxu0 0.0
        %1109 = vmatpush1.msra.mxu0 0.0
        %1110 = vmatprep.subr.mxu0 0.0
        %1111 = vmatpush1.msra.mxu0 0.0
        %1112 = vmatprep.subr.mxu0 0.0
        %1113 = vmatpush1.msra.mxu0 0.0
        %1114 = vmatprep.subr.mxu0 0.0
        %1115 = vmatpush1.msra.mxu0 0.0
        %1116 = vmatprep.subr.mxu0 0.0
        %1117 = vmatpush1.msra.mxu0 0.0
        %1118 = vmatprep.subr.mxu0 0.0
        %1119 = vmatpush1.msra.mxu0 0.0
        %1120 = vmatprep.subr.mxu0 0.0
        %1121 = vmatpush1.msra.mxu0 0.0
        %1122 = vmatprep.subr.mxu0 0.0
        %1123 = vmatpush1.msra.mxu0 0.0
        %1124 = vmatprep.subr.mxu0 0.0
        %1125 = vmatpush1.msra.mxu0 0.0
        %1126 = vmatprep.subr.mxu0 0.0
        %1127 = vmatpush1.msra.mxu0 0.0
        %1128 = vmatprep.subr.mxu0 0.0
        %1129 = vmatpush1.msra.mxu0 0.0
        %1130 = vmatprep.subr.mxu0 0.0
        %1131 = vmatpush1.msra.mxu0 0.0
        %1132 = vmatprep.subr.mxu0 0.0
        %1133 = vmatpush1.msra.mxu0 0.0
        %1134 = vmatprep.subr.mxu0 0.0
        %1135 = vmatpush1.msra.mxu0 0.0
        %1136 = vmatprep.subr.mxu0 0.0
        %1137 = vmatpush1.msra.mxu0 0.0
        %1138 = vmatprep.subr.mxu0 0.0
        %1139 = vmatpush1.msra.mxu0 0.0
        %1140 = vmatprep.subr.mxu0 0.0
        %1141 = vmatpush1.msra.mxu0 0.0
        %1142 = vmatprep.subr.mxu0 0.0
        %1143 = vmatpush1.msra.mxu0 0.0
        %1144 = vmatprep.subr.mxu0 0.0
        %1145 = vmatpush1.msra.mxu0 0.0
        %1146 = vmatprep.subr.mxu0 0.0
        %1147 = vmatpush1.msra.mxu0 0.0
        %1148 = vmatprep.mubr.f32.mxu0 0.0
        %1149 = vmatmul.mubr.f32.gmra.mrb[0].mxu0 %v1082
        %v1150 = vpop.f32.mrb[0].mxu0
        %v1151 = vadd.f32 0.0, %v1150
        %v1152 = vpop.f32.mrb[0].mxu0
        %1153 = vdwg.mxu0
        %v1154 = vrcp.pop %v1079
        %v1155 = vmul.f32 %v1151, %v1154
        %v1156 = vld [vmem:[#allocation9 + $0x10] sm:$0xff]
        %v1158 = vsel %vm503, %v1155, 0
        %1160 = vmatprep.subr.mxu0 0.0
        %1161 = vmatpush1.msra.mxu0 %v1156
        %1162 = vmatprep.subr.mxu0 0.0
        %1163 = vmatpush1.msra.mxu0 0.0
        %1164 = vmatprep.subr.mxu0 0.0
        %1165 = vmatpush1.msra.mxu0 0.0
        %1166 = vmatprep.subr.mxu0 0.0
        %1167 = vmatpush1.msra.mxu0 0.0
        %1168 = vmatprep.subr.mxu0 0.0
        %1169 = vmatpush1.msra.mxu0 0.0
        %1170 = vmatprep.subr.mxu0 0.0
        %1171 = vmatpush1.msra.mxu0 0.0
        %1172 = vmatprep.subr.mxu0 0.0
        %1173 = vmatpush1.msra.mxu0 0.0
        %1174 = vmatprep.subr.mxu0 0.0
        %1175 = vmatpush1.msra.mxu0 0.0
        %1176 = vmatprep.subr.mxu0 0.0
        %1177 = vmatpush1.msra.mxu0 0.0
        %1178 = vmatprep.subr.mxu0 0.0
        %1179 = vmatpush1.msra.mxu0 0.0
        %1180 = vmatprep.subr.mxu0 0.0
        %1181 = vmatpush1.msra.mxu0 0.0
        %1182 = vmatprep.subr.mxu0 0.0
        %1183 = vmatpush1.msra.mxu0 0.0
        %1184 = vmatprep.subr.mxu0 0.0
        %1185 = vmatpush1.msra.mxu0 0.0
        %1186 = vmatprep.subr.mxu0 0.0
        %1187 = vmatpush1.msra.mxu0 0.0
        %1188 = vmatprep.subr.mxu0 0.0
        %1189 = vmatpush1.msra.mxu0 0.0
        %1190 = vmatprep.subr.mxu0 0.0
        %1191 = vmatpush1.msra.mxu0 0.0
        %1192 = vmatprep.subr.mxu0 0.0
        %1193 = vmatpush1.msra.mxu0 0.0
        %1194 = vmatprep.subr.mxu0 0.0
        %1195 = vmatpush1.msra.mxu0 0.0
        %1196 = vmatprep.subr.mxu0 0.0
        %1197 = vmatpush1.msra.mxu0 0.0
        %1198 = vmatprep.subr.mxu0 0.0
        %1199 = vmatpush1.msra.mxu0 0.0
        %1200 = vmatprep.subr.mxu0 0.0
        %1201 = vmatpush1.msra.mxu0 0.0
        %1202 = vmatprep.subr.mxu0 0.0
        %1203 = vmatpush1.msra.mxu0 0.0
        %1204 = vmatprep.subr.mxu0 0.0
        %1205 = vmatpush1.msra.mxu0 0.0
        %1206 = vmatprep.subr.mxu0 0.0
        %1207 = vmatpush1.msra.mxu0 0.0
        %1208 = vmatprep.subr.mxu0 0.0
        %1209 = vmatpush1.msra.mxu0 0.0
        %1210 = vmatprep.subr.mxu0 0.0
        %1211 = vmatpush1.msra.mxu0 0.0
        %1212 = vmatprep.subr.mxu0 0.0
        %1213 = vmatpush1.msra.mxu0 0.0
        %1214 = vmatprep.subr.mxu0 0.0
        %1215 = vmatpush1.msra.mxu0 0.0
        %1216 = vmatprep.subr.mxu0 0.0
        %1217 = vmatpush1.msra.mxu0 0.0
        %1218 = vmatprep.subr.mxu0 0.0
        %1219 = vmatpush1.msra.mxu0 0.0
        %1220 = vmatprep.subr.mxu0 0.0
        %1221 = vmatpush1.msra.mxu0 0.0
        %1222 = vmatprep.subr.mxu0 0.0
        %1223 = vmatpush1.msra.mxu0 0.0
        %1224 = vmatprep.mubr.f32.mxu0 0.0
        %1225 = vmatmul.mubr.f32.gmra.mrb[0].mxu0 %v1158
        %v1226 = vpop.f32.mrb[0].mxu0
        %v1227 = vadd.f32 0.0, %v1226
        %v1228 = vpop.f32.mrb[0].mxu0
        %1229 = vdwg.mxu0
        %v1230 = vadd.f32 %v984, %v1227
        %1231 = vrot.lane.b32.xlu0 %v502, 104
        %v1232 = vpop.permute.xlu0 %1231
        %1233 = vrot.lane.b32.xlu0 %v501, 104
        %v1234 = vpop.permute.xlu0 %1233
        %v1235 = vsel %vm503, %v1232, 0
        %v1237 = vsel %vm503, %v1234, 0
        %1239 = vmatprep.subr.mxu0 0.0
        %1240 = vmatpush1.xpose.msra.mxu0 %v1237
        %1241 = vmatprep.subr.mxu0 0.0
        %1242 = vmatpush1.xpose.msra.mxu0 0.0
        %1243 = vmatprep.subr.mxu0 0.0
        %1244 = vmatpush1.xpose.msra.mxu0 0.0
        %1245 = vmatprep.subr.mxu0 0.0
        %1246 = vmatpush1.xpose.msra.mxu0 0.0
        %1247 = vmatprep.subr.mxu0 0.0
        %1248 = vmatpush1.xpose.msra.mxu0 0.0
        %1249 = vmatprep.subr.mxu0 0.0
        %1250 = vmatpush1.xpose.msra.mxu0 0.0
        %1251 = vmatprep.subr.mxu0 0.0
        %1252 = vmatpush1.xpose.msra.mxu0 0.0
        %1253 = vmatprep.subr.mxu0 0.0
        %1254 = vmatpush1.xpose.msra.mxu0 0.0
        %1255 = vmatprep.subr.mxu0 0.0
        %1256 = vmatpush1.xpose.msra.mxu0 0.0
        %1257 = vmatprep.subr.mxu0 0.0
        %1258 = vmatpush1.xpose.msra.mxu0 0.0
        %1259 = vmatprep.subr.mxu0 0.0
        %1260 = vmatpush1.xpose.msra.mxu0 0.0
        %1261 = vmatprep.subr.mxu0 0.0
        %1262 = vmatpush1.xpose.msra.mxu0 0.0
        %1263 = vmatprep.subr.mxu0 0.0
        %1264 = vmatpush1.xpose.msra.mxu0 0.0
        %1265 = vmatprep.subr.mxu0 0.0
        %1266 = vmatpush1.xpose.msra.mxu0 0.0
        %1267 = vmatprep.subr.mxu0 0.0
        %1268 = vmatpush1.xpose.msra.mxu0 0.0
        %1269 = vmatprep.subr.mxu0 0.0
        %1270 = vmatpush1.xpose.msra.mxu0 0.0
        %1271 = vmatprep.subr.mxu0 0.0
        %1272 = vmatpush1.xpose.msra.mxu0 0.0
        %1273 = vmatprep.subr.mxu0 0.0
        %1274 = vmatpush1.xpose.msra.mxu0 0.0
        %1275 = vmatprep.subr.mxu0 0.0
        %1276 = vmatpush1.xpose.msra.mxu0 0.0
        %1277 = vmatprep.subr.mxu0 0.0
        %1278 = vmatpush1.xpose.msra.mxu0 0.0
        %1279 = vmatprep.subr.mxu0 0.0
        %1280 = vmatpush1.xpose.msra.mxu0 0.0
        %1281 = vmatprep.subr.mxu0 0.0
        %1282 = vmatpush1.xpose.msra.mxu0 0.0
        %1283 = vmatprep.subr.mxu0 0.0
        %1284 = vmatpush1.xpose.msra.mxu0 0.0
        %1285 = vmatprep.subr.mxu0 0.0
        %1286 = vmatpush1.xpose.msra.mxu0 0.0
        %1287 = vmatprep.subr.mxu0 0.0
        %1288 = vmatpush1.xpose.msra.mxu0 0.0
        %1289 = vmatprep.subr.mxu0 0.0
        %1290 = vmatpush1.xpose.msra.mxu0 0.0
        %1291 = vmatprep.subr.mxu0 0.0
        %1292 = vmatpush1.xpose.msra.mxu0 0.0
        %1293 = vmatprep.subr.mxu0 0.0
        %1294 = vmatpush1.xpose.msra.mxu0 0.0
        %1295 = vmatprep.subr.mxu0 0.0
        %1296 = vmatpush1.xpose.msra.mxu0 0.0
        %1297 = vmatprep.subr.mxu0 0.0
        %1298 = vmatpush1.xpose.msra.mxu0 0.0
        %1299 = vmatprep.subr.mxu0 0.0
        %1300 = vmatpush1.xpose.msra.mxu0 0.0
        %1301 = vmatprep.subr.mxu0 0.0
        %1302 = vmatpush1.xpose.msra.mxu0 0.0
        %1303 = vmatprep.mubr.f32.mxu0 0.0
        %1304 = vmatmul.mubr.f32.gmra.mrb[0].mxu0 %v1235
        %v1305 = vpop.f32.mrb[0].mxu0
        %v1306 = vadd.f32 0.0, %v1305
        %v1307 = vpop.f32.mrb[0].mxu0
        %1308 = vdwg.mxu0
        %v1309 = vld [vmem:[#allocation3 + $0x3] sm:$0x1]
        %v1310 = vlaneseq
        %v1311 = vshrl.u32 %v1310, 7
        %v1312 = vsub.s32 0, %v1311
        %v1313 = vrot.slane %v1309, %v1312
        %v1314 = vsub.f32 %v1306, %v1313
        %v1315 = vsel %vm503, %v1314, -inf
        %1316 = vmax.xlane.f32.xlu0 %v1315
        %v1317 = vpop.xlane.xlu0 %1316
        %v1318 = vsub.f32 %v1314, %v1317
        %v1319 = vmul.f32 %v1318, 1.442695
        %v1320 = vpow.pop %v1319
        %v1321 = vsel %vm503, %v1320, 0.0
        %1322 = vadd.xlane.f32.xlu0 %v1321
        %v1323 = vpop.xlane.xlu0 %1322
        %v1326 = vsel %vm503, %v1320, 0
        %1328 = vmatprep.subr.mxu0 0.0
        %1329 = vmatpush1.msra.mxu0 %v1234
        %1330 = vmatprep.subr.mxu0 0.0
        %1331 = vmatpush1.msra.mxu0 0.0
        %1332 = vmatprep.subr.mxu0 0.0
        %1333 = vmatpush1.msra.mxu0 0.0
        %1334 = vmatprep.subr.mxu0 0.0
        %1335 = vmatpush1.msra.mxu0 0.0
        %1336 = vmatprep.subr.mxu0 0.0
        %1337 = vmatpush1.msra.mxu0 0.0
        %1338 = vmatprep.subr.mxu0 0.0
        %1339 = vmatpush1.msra.mxu0 0.0
        %1340 = vmatprep.subr.mxu0 0.0
        %1341 = vmatpush1.msra.mxu0 0.0
        %1342 = vmatprep.subr.mxu0 0.0
        %1343 = vmatpush1.msra.mxu0 0.0
        %1344 = vmatprep.subr.mxu0 0.0
        %1345 = vmatpush1.msra.mxu0 0.0
        %1346 = vmatprep.subr.mxu0 0.0
        %1347 = vmatpush1.msra.mxu0 0.0
        %1348 = vmatprep.subr.mxu0 0.0
        %1349 = vmatpush1.msra.mxu0 0.0
        %1350 = vmatprep.subr.mxu0 0.0
        %1351 = vmatpush1.msra.mxu0 0.0
        %1352 = vmatprep.subr.mxu0 0.0
        %1353 = vmatpush1.msra.mxu0 0.0
        %1354 = vmatprep.subr.mxu0 0.0
        %1355 = vmatpush1.msra.mxu0 0.0
        %1356 = vmatprep.subr.mxu0 0.0
        %1357 = vmatpush1.msra.mxu0 0.0
        %1358 = vmatprep.subr.mxu0 0.0
        %1359 = vmatpush1.msra.mxu0 0.0
        %1360 = vmatprep.subr.mxu0 0.0
        %1361 = vmatpush1.msra.mxu0 0.0
        %1362 = vmatprep.subr.mxu0 0.0
        %1363 = vmatpush1.msra.mxu0 0.0
        %1364 = vmatprep.subr.mxu0 0.0
        %1365 = vmatpush1.msra.mxu0 0.0
        %1366 = vmatprep.subr.mxu0 0.0
        %1367 = vmatpush1.msra.mxu0 0.0
        %1368 = vmatprep.subr.mxu0 0.0
        %1369 = vmatpush1.msra.mxu0 0.0
        %1370 = vmatprep.subr.mxu0 0.0
        %1371 = vmatpush1.msra.mxu0 0.0
        %1372 = vmatprep.subr.mxu0 0.0
        %1373 = vmatpush1.msra.mxu0 0.0
        %1374 = vmatprep.subr.mxu0 0.0
        %1375 = vmatpush1.msra.mxu0 0.0
        %1376 = vmatprep.subr.mxu0 0.0
        %1377 = vmatpush1.msra.mxu0 0.0
        %1378 = vmatprep.subr.mxu0 0.0
        %1379 = vmatpush1.msra.mxu0 0.0
        %1380 = vmatprep.subr.mxu0 0.0
        %1381 = vmatpush1.msra.mxu0 0.0
        %1382 = vmatprep.subr.mxu0 0.0
        %1383 = vmatpush1.msra.mxu0 0.0
        %1384 = vmatprep.subr.mxu0 0.0
        %1385 = vmatpush1.msra.mxu0 0.0
        %1386 = vmatprep.subr.mxu0 0.0
        %1387 = vmatpush1.msra.mxu0 0.0
        %1388 = vmatprep.subr.mxu0 0.0
        %1389 = vmatpush1.msra.mxu0 0.0
        %1390 = vmatprep.subr.mxu0 0.0
        %1391 = vmatpush1.msra.mxu0 0.0
        %1392 = vmatprep.mubr.f32.mxu0 0.0
        %1393 = vmatmul.mubr.f32.gmra.mrb[0].mxu0 %v1326
        %v1394 = vpop.f32.mrb[0].mxu0
        %v1395 = vadd.f32 0.0, %v1394
        %v1396 = vpop.f32.mrb[0].mxu0
        %1397 = vdwg.mxu0
        %v1398 = vrcp.pop %v1323
        %v1399 = vmul.f32 %v1395, %v1398
        %v1400 = vld [vmem:[#allocation9 + $0x18] sm:$0xff]
        %v1402 = vsel %vm503, %v1399, 0
        %1404 = vmatprep.subr.mxu0 0.0
        %1405 = vmatpush1.msra.mxu0 %v1400
        %1406 = vmatprep.subr.mxu0 0.0
        %1407 = vmatpush1.msra.mxu0 0.0
        %1408 = vmatprep.subr.mxu0 0.0
        %1409 = vmatpush1.msra.mxu0 0.0
        %1410 = vmatprep.subr.mxu0 0.0
        %1411 = vmatpush1.msra.mxu0 0.0
        %1412 = vmatprep.subr.mxu0 0.0
        %1413 = vmatpush1.msra.mxu0 0.0
        %1414 = vmatprep.subr.mxu0 0.0
        %1415 = vmatpush1.msra.mxu0 0.0
        %1416 = vmatprep.subr.mxu0 0.0
        %1417 = vmatpush1.msra.mxu0 0.0
        %1418 = vmatprep.subr.mxu0 0.0
        %1419 = vmatpush1.msra.mxu0 0.0
        %1420 = vmatprep.subr.mxu0 0.0
        %1421 = vmatpush1.msra.mxu0 0.0
        %1422 = vmatprep.subr.mxu0 0.0
        %1423 = vmatpush1.msra.mxu0 0.0
        %1424 = vmatprep.subr.mxu0 0.0
        %1425 = vmatpush1.msra.mxu0 0.0
        %1426 = vmatprep.subr.mxu0 0.0
        %1427 = vmatpush1.msra.mxu0 0.0
        %1428 = vmatprep.subr.mxu0 0.0
        %1429 = vmatpush1.msra.mxu0 0.0
        %1430 = vmatprep.subr.mxu0 0.0
        %1431 = vmatpush1.msra.mxu0 0.0
        %1432 = vmatprep.subr.mxu0 0.0
        %1433 = vmatpush1.msra.mxu0 0.0
        %1434 = vmatprep.subr.mxu0 0.0
        %1435 = vmatpush1.msra.mxu0 0.0
        %1436 = vmatprep.subr.mxu0 0.0
        %1437 = vmatpush1.msra.mxu0 0.0
        %1438 = vmatprep.subr.mxu0 0.0
        %1439 = vmatpush1.msra.mxu0 0.0
        %1440 = vmatprep.subr.mxu0 0.0
        %1441 = vmatpush1.msra.mxu0 0.0
        %1442 = vmatprep.subr.mxu0 0.0
        %1443 = vmatpush1.msra.mxu0 0.0
        %1444 = vmatprep.subr.mxu0 0.0
        %1445 = vmatpush1.msra.mxu0 0.0
        %1446 = vmatprep.subr.mxu0 0.0
        %1447 = vmatpush1.msra.mxu0 0.0
        %1448 = vmatprep.subr.mxu0 0.0
        %1449 = vmatpush1.msra.mxu0 0.0
        %1450 = vmatprep.subr.mxu0 0.0
        %1451 = vmatpush1.msra.mxu0 0.0
        %1452 = vmatprep.subr.mxu0 0.0
        %1453 = vmatpush1.msra.mxu0 0.0
        %1454 = vmatprep.subr.mxu0 0.0
        %1455 = vmatpush1.msra.mxu0 0.0
        %1456 = vmatprep.subr.mxu0 0.0
        %1457 = vmatpush1.msra.mxu0 0.0
        %1458 = vmatprep.subr.mxu0 0.0
        %1459 = vmatpush1.msra.mxu0 0.0
        %1460 = vmatprep.subr.mxu0 0.0
        %1461 = vmatpush1.msra.mxu0 0.0
        %1462 = vmatprep.subr.mxu0 0.0
        %1463 = vmatpush1.msra.mxu0 0.0
        %1464 = vmatprep.subr.mxu0 0.0
        %1465 = vmatpush1.msra.mxu0 0.0
        %1466 = vmatprep.subr.mxu0 0.0
        %1467 = vmatpush1.msra.mxu0 0.0
        %1468 = vmatprep.mubr.f32.mxu0 0.0
        %1469 = vmatmul.mubr.f32.gmra.mrb[0].mxu0 %v1402
        %v1470 = vpop.f32.mrb[0].mxu0
        %v1471 = vadd.f32 0.0, %v1470
        %v1472 = vpop.f32.mrb[0].mxu0
        %1473 = vdwg.mxu0
        %v1474 = vadd.f32 %v1230, %v1471
        %v1475 = vld [vmem:[%s3] sm:$0x1]
        %v1477 = vlaneseq
        %v1478 = vshrl.u32 %v1477, 7
        %v1479 = vsub.s32 0, %v1478
        %v1480 = vrot.slane %v1475, %v1479
        %v1482 = vadd.f32 %v1474, %v1480
        %vm1483 = vcmask 261120
        %1484 = vst.msk [vmem:[%s255] sm:$0xff] %vm1483, %v1482
        %s1485 = sand.u32 %s133, 1
        %s1486 = scalar_lea.sflag [#allocation6], %s1485
        %s1487 = sand.u32 %s133, 1
        %s1488 = smul.addr %s1487, 8
        %s1489 = scalar_lea.vmem [#allocation10], %s1488
        // Predicated region
        $region53: #{tpu_custom_call.1} parent=35 // pred_check
          %p1490 = pneg %p143
        $region54: #{tpu_custom_call.1} parent=35 // pred_check_branch
          %1492 = sbr.rel (%p1490) target = $region56
        $region55: #{tpu_custom_call.1} parent=35 // pred_region
          %s1494 = ssub.s32 128, 128
          %1495 = vsyncadd %s1486, %s1494
          %s1496 = sadd.s32 %s27, %s26
          %s1497 = smul.addr %s1496, 128
          %s1498 = scalar_lea.hbm %s4, %s1497
          %s1500 = sshll.u32 %s1489, 4
          %s1501 = int_to_ptr.vmem [resolvable:$true] %s1500
          %1503 = dma.vmem_to_hbm [thread:$0]  %s1501, 128, %s1498, %s1486
        $region56: #{tpu_custom_call.1} parent=35 // pred_fallthru
          _
      $region36: #{tpu_custom_call.1} parent=5 // pred_fallthru
        _
      %p1504 = scmp.le.s32.totalorder 2, %s17
      // Predicated region
      $region57: #{tpu_custom_call.1} parent=5 // pred_check
        %p1505 = pneg %p1504
      $region58: #{tpu_custom_call.1} parent=5 // pred_check_branch
        %1507 = sbr.rel (%p1505) target = $region60
      $region59: #{tpu_custom_call.1} parent=5 // pred_region
        %s1508 = ssub.s32 %s17, 2
        // Predicated region
        $region61: #{tpu_custom_call.1} parent=59 // pred_check
          %p1509 = pneg %p149
        $region62: #{tpu_custom_call.1} parent=59 // pred_check_branch
          %1511 = sbr.rel (%p1509) target = $region64
        $region63: #{tpu_custom_call.1} parent=59 // pred_region
          %s1512 = sand.u32 %s134, 1
          %s1513 = scalar_lea.sflag [#allocation6], %s1512
          %s1514 = sand.u32 %s134, 1
          %s1515 = smul.addr %s1514, 8
          %s1516 = scalar_lea.vmem [#allocation10], %s1515
          %1517 = dma.done %s1513, 128
        $region64: #{tpu_custom_call.1} parent=59 // pred_fallthru
          _
      $region60: #{tpu_custom_call.1} parent=5 // pred_fallthru
        _
    $region6: #{tpu_custom_call.1} parent=1 // loop_footer
      %s21 = sadd.s32 1, %s17
    $region7: #{tpu_custom_call.1} parent=1 // loop_footer_branch
      %16 = sbr.rel target = $region3
    $region8: #{tpu_custom_call.1} parent=1 // loop_exit
      _
    %1518 = vsyncpa [#allocation5], 1
    %s1519 = scalar_lea.sflag [#allocation5], 1
    %1520 = vsyncpa %s1519, 1
    %1521 = vsyncpa [#allocation8], 1
    %1522 = vsyncpa [#allocation6], 1
    %s1523 = scalar_lea.sflag [#allocation6], 1
    %1524 = vsyncpa %s1523, 1

</llo_original>
